<compile_context>
chip_gen: v7x
topology: tpu7x:2x2x1
jax: 0.10.0
libtpu: 0.0.40
codegen_flags: <defaults>
</compile_context>

<pallas_src>
import functools

import jax
import jax.numpy as jnp
from jax.experimental import pallas as pl
from jax.experimental.pallas import tpu as pltpu


# ----------------------------------------------------------------------------
# Fused encoder kernel: 2 layers x 2 directions, no grid (single invocation).
# PyTorch GRU gate order: (r, z, n).
# ----------------------------------------------------------------------------
def _encoder_kernel(x_ref,
                    wi0f, wh0f, bi0f, bh0f,
                    wi0b, wh0b, bi0b, bh0b,
                    wi1f, wh1f, bi1f, bh1f,
                    wi1b, wh1b, bi1b, bh1b,
                    hidden_ref,
                    gi0f_s, gi0b_s, seq0f_s, seq0b_s, gi1f_s, gi1b_s,
                    *, T, Bp, H):
    f32 = jnp.float32
    G = 3 * H

    def gru_cell(gi, h, wh, bh):
        # gi already contains x @ W_ih + b_ih; bh must stay inside r*(...) for n.
        gh = jnp.dot(h, wh, preferred_element_type=f32) + bh
        r = jax.nn.sigmoid(gi[:, 0:H] + gh[:, 0:H])
        z = jax.nn.sigmoid(gi[:, H:2 * H] + gh[:, H:2 * H])
        n = jnp.tanh(gi[:, 2 * H:G] + r * gh[:, 2 * H:G])
        return (1.0 - z) * n + z * h

    # ---------------- layer 0: hoisted input projections (one matmul each) ---
    x = x_ref[...]                                             # (T*Bp, Fp)
    gi0f_s[...] = jnp.dot(x, wi0f[...], preferred_element_type=f32) + bi0f[...]
    gi0b_s[...] = jnp.dot(x, wi0b[...], preferred_element_type=f32) + bi0b[...]

    wh0f_v = wh0f[...]
    wh0b_v = wh0b[...]
    bh0f_b = jnp.broadcast_to(bh0f[...], (Bp, G))              # hoisted broadcasts
    bh0b_b = jnp.broadcast_to(bh0b[...], (Bp, G))

    h_f = jnp.zeros((Bp, H), f32)
    h_b = jnp.zeros((Bp, H), f32)
    for t in range(T):                                         # static unroll
        i_f = t * Bp                                           # sublane-aligned
        i_b = (T - 1 - t) * Bp
        h_f = gru_cell(gi0f_s[i_f:i_f + Bp, :], h_f, wh0f_v, bh0f_b)
        h_b = gru_cell(gi0b_s[i_b:i_b + Bp, :], h_b, wh0b_v, bh0b_b)
        seq0f_s[i_f:i_f + Bp, :] = h_f                          # VMEM-resident seq
        seq0b_s[i_b:i_b + Bp, :] = h_b
    h0f_last, h0b_last = h_f, h_b

    # ---------------- layer 1: hoisted projection of the layer-0 sequence ----
    seq0f = seq0f_s[...]                                        # (T*Bp, H)
    seq0b = seq0b_s[...]                                        # (T*Bp, H)
    gi1f_s[...] = (jnp.dot(seq0f, wi1f[0:H, :], preferred_element_type=f32)
                   + jnp.dot(seq0b, wi1f[H:2 * H, :], preferred_element_type=f32)
                   + bi1f[...])
    gi1b_s[...] = (jnp.dot(seq0f, wi1b[0:H, :], preferred_element_type=f32)
                   + jnp.dot(seq0b, wi1b[H:2 * H, :], preferred_element_type=f32)
                   + bi1b[...])

    wh1f_v = wh1f[...]
    wh1b_v = wh1b[...]
    bh1f_b = jnp.broadcast_to(bh1f[...], (Bp, G))
    bh1b_b = jnp.broadcast_to(bh1b[...], (Bp, G))

    h_f = jnp.zeros((Bp, H), f32)
    h_b = jnp.zeros((Bp, H), f32)
    for t in range(T):
        i_f = t * Bp
        i_b = (T - 1 - t) * Bp
        h_f = gru_cell(gi1f_s[i_f:i_f + Bp, :], h_f, wh1f_v, bh1f_b)
        h_b = gru_cell(gi1b_s[i_b:i_b + Bp, :], h_b, wh1b_v, bh1b_b)
    h1f_last, h1b_last = h_f, h_b

    # hidden = cat(h[0], h[1], h[2], h[3], dim=1) -> (Bp, 4H) = one lane-dense
    # unmasked store (4H = 128 lanes for H = 32).
    hidden_ref[...] = jnp.concatenate(
        [h0f_last, h0b_last, h1f_last, h1b_last], axis=1)


# ----------------------------------------------------------------------------
# Encoder forward wrapper (single pallas_call).
# ----------------------------------------------------------------------------
def encoder_forward(params, inputs):
    # inputs: (B, T, F) like PyTorch batch_first.
    B, T, F = inputs.shape
    H = params["l0_fwd"]["wh"].shape[0]

    Bp = max(8, ((B + 7) // 8) * 8)       # sublane-aligned batch
    Fp = max(8, ((F + 7) // 8) * 8)       # sublane-aligned contraction dim

    x = jnp.transpose(inputs, (1, 0, 2)).astype(jnp.float32)   # (T, B, F) time-major
    x = jnp.pad(x, ((0, 0), (0, Bp - B), (0, Fp - F)))
    x_flat = x.reshape(T * Bp, Fp)                              # row index = t*Bp + b

    args = [x_flat]
    for layer in range(2):
        for d in ("fwd", "bwd"):
            q = params[f"l{layer}_{d}"]
            wi = q["wi"]
            if layer == 0:                                      # pad F -> Fp with zeros
                wi = jnp.pad(wi, ((0, Fp - F), (0, 0)))
            args += [wi, q["wh"], q["bi"], q["bh"]]

    kernel = functools.partial(_encoder_kernel, T=T, Bp=Bp, H=H)
    vmem = pltpu.MemorySpace.VMEM
    in_specs = [pl.BlockSpec(memory_space=vmem) for _ in args]
    out_specs = pl.BlockSpec(memory_space=vmem)

    # TODO(synk): inter-layer dropout (training-only, stochastic) not applied.
    out = pl.pallas_call(
        kernel,
        out_shape=jax.ShapeDtypeStruct((Bp, 4 * H), jnp.float32),
        in_specs=in_specs,
        out_specs=out_specs,
        scratch_shapes=[
            pltpu.VMEM((T * Bp, 3 * H), jnp.float32),   # gi layer0 fwd
            pltpu.VMEM((T * Bp, 3 * H), jnp.float32),   # gi layer0 bwd
            pltpu.VMEM((T * Bp, H), jnp.float32),       # layer-0 seq, fwd half
            pltpu.VMEM((T * Bp, H), jnp.float32),       # layer-0 seq, bwd half
            pltpu.VMEM((T * Bp, 3 * H), jnp.float32),   # gi layer1 fwd
            pltpu.VMEM((T * Bp, 3 * H), jnp.float32),   # gi layer1 bwd
        ],
    )(*args)
    return out[:B]


# ----------------------------------------------------------------------------
# Pure-JAX reference (same math) for a correctness check.
# ----------------------------------------------------------------------------
def _gru_dir_ref(x, wi, wh, bi, bh, reverse):
    T, B, _ = x.shape
    H = wh.shape[0]
    xs = x[::-1] if reverse else x

    def step(h, x_t):
        gi = x_t @ wi + bi
        gh = h @ wh + bh
        r = jax.nn.sigmoid(gi[:, :H] + gh[:, :H])
        z = jax.nn.sigmoid(gi[:, H:2 * H] + gh[:, H:2 * H])
        n = jnp.tanh(gi[:, 2 * H:] + r * gh[:, 2 * H:])
        h_new = (1.0 - z) * n + z * h
        return h_new, h_new

    h0 = jnp.zeros((B, H), jnp.float32)
    h_last, ys = jax.lax.scan(step, h0, xs)
    if reverse:
        ys = ys[::-1]
    return ys, h_last


def encoder_ref(params, inputs):
    x = jnp.transpose(inputs, (1, 0, 2)).astype(jnp.float32)
    hiddens = []
    layer_in = x
    for layer in range(2):
        seqs = []
        for name, rev in (("fwd", False), ("bwd", True)):
            p = params[f"l{layer}_{name}"]
            seq, h_last = _gru_dir_ref(layer_in, p["wi"], p["wh"], p["bi"], p["bh"], rev)
            seqs.append(seq)
            hiddens.append(h_last)
        layer_in = jnp.concatenate(seqs, axis=-1)
    return jnp.concatenate(hiddens, axis=-1)


# ----------------------------------------------------------------------------
# Deterministic parameter init (shapes follow nn.GRU(input=F, hidden=H,
# num_layers=2, bidirectional=True); weights stored transposed: wi (F_in, 3H)).
# ----------------------------------------------------------------------------
def init_params(key, num_features, hidden_size):
    params = {}
    scale = 1.0 / jnp.sqrt(hidden_size)
    for layer in range(2):
        f_in = num_features if layer == 0 else 2 * hidden_size
        for name in ("fwd", "bwd"):
            key, k1, k2, k3, k4 = jax.random.split(key, 5)
            params[f"l{layer}_{name}"] = {
                "wi": jax.random.uniform(k1, (f_in, 3 * hidden_size), jnp.float32,
                                         -scale, scale),
                "wh": jax.random.uniform(k2, (hidden_size, 3 * hidden_size), jnp.float32,
                                         -scale, scale),
                "bi": jax.random.uniform(k3, (1, 3 * hidden_size), jnp.float32,
                                         -scale, scale),
                "bh": jax.random.uniform(k4, (1, 3 * hidden_size), jnp.float32,
                                         -scale, scale),
            }
    return params


if __name__ == "__main__":
    NUM_FEATURES = 4          # input_size
    HIDDEN_SIZE = 32          # hidden_size_layer_1 (hidden_size_layer_2 unused by GRU)
    B, T = 2, 8

    key = jax.random.PRNGKey(0)
    key, pkey, xkey = jax.random.split(key, 3)
    params = init_params(pkey, NUM_FEATURES, HIDDEN_SIZE)
    inputs = jax.random.normal(xkey, (B, T, NUM_FEATURES), jnp.float32)

    out = jax.block_until_ready(encoder_forward(params, inputs))
    ref = jax.block_until_ready(encoder_ref(params, inputs))

    assert out.shape == (B, 4 * HIDDEN_SIZE), out.shape
    assert jnp.allclose(out, ref, atol=2e-4, rtol=2e-4), "mismatch vs JAX reference"
    print("KERNEL_OK")
</pallas_src>

<mosaic_0001>
module attributes {stable_mosaic.version = 11 : i64} {
  func.func @_encoder_kernel(%arg0: memref<64x8xf32, #tpu.memory_space<vmem>>, %arg1: memref<8x96xf32, #tpu.memory_space<vmem>>, %arg2: memref<32x96xf32, #tpu.memory_space<vmem>>, %arg3: memref<1x96xf32, #tpu.memory_space<vmem>>, %arg4: memref<1x96xf32, #tpu.memory_space<vmem>>, %arg5: memref<8x96xf32, #tpu.memory_space<vmem>>, %arg6: memref<32x96xf32, #tpu.memory_space<vmem>>, %arg7: memref<1x96xf32, #tpu.memory_space<vmem>>, %arg8: memref<1x96xf32, #tpu.memory_space<vmem>>, %arg9: memref<64x96xf32, #tpu.memory_space<vmem>>, %arg10: memref<32x96xf32, #tpu.memory_space<vmem>>, %arg11: memref<1x96xf32, #tpu.memory_space<vmem>>, %arg12: memref<1x96xf32, #tpu.memory_space<vmem>>, %arg13: memref<64x96xf32, #tpu.memory_space<vmem>>, %arg14: memref<32x96xf32, #tpu.memory_space<vmem>>, %arg15: memref<1x96xf32, #tpu.memory_space<vmem>>, %arg16: memref<1x96xf32, #tpu.memory_space<vmem>>, %arg17: memref<8x128xf32, #tpu.memory_space<vmem>>, %arg18: memref<64x96xf32, #tpu.memory_space<vmem>>, %arg19: memref<64x96xf32, #tpu.memory_space<vmem>>, %arg20: memref<64x32xf32, #tpu.memory_space<vmem>>, %arg21: memref<64x32xf32, #tpu.memory_space<vmem>>, %arg22: memref<64x96xf32, #tpu.memory_space<vmem>>, %arg23: memref<64x96xf32, #tpu.memory_space<vmem>>) attributes {dimension_semantics = [], scalar_prefetch = 0 : i64, scratch_operands = 6 : i64, tpu.core_type = #tpu.core_type<tc>} {
    %c0 = arith.constant 0 : index
    %c0_0 = arith.constant 0 : index
    %0 = vector.load %arg0[%c0, %c0_0] : memref<64x8xf32, #tpu.memory_space<vmem>>, vector<64x8xf32>
    %c0_1 = arith.constant 0 : index
    %c0_2 = arith.constant 0 : index
    %1 = vector.load %arg1[%c0_1, %c0_2] : memref<8x96xf32, #tpu.memory_space<vmem>>, vector<8x96xf32>
    %cst = arith.constant dense<0.000000e+00> : vector<64x96xf32>
    %2 = tpu.matmul %0, %1, %cst {dimension_numbers = #tpu.dot_dimension_numbers<[1], [0], [0], [1], [0, 0, 1, 1], [], []>} : vector<64x8xf32>, vector<8x96xf32>, vector<64x96xf32> -> vector<64x96xf32>
    %c0_3 = arith.constant 0 : index
    %c0_4 = arith.constant 0 : index
    %3 = vector.load %arg3[%c0_3, %c0_4] : memref<1x96xf32, #tpu.memory_space<vmem>>, vector<1x96xf32>
    %4 = vector.broadcast %3 : vector<1x96xf32> to vector<64x96xf32>
    %5 = arith.addf %2, %4 : vector<64x96xf32>
    %c0_5 = arith.constant 0 : index
    %c0_6 = arith.constant 0 : index
    %6 = vector.load %arg18[%c0_5, %c0_6] : memref<64x96xf32, #tpu.memory_space<vmem>>, vector<64x96xf32>
    tpu.vector_store %arg18[%c0_5, %c0_6], %5 {strides = array<i32>} : memref<64x96xf32, #tpu.memory_space<vmem>>, vector<64x96xf32>,
    %c0_7 = arith.constant 0 : index
    %c0_8 = arith.constant 0 : index
    %7 = vector.load %arg5[%c0_7, %c0_8] : memref<8x96xf32, #tpu.memory_space<vmem>>, vector<8x96xf32>
    %cst_9 = arith.constant dense<0.000000e+00> : vector<64x96xf32>
    %8 = tpu.matmul %0, %7, %cst_9 {dimension_numbers = #tpu.dot_dimension_numbers<[1], [0], [0], [1], [0, 0, 1, 1], [], []>} : vector<64x8xf32>, vector<8x96xf32>, vector<64x96xf32> -> vector<64x96xf32>
    %c0_10 = arith.constant 0 : index
    %c0_11 = arith.constant 0 : index
    %9 = vector.load %arg7[%c0_10, %c0_11] : memref<1x96xf32, #tpu.memory_space<vmem>>, vector<1x96xf32>
    %10 = vector.broadcast %9 : vector<1x96xf32> to vector<64x96xf32>
    %11 = arith.addf %8, %10 : vector<64x96xf32>
    %c0_12 = arith.constant 0 : index
    %c0_13 = arith.constant 0 : index
    %12 = vector.load %arg19[%c0_12, %c0_13] : memref<64x96xf32, #tpu.memory_space<vmem>>, vector<64x96xf32>
    tpu.vector_store %arg19[%c0_12, %c0_13], %11 {strides = array<i32>} : memref<64x96xf32, #tpu.memory_space<vmem>>, vector<64x96xf32>,
    %c0_14 = arith.constant 0 : index
    %c0_15 = arith.constant 0 : index
    %13 = vector.load %arg2[%c0_14, %c0_15] : memref<32x96xf32, #tpu.memory_space<vmem>>, vector<32x96xf32>
    %c0_16 = arith.constant 0 : index
    %c0_17 = arith.constant 0 : index
    %14 = vector.load %arg6[%c0_16, %c0_17] : memref<32x96xf32, #tpu.memory_space<vmem>>, vector<32x96xf32>
    %c0_18 = arith.constant 0 : index
    %c0_19 = arith.constant 0 : index
    %15 = vector.load %arg4[%c0_18, %c0_19] : memref<1x96xf32, #tpu.memory_space<vmem>>, vector<1x96xf32>
    %16 = vector.shape_cast %15 : vector<1x96xf32> to vector<1x96xf32>
    %17 = vector.broadcast %16 : vector<1x96xf32> to vector<8x96xf32>
    %c0_20 = arith.constant 0 : index
    %c0_21 = arith.constant 0 : index
    %18 = vector.load %arg8[%c0_20, %c0_21] : memref<1x96xf32, #tpu.memory_space<vmem>>, vector<1x96xf32>
    %19 = vector.shape_cast %18 : vector<1x96xf32> to vector<1x96xf32>
    %20 = vector.broadcast %19 : vector<1x96xf32> to vector<8x96xf32>
    %cst_22 = arith.constant 0.000000e+00 : f32
    %21 = vector.broadcast %cst_22 : f32 to vector<8x32xf32>
    %cst_23 = arith.constant 0.000000e+00 : f32
    %22 = vector.broadcast %cst_23 : f32 to vector<8x32xf32>
    %c0_24 = arith.constant 0 : index
    %c0_25 = arith.constant 0 : index
    %23 = vector.load %arg18[%c0_24, %c0_25] : memref<64x96xf32, #tpu.memory_space<vmem>>, vector<8x96xf32>
    %cst_26 = arith.constant dense<0.000000e+00> : vector<8x96xf32>
    %24 = tpu.matmul %21, %13, %cst_26 {dimension_numbers = #tpu.dot_dimension_numbers<[1], [0], [0], [1], [0, 0, 1, 1], [], []>} : vector<8x32xf32>, vector<32x96xf32>, vector<8x96xf32> -> vector<8x96xf32>
    %25 = arith.addf %24, %17 : vector<8x96xf32>
    %26 = vector.extract_strided_slice %23 {offsets = [0, 0], sizes = [8, 32], strides = [1, 1]} : vector<8x96xf32> to vector<8x32xf32>
    %27 = vector.extract_strided_slice %25 {offsets = [0, 0], sizes = [8, 32], strides = [1, 1]} : vector<8x96xf32> to vector<8x32xf32>
    %28 = arith.addf %26, %27 : vector<8x32xf32>
    %29 = arith.negf %28 : vector<8x32xf32>
    %30 = math.exp %29 : vector<8x32xf32>
    %cst_27 = arith.constant 1.000000e+00 : f32
    %31 = vector.broadcast %cst_27 : f32 to vector<8x32xf32>
    %32 = arith.addf %31, %30 : vector<8x32xf32>
    %33 = arith.divf %31, %32 : vector<8x32xf32>
    %34 = vector.extract_strided_slice %23 {offsets = [0, 32], sizes = [8, 32], strides = [1, 1]} : vector<8x96xf32> to vector<8x32xf32>
    %35 = vector.extract_strided_slice %25 {offsets = [0, 32], sizes = [8, 32], strides = [1, 1]} : vector<8x96xf32> to vector<8x32xf32>
    %36 = arith.addf %34, %35 : vector<8x32xf32>
    %37 = arith.negf %36 : vector<8x32xf32>
    %38 = math.exp %37 : vector<8x32xf32>
    %cst_28 = arith.constant 1.000000e+00 : f32
    %39 = vector.broadcast %cst_28 : f32 to vector<8x32xf32>
    %40 = arith.addf %39, %38 : vector<8x32xf32>
    %41 = arith.divf %39, %40 : vector<8x32xf32>
    %42 = vector.extract_strided_slice %23 {offsets = [0, 64], sizes = [8, 32], strides = [1, 1]} : vector<8x96xf32> to vector<8x32xf32>
    %43 = vector.extract_strided_slice %25 {offsets = [0, 64], sizes = [8, 32], strides = [1, 1]} : vector<8x96xf32> to vector<8x32xf32>
    %44 = arith.mulf %33, %43 : vector<8x32xf32>
    %45 = arith.addf %42, %44 : vector<8x32xf32>
    %46 = math.tanh %45 : vector<8x32xf32>
    %cst_29 = arith.constant 1.000000e+00 : f32
    %47 = vector.broadcast %cst_29 : f32 to vector<8x32xf32>
    %48 = arith.subf %47, %41 : vector<8x32xf32>
    %49 = arith.mulf %48, %46 : vector<8x32xf32>
    %50 = arith.mulf %41, %21 : vector<8x32xf32>
    %51 = arith.addf %49, %50 : vector<8x32xf32>
    %c56 = arith.constant 56 : index
    %c0_30 = arith.constant 0 : index
    %52 = vector.load %arg19[%c56, %c0_30] : memref<64x96xf32, #tpu.memory_space<vmem>>, vector<8x96xf32>
    %cst_31 = arith.constant dense<0.000000e+00> : vector<8x96xf32>
    %53 = tpu.matmul %22, %14, %cst_31 {dimension_numbers = #tpu.dot_dimension_numbers<[1], [0], [0], [1], [0, 0, 1, 1], [], []>} : vector<8x32xf32>, vector<32x96xf32>, vector<8x96xf32> -> vector<8x96xf32>
    %54 = arith.addf %53, %20 : vector<8x96xf32>
    %55 = vector.extract_strided_slice %52 {offsets = [0, 0], sizes = [8, 32], strides = [1, 1]} : vector<8x96xf32> to vector<8x32xf32>
    %56 = vector.extract_strided_slice %54 {offsets = [0, 0], sizes = [8, 32], strides = [1, 1]} : vector<8x96xf32> to vector<8x32xf32>
    %57 = arith.addf %55, %56 : vector<8x32xf32>
    %58 = arith.negf %57 : vector<8x32xf32>
    %59 = math.exp %58 : vector<8x32xf32>
    %cst_32 = arith.constant 1.000000e+00 : f32
    %60 = vector.broadcast %cst_32 : f32 to vector<8x32xf32>
    %61 = arith.addf %60, %59 : vector<8x32xf32>
    %62 = arith.divf %60, %61 : vector<8x32xf32>
    %63 = vector.extract_strided_slice %52 {offsets = [0, 32], sizes = [8, 32], strides = [1, 1]} : vector<8x96xf32> to vector<8x32xf32>
    %64 = vector.extract_strided_slice %54 {offsets = [0, 32], sizes = [8, 32], strides = [1, 1]} : vector<8x96xf32> to vector<8x32xf32>
    %65 = arith.addf %63, %64 : vector<8x32xf32>
    %66 = arith.negf %65 : vector<8x32xf32>
    %67 = math.exp %66 : vector<8x32xf32>
    %cst_33 = arith.constant 1.000000e+00 : f32
    %68 = vector.broadcast %cst_33 : f32 to vector<8x32xf32>
    %69 = arith.addf %68, %67 : vector<8x32xf32>
    %70 = arith.divf %68, %69 : vector<8x32xf32>
    %71 = vector.extract_strided_slice %52 {offsets = [0, 64], sizes = [8, 32], strides = [1, 1]} : vector<8x96xf32> to vector<8x32xf32>
    %72 = vector.extract_strided_slice %54 {offsets = [0, 64], sizes = [8, 32], strides = [1, 1]} : vector<8x96xf32> to vector<8x32xf32>
    %73 = arith.mulf %62, %72 : vector<8x32xf32>
    %74 = arith.addf %71, %73 : vector<8x32xf32>
    %75 = math.tanh %74 : vector<8x32xf32>
    %cst_34 = arith.constant 1.000000e+00 : f32
    %76 = vector.broadcast %cst_34 : f32 to vector<8x32xf32>
    %77 = arith.subf %76, %70 : vector<8x32xf32>
    %78 = arith.mulf %77, %75 : vector<8x32xf32>
    %79 = arith.mulf %70, %22 : vector<8x32xf32>
    %80 = arith.addf %78, %79 : vector<8x32xf32>
    %c0_35 = arith.constant 0 : index
    %c0_36 = arith.constant 0 : index
    %81 = vector.load %arg20[%c0_35, %c0_36] : memref<64x32xf32, #tpu.memory_space<vmem>>, vector<8x32xf32>
    tpu.vector_store %arg20[%c0_35, %c0_36], %51 {strides = array<i32>} : memref<64x32xf32, #tpu.memory_space<vmem>>, vector<8x32xf32>,
    %c56_37 = arith.constant 56 : index
    %c0_38 = arith.constant 0 : index
    %82 = vector.load %arg21[%c56_37, %c0_38] : memref<64x32xf32, #tpu.memory_space<vmem>>, vector<8x32xf32>
    tpu.vector_store %arg21[%c56_37, %c0_38], %80 {strides = array<i32>} : memref<64x32xf32, #tpu.memory_space<vmem>>, vector<8x32xf32>,
    %c8 = arith.constant 8 : index
    %c0_39 = arith.constant 0 : index
    %83 = vector.load %arg18[%c8, %c0_39] : memref<64x96xf32, #tpu.memory_space<vmem>>, vector<8x96xf32>
    %cst_40 = arith.constant dense<0.000000e+00> : vector<8x96xf32>
    %84 = tpu.matmul %51, %13, %cst_40 {dimension_numbers = #tpu.dot_dimension_numbers<[1], [0], [0], [1], [0, 0, 1, 1], [], []>} : vector<8x32xf32>, vector<32x96xf32>, vector<8x96xf32> -> vector<8x96xf32>
    %85 = arith.addf %84, %17 : vector<8x96xf32>
    %86 = vector.extract_strided_slice %83 {offsets = [0, 0], sizes = [8, 32], strides = [1, 1]} : vector<8x96xf32> to vector<8x32xf32>
    %87 = vector.extract_strided_slice %85 {offsets = [0, 0], sizes = [8, 32], strides = [1, 1]} : vector<8x96xf32> to vector<8x32xf32>
    %88 = arith.addf %86, %87 : vector<8x32xf32>
    %89 = arith.negf %88 : vector<8x32xf32>
    %90 = math.exp %89 : vector<8x32xf32>
    %cst_41 = arith.constant 1.000000e+00 : f32
    %91 = vector.broadcast %cst_41 : f32 to vector<8x32xf32>
    %92 = arith.addf %91, %90 : vector<8x32xf32>
    %93 = arith.divf %91, %92 : vector<8x32xf32>
    %94 = vector.extract_strided_slice %83 {offsets = [0, 32], sizes = [8, 32], strides = [1, 1]} : vector<8x96xf32> to vector<8x32xf32>
    %95 = vector.extract_strided_slice %85 {offsets = [0, 32], sizes = [8, 32], strides = [1, 1]} : vector<8x96xf32> to vector<8x32xf32>
    %96 = arith.addf %94, %95 : vector<8x32xf32>
    %97 = arith.negf %96 : vector<8x32xf32>
    %98 = math.exp %97 : vector<8x32xf32>
    %cst_42 = arith.constant 1.000000e+00 : f32
    %99 = vector.broadcast %cst_42 : f32 to vector<8x32xf32>
    %100 = arith.addf %99, %98 : vector<8x32xf32>
    %101 = arith.divf %99, %100 : vector<8x32xf32>
    %102 = vector.extract_strided_slice %83 {offsets = [0, 64], sizes = [8, 32], strides = [1, 1]} : vector<8x96xf32> to vector<8x32xf32>
    %103 = vector.extract_strided_slice %85 {offsets = [0, 64], sizes = [8, 32], strides = [1, 1]} : vector<8x96xf32> to vector<8x32xf32>
    %104 = arith.mulf %93, %103 : vector<8x32xf32>
    %105 = arith.addf %102, %104 : vector<8x32xf32>
    %106 = math.tanh %105 : vector<8x32xf32>
    %cst_43 = arith.constant 1.000000e+00 : f32
    %107 = vector.broadcast %cst_43 : f32 to vector<8x32xf32>
    %108 = arith.subf %107, %101 : vector<8x32xf32>
    %109 = arith.mulf %108, %106 : vector<8x32xf32>
    %110 = arith.mulf %101, %51 : vector<8x32xf32>
    %111 = arith.addf %109, %110 : vector<8x32xf32>
    %c48 = arith.constant 48 : index
    %c0_44 = arith.constant 0 : index
    %112 = vector.load %arg19[%c48, %c0_44] : memref<64x96xf32, #tpu.memory_space<vmem>>, vector<8x96xf32>
    %cst_45 = arith.constant dense<0.000000e+00> : vector<8x96xf32>
    %113 = tpu.matmul %80, %14, %cst_45 {dimension_numbers = #tpu.dot_dimension_numbers<[1], [0], [0], [1], [0, 0, 1, 1], [], []>} : vector<8x32xf32>, vector<32x96xf32>, vector<8x96xf32> -> vector<8x96xf32>
    %114 = arith.addf %113, %20 : vector<8x96xf32>
    %115 = vector.extract_strided_slice %112 {offsets = [0, 0], sizes = [8, 32], strides = [1, 1]} : vector<8x96xf32> to vector<8x32xf32>
    %116 = vector.extract_strided_slice %114 {offsets = [0, 0], sizes = [8, 32], strides = [1, 1]} : vector<8x96xf32> to vector<8x32xf32>
    %117 = arith.addf %115, %116 : vector<8x32xf32>
    %118 = arith.negf %117 : vector<8x32xf32>
    %119 = math.exp %118 : vector<8x32xf32>
    %cst_46 = arith.constant 1.000000e+00 : f32
    %120 = vector.broadcast %cst_46 : f32 to vector<8x32xf32>
    %121 = arith.addf %120, %119 : vector<8x32xf32>
    %122 = arith.divf %120, %121 : vector<8x32xf32>
    %123 = vector.extract_strided_slice %112 {offsets = [0, 32], sizes = [8, 32], strides = [1, 1]} : vector<8x96xf32> to vector<8x32xf32>
    %124 = vector.extract_strided_slice %114 {offsets = [0, 32], sizes = [8, 32], strides = [1, 1]} : vector<8x96xf32> to vector<8x32xf32>
    %125 = arith.addf %123, %124 : vector<8x32xf32>
    %126 = arith.negf %125 : vector<8x32xf32>
    %127 = math.exp %126 : vector<8x32xf32>
    %cst_47 = arith.constant 1.000000e+00 : f32
    %128 = vector.broadcast %cst_47 : f32 to vector<8x32xf32>
    %129 = arith.addf %128, %127 : vector<8x32xf32>
    %130 = arith.divf %128, %129 : vector<8x32xf32>
    %131 = vector.extract_strided_slice %112 {offsets = [0, 64], sizes = [8, 32], strides = [1, 1]} : vector<8x96xf32> to vector<8x32xf32>
    %132 = vector.extract_strided_slice %114 {offsets = [0, 64], sizes = [8, 32], strides = [1, 1]} : vector<8x96xf32> to vector<8x32xf32>
    %133 = arith.mulf %122, %132 : vector<8x32xf32>
    %134 = arith.addf %131, %133 : vector<8x32xf32>
    %135 = math.tanh %134 : vector<8x32xf32>
    %cst_48 = arith.constant 1.000000e+00 : f32
    %136 = vector.broadcast %cst_48 : f32 to vector<8x32xf32>
    %137 = arith.subf %136, %130 : vector<8x32xf32>
    %138 = arith.mulf %137, %135 : vector<8x32xf32>
    %139 = arith.mulf %130, %80 : vector<8x32xf32>
    %140 = arith.addf %138, %139 : vector<8x32xf32>
    %c8_49 = arith.constant 8 : index
    %c0_50 = arith.constant 0 : index
    %141 = vector.load %arg20[%c8_49, %c0_50] : memref<64x32xf32, #tpu.memory_space<vmem>>, vector<8x32xf32>
    tpu.vector_store %arg20[%c8_49, %c0_50], %111 {strides = array<i32>} : memref<64x32xf32, #tpu.memory_space<vmem>>, vector<8x32xf32>,
    %c48_51 = arith.constant 48 : index
    %c0_52 = arith.constant 0 : index
    %142 = vector.load %arg21[%c48_51, %c0_52] : memref<64x32xf32, #tpu.memory_space<vmem>>, vector<8x32xf32>
    tpu.vector_store %arg21[%c48_51, %c0_52], %140 {strides = array<i32>} : memref<64x32xf32, #tpu.memory_space<vmem>>, vector<8x32xf32>,
    %c16 = arith.constant 16 : index
    %c0_53 = arith.constant 0 : index
    %143 = vector.load %arg18[%c16, %c0_53] : memref<64x96xf32, #tpu.memory_space<vmem>>, vector<8x96xf32>
    %cst_54 = arith.constant dense<0.000000e+00> : vector<8x96xf32>
    %144 = tpu.matmul %111, %13, %cst_54 {dimension_numbers = #tpu.dot_dimension_numbers<[1], [0], [0], [1], [0, 0, 1, 1], [], []>} : vector<8x32xf32>, vector<32x96xf32>, vector<8x96xf32> -> vector<8x96xf32>
    %145 = arith.addf %144, %17 : vector<8x96xf32>
    %146 = vector.extract_strided_slice %143 {offsets = [0, 0], sizes = [8, 32], strides = [1, 1]} : vector<8x96xf32> to vector<8x32xf32>
    %147 = vector.extract_strided_slice %145 {offsets = [0, 0], sizes = [8, 32], strides = [1, 1]} : vector<8x96xf32> to vector<8x32xf32>
    %148 = arith.addf %146, %147 : vector<8x32xf32>
    %149 = arith.negf %148 : vector<8x32xf32>
    %150 = math.exp %149 : vector<8x32xf32>
    %cst_55 = arith.constant 1.000000e+00 : f32
    %151 = vector.broadcast %cst_55 : f32 to vector<8x32xf32>
    %152 = arith.addf %151, %150 : vector<8x32xf32>
    %153 = arith.divf %151, %152 : vector<8x32xf32>
    %154 = vector.extract_strided_slice %143 {offsets = [0, 32], sizes = [8, 32], strides = [1, 1]} : vector<8x96xf32> to vector<8x32xf32>
    %155 = vector.extract_strided_slice %145 {offsets = [0, 32], sizes = [8, 32], strides = [1, 1]} : vector<8x96xf32> to vector<8x32xf32>
    %156 = arith.addf %154, %155 : vector<8x32xf32>
    %157 = arith.negf %156 : vector<8x32xf32>
    %158 = math.exp %157 : vector<8x32xf32>
    %cst_56 = arith.constant 1.000000e+00 : f32
    %159 = vector.broadcast %cst_56 : f32 to vector<8x32xf32>
    %160 = arith.addf %159, %158 : vector<8x32xf32>
    %161 = arith.divf %159, %160 : vector<8x32xf32>
    %162 = vector.extract_strided_slice %143 {offsets = [0, 64], sizes = [8, 32], strides = [1, 1]} : vector<8x96xf32> to vector<8x32xf32>
    %163 = vector.extract_strided_slice %145 {offsets = [0, 64], sizes = [8, 32], strides = [1, 1]} : vector<8x96xf32> to vector<8x32xf32>
    %164 = arith.mulf %153, %163 : vector<8x32xf32>
    %165 = arith.addf %162, %164 : vector<8x32xf32>
    %166 = math.tanh %165 : vector<8x32xf32>
    %cst_57 = arith.constant 1.000000e+00 : f32
    %167 = vector.broadcast %cst_57 : f32 to vector<8x32xf32>
    %168 = arith.subf %167, %161 : vector<8x32xf32>
    %169 = arith.mulf %168, %166 : vector<8x32xf32>
    %170 = arith.mulf %161, %111 : vector<8x32xf32>
    %171 = arith.addf %169, %170 : vector<8x32xf32>
    %c40 = arith.constant 40 : index
    %c0_58 = arith.constant 0 : index
    %172 = vector.load %arg19[%c40, %c0_58] : memref<64x96xf32, #tpu.memory_space<vmem>>, vector<8x96xf32>
    %cst_59 = arith.constant dense<0.000000e+00> : vector<8x96xf32>
    %173 = tpu.matmul %140, %14, %cst_59 {dimension_numbers = #tpu.dot_dimension_numbers<[1], [0], [0], [1], [0, 0, 1, 1], [], []>} : vector<8x32xf32>, vector<32x96xf32>, vector<8x96xf32> -> vector<8x96xf32>
    %174 = arith.addf %173, %20 : vector<8x96xf32>
    %175 = vector.extract_strided_slice %172 {offsets = [0, 0], sizes = [8, 32], strides = [1, 1]} : vector<8x96xf32> to vector<8x32xf32>
    %176 = vector.extract_strided_slice %174 {offsets = [0, 0], sizes = [8, 32], strides = [1, 1]} : vector<8x96xf32> to vector<8x32xf32>
    %177 = arith.addf %175, %176 : vector<8x32xf32>
    %178 = arith.negf %177 : vector<8x32xf32>
    %179 = math.exp %178 : vector<8x32xf32>
    %cst_60 = arith.constant 1.000000e+00 : f32
    %180 = vector.broadcast %cst_60 : f32 to vector<8x32xf32>
    %181 = arith.addf %180, %179 : vector<8x32xf32>
    %182 = arith.divf %180, %181 : vector<8x32xf32>
    %183 = vector.extract_strided_slice %172 {offsets = [0, 32], sizes = [8, 32], strides = [1, 1]} : vector<8x96xf32> to vector<8x32xf32>
    %184 = vector.extract_strided_slice %174 {offsets = [0, 32], sizes = [8, 32], strides = [1, 1]} : vector<8x96xf32> to vector<8x32xf32>
    %185 = arith.addf %183, %184 : vector<8x32xf32>
    %186 = arith.negf %185 : vector<8x32xf32>
    %187 = math.exp %186 : vector<8x32xf32>
    %cst_61 = arith.constant 1.000000e+00 : f32
    %188 = vector.broadcast %cst_61 : f32 to vector<8x32xf32>
    %189 = arith.addf %188, %187 : vector<8x32xf32>
    %190 = arith.divf %188, %189 : vector<8x32xf32>
    %191 = vector.extract_strided_slice %172 {offsets = [0, 64], sizes = [8, 32], strides = [1, 1]} : vector<8x96xf32> to vector<8x32xf32>
    %192 = vector.extract_strided_slice %174 {offsets = [0, 64], sizes = [8, 32], strides = [1, 1]} : vector<8x96xf32> to vector<8x32xf32>
    %193 = arith.mulf %182, %192 : vector<8x32xf32>
    %194 = arith.addf %191, %193 : vector<8x32xf32>
    %195 = math.tanh %194 : vector<8x32xf32>
    %cst_62 = arith.constant 1.000000e+00 : f32
    %196 = vector.broadcast %cst_62 : f32 to vector<8x32xf32>
    %197 = arith.subf %196, %190 : vector<8x32xf32>
    %198 = arith.mulf %197, %195 : vector<8x32xf32>
    %199 = arith.mulf %190, %140 : vector<8x32xf32>
    %200 = arith.addf %198, %199 : vector<8x32xf32>
    %c16_63 = arith.constant 16 : index
    %c0_64 = arith.constant 0 : index
    %201 = vector.load %arg20[%c16_63, %c0_64] : memref<64x32xf32, #tpu.memory_space<vmem>>, vector<8x32xf32>
    tpu.vector_store %arg20[%c16_63, %c0_64], %171 {strides = array<i32>} : memref<64x32xf32, #tpu.memory_space<vmem>>, vector<8x32xf32>,
    %c40_65 = arith.constant 40 : index
    %c0_66 = arith.constant 0 : index
    %202 = vector.load %arg21[%c40_65, %c0_66] : memref<64x32xf32, #tpu.memory_space<vmem>>, vector<8x32xf32>
    tpu.vector_store %arg21[%c40_65, %c0_66], %200 {strides = array<i32>} : memref<64x32xf32, #tpu.memory_space<vmem>>, vector<8x32xf32>,
    %c24 = arith.constant 24 : index
    %c0_67 = arith.constant 0 : index
    %203 = vector.load %arg18[%c24, %c0_67] : memref<64x96xf32, #tpu.memory_space<vmem>>, vector<8x96xf32>
    %cst_68 = arith.constant dense<0.000000e+00> : vector<8x96xf32>
    %204 = tpu.matmul %171, %13, %cst_68 {dimension_numbers = #tpu.dot_dimension_numbers<[1], [0], [0], [1], [0, 0, 1, 1], [], []>} : vector<8x32xf32>, vector<32x96xf32>, vector<8x96xf32> -> vector<8x96xf32>
    %205 = arith.addf %204, %17 : vector<8x96xf32>
    %206 = vector.extract_strided_slice %203 {offsets = [0, 0], sizes = [8, 32], strides = [1, 1]} : vector<8x96xf32> to vector<8x32xf32>
    %207 = vector.extract_strided_slice %205 {offsets = [0, 0], sizes = [8, 32], strides = [1, 1]} : vector<8x96xf32> to vector<8x32xf32>
    %208 = arith.addf %206, %207 : vector<8x32xf32>
    %209 = arith.negf %208 : vector<8x32xf32>
    %210 = math.exp %209 : vector<8x32xf32>
    %cst_69 = arith.constant 1.000000e+00 : f32
    %211 = vector.broadcast %cst_69 : f32 to vector<8x32xf32>
    %212 = arith.addf %211, %210 : vector<8x32xf32>
    %213 = arith.divf %211, %212 : vector<8x32xf32>
    %214 = vector.extract_strided_slice %203 {offsets = [0, 32], sizes = [8, 32], strides = [1, 1]} : vector<8x96xf32> to vector<8x32xf32>
    %215 = vector.extract_strided_slice %205 {offsets = [0, 32], sizes = [8, 32], strides = [1, 1]} : vector<8x96xf32> to vector<8x32xf32>
    %216 = arith.addf %214, %215 : vector<8x32xf32>
    %217 = arith.negf %216 : vector<8x32xf32>
    %218 = math.exp %217 : vector<8x32xf32>
    %cst_70 = arith.constant 1.000000e+00 : f32
    %219 = vector.broadcast %cst_70 : f32 to vector<8x32xf32>
    %220 = arith.addf %219, %218 : vector<8x32xf32>
    %221 = arith.divf %219, %220 : vector<8x32xf32>
    %222 = vector.extract_strided_slice %203 {offsets = [0, 64], sizes = [8, 32], strides = [1, 1]} : vector<8x96xf32> to vector<8x32xf32>
    %223 = vector.extract_strided_slice %205 {offsets = [0, 64], sizes = [8, 32], strides = [1, 1]} : vector<8x96xf32> to vector<8x32xf32>
    %224 = arith.mulf %213, %223 : vector<8x32xf32>
    %225 = arith.addf %222, %224 : vector<8x32xf32>
    %226 = math.tanh %225 : vector<8x32xf32>
    %cst_71 = arith.constant 1.000000e+00 : f32
    %227 = vector.broadcast %cst_71 : f32 to vector<8x32xf32>
    %228 = arith.subf %227, %221 : vector<8x32xf32>
    %229 = arith.mulf %228, %226 : vector<8x32xf32>
    %230 = arith.mulf %221, %171 : vector<8x32xf32>
    %231 = arith.addf %229, %230 : vector<8x32xf32>
    %c32 = arith.constant 32 : index
    %c0_72 = arith.constant 0 : index
    %232 = vector.load %arg19[%c32, %c0_72] : memref<64x96xf32, #tpu.memory_space<vmem>>, vector<8x96xf32>
    %cst_73 = arith.constant dense<0.000000e+00> : vector<8x96xf32>
    %233 = tpu.matmul %200, %14, %cst_73 {dimension_numbers = #tpu.dot_dimension_numbers<[1], [0], [0], [1], [0, 0, 1, 1], [], []>} : vector<8x32xf32>, vector<32x96xf32>, vector<8x96xf32> -> vector<8x96xf32>
    %234 = arith.addf %233, %20 : vector<8x96xf32>
    %235 = vector.extract_strided_slice %232 {offsets = [0, 0], sizes = [8, 32], strides = [1, 1]} : vector<8x96xf32> to vector<8x32xf32>
    %236 = vector.extract_strided_slice %234 {offsets = [0, 0], sizes = [8, 32], strides = [1, 1]} : vector<8x96xf32> to vector<8x32xf32>
    %237 = arith.addf %235, %236 : vector<8x32xf32>
    %238 = arith.negf %237 : vector<8x32xf32>
    %239 = math.exp %238 : vector<8x32xf32>
    %cst_74 = arith.constant 1.000000e+00 : f32
    %240 = vector.broadcast %cst_74 : f32 to vector<8x32xf32>
    %241 = arith.addf %240, %239 : vector<8x32xf32>
    %242 = arith.divf %240, %241 : vector<8x32xf32>
    %243 = vector.extract_strided_slice %232 {offsets = [0, 32], sizes = [8, 32], strides = [1, 1]} : vector<8x96xf32> to vector<8x32xf32>
    %244 = vector.extract_strided_slice %234 {offsets = [0, 32], sizes = [8, 32], strides = [1, 1]} : vector<8x96xf32> to vector<8x32xf32>
    %245 = arith.addf %243, %244 : vector<8x32xf32>
    %246 = arith.negf %245 : vector<8x32xf32>
    %247 = math.exp %246 : vector<8x32xf32>
    %cst_75 = arith.constant 1.000000e+00 : f32
    %248 = vector.broadcast %cst_75 : f32 to vector<8x32xf32>
    %249 = arith.addf %248, %247 : vector<8x32xf32>
    %250 = arith.divf %248, %249 : vector<8x32xf32>
    %251 = vector.extract_strided_slice %232 {offsets = [0, 64], sizes = [8, 32], strides = [1, 1]} : vector<8x96xf32> to vector<8x32xf32>
    %252 = vector.extract_strided_slice %234 {offsets = [0, 64], sizes = [8, 32], strides = [1, 1]} : vector<8x96xf32> to vector<8x32xf32>
    %253 = arith.mulf %242, %252 : vector<8x32xf32>
    %254 = arith.addf %251, %253 : vector<8x32xf32>
    %255 = math.tanh %254 : vector<8x32xf32>
    %cst_76 = arith.constant 1.000000e+00 : f32
    %256 = vector.broadcast %cst_76 : f32 to vector<8x32xf32>
    %257 = arith.subf %256, %250 : vector<8x32xf32>
    %258 = arith.mulf %257, %255 : vector<8x32xf32>
    %259 = arith.mulf %250, %200 : vector<8x32xf32>
    %260 = arith.addf %258, %259 : vector<8x32xf32>
    %c24_77 = arith.constant 24 : index
    %c0_78 = arith.constant 0 : index
    %261 = vector.load %arg20[%c24_77, %c0_78] : memref<64x32xf32, #tpu.memory_space<vmem>>, vector<8x32xf32>
    tpu.vector_store %arg20[%c24_77, %c0_78], %231 {strides = array<i32>} : memref<64x32xf32, #tpu.memory_space<vmem>>, vector<8x32xf32>,
    %c32_79 = arith.constant 32 : index
    %c0_80 = arith.constant 0 : index
    %262 = vector.load %arg21[%c32_79, %c0_80] : memref<64x32xf32, #tpu.memory_space<vmem>>, vector<8x32xf32>
    tpu.vector_store %arg21[%c32_79, %c0_80], %260 {strides = array<i32>} : memref<64x32xf32, #tpu.memory_space<vmem>>, vector<8x32xf32>,
    %c32_81 = arith.constant 32 : index
    %c0_82 = arith.constant 0 : index
    %263 = vector.load %arg18[%c32_81, %c0_82] : memref<64x96xf32, #tpu.memory_space<vmem>>, vector<8x96xf32>
    %cst_83 = arith.constant dense<0.000000e+00> : vector<8x96xf32>
    %264 = tpu.matmul %231, %13, %cst_83 {dimension_numbers = #tpu.dot_dimension_numbers<[1], [0], [0], [1], [0, 0, 1, 1], [], []>} : vector<8x32xf32>, vector<32x96xf32>, vector<8x96xf32> -> vector<8x96xf32>
    %265 = arith.addf %264, %17 : vector<8x96xf32>
    %266 = vector.extract_strided_slice %263 {offsets = [0, 0], sizes = [8, 32], strides = [1, 1]} : vector<8x96xf32> to vector<8x32xf32>
    %267 = vector.extract_strided_slice %265 {offsets = [0, 0], sizes = [8, 32], strides = [1, 1]} : vector<8x96xf32> to vector<8x32xf32>
    %268 = arith.addf %266, %267 : vector<8x32xf32>
    %269 = arith.negf %268 : vector<8x32xf32>
    %270 = math.exp %269 : vector<8x32xf32>
    %cst_84 = arith.constant 1.000000e+00 : f32
    %271 = vector.broadcast %cst_84 : f32 to vector<8x32xf32>
    %272 = arith.addf %271, %270 : vector<8x32xf32>
    %273 = arith.divf %271, %272 : vector<8x32xf32>
    %274 = vector.extract_strided_slice %263 {offsets = [0, 32], sizes = [8, 32], strides = [1, 1]} : vector<8x96xf32> to vector<8x32xf32>
    %275 = vector.extract_strided_slice %265 {offsets = [0, 32], sizes = [8, 32], strides = [1, 1]} : vector<8x96xf32> to vector<8x32xf32>
    %276 = arith.addf %274, %275 : vector<8x32xf32>
    %277 = arith.negf %276 : vector<8x32xf32>
    %278 = math.exp %277 : vector<8x32xf32>
    %cst_85 = arith.constant 1.000000e+00 : f32
    %279 = vector.broadcast %cst_85 : f32 to vector<8x32xf32>
    %280 = arith.addf %279, %278 : vector<8x32xf32>
    %281 = arith.divf %279, %280 : vector<8x32xf32>
    %282 = vector.extract_strided_slice %263 {offsets = [0, 64], sizes = [8, 32], strides = [1, 1]} : vector<8x96xf32> to vector<8x32xf32>
    %283 = vector.extract_strided_slice %265 {offsets = [0, 64], sizes = [8, 32], strides = [1, 1]} : vector<8x96xf32> to vector<8x32xf32>
    %284 = arith.mulf %273, %283 : vector<8x32xf32>
    %285 = arith.addf %282, %284 : vector<8x32xf32>
    %286 = math.tanh %285 : vector<8x32xf32>
    %cst_86 = arith.constant 1.000000e+00 : f32
    %287 = vector.broadcast %cst_86 : f32 to vector<8x32xf32>
    %288 = arith.subf %287, %281 : vector<8x32xf32>
    %289 = arith.mulf %288, %286 : vector<8x32xf32>
    %290 = arith.mulf %281, %231 : vector<8x32xf32>
    %291 = arith.addf %289, %290 : vector<8x32xf32>
    %c24_87 = arith.constant 24 : index
    %c0_88 = arith.constant 0 : index
    %292 = vector.load %arg19[%c24_87, %c0_88] : memref<64x96xf32, #tpu.memory_space<vmem>>, vector<8x96xf32>
    %cst_89 = arith.constant dense<0.000000e+00> : vector<8x96xf32>
    %293 = tpu.matmul %260, %14, %cst_89 {dimension_numbers = #tpu.dot_dimension_numbers<[1], [0], [0], [1], [0, 0, 1, 1], [], []>} : vector<8x32xf32>, vector<32x96xf32>, vector<8x96xf32> -> vector<8x96xf32>
    %294 = arith.addf %293, %20 : vector<8x96xf32>
    %295 = vector.extract_strided_slice %292 {offsets = [0, 0], sizes = [8, 32], strides = [1, 1]} : vector<8x96xf32> to vector<8x32xf32>
    %296 = vector.extract_strided_slice %294 {offsets = [0, 0], sizes = [8, 32], strides = [1, 1]} : vector<8x96xf32> to vector<8x32xf32>
    %297 = arith.addf %295, %296 : vector<8x32xf32>
    %298 = arith.negf %297 : vector<8x32xf32>
    %299 = math.exp %298 : vector<8x32xf32>
    %cst_90 = arith.constant 1.000000e+00 : f32
    %300 = vector.broadcast %cst_90 : f32 to vector<8x32xf32>
    %301 = arith.addf %300, %299 : vector<8x32xf32>
    %302 = arith.divf %300, %301 : vector<8x32xf32>
    %303 = vector.extract_strided_slice %292 {offsets = [0, 32], sizes = [8, 32], strides = [1, 1]} : vector<8x96xf32> to vector<8x32xf32>
    %304 = vector.extract_strided_slice %294 {offsets = [0, 32], sizes = [8, 32], strides = [1, 1]} : vector<8x96xf32> to vector<8x32xf32>
    %305 = arith.addf %303, %304 : vector<8x32xf32>
    %306 = arith.negf %305 : vector<8x32xf32>
    %307 = math.exp %306 : vector<8x32xf32>
    %cst_91 = arith.constant 1.000000e+00 : f32
    %308 = vector.broadcast %cst_91 : f32 to vector<8x32xf32>
    %309 = arith.addf %308, %307 : vector<8x32xf32>
    %310 = arith.divf %308, %309 : vector<8x32xf32>
    %311 = vector.extract_strided_slice %292 {offsets = [0, 64], sizes = [8, 32], strides = [1, 1]} : vector<8x96xf32> to vector<8x32xf32>
    %312 = vector.extract_strided_slice %294 {offsets = [0, 64], sizes = [8, 32], strides = [1, 1]} : vector<8x96xf32> to vector<8x32xf32>
    %313 = arith.mulf %302, %312 : vector<8x32xf32>
    %314 = arith.addf %311, %313 : vector<8x32xf32>
    %315 = math.tanh %314 : vector<8x32xf32>
    %cst_92 = arith.constant 1.000000e+00 : f32
    %316 = vector.broadcast %cst_92 : f32 to vector<8x32xf32>
    %317 = arith.subf %316, %310 : vector<8x32xf32>
    %318 = arith.mulf %317, %315 : vector<8x32xf32>
    %319 = arith.mulf %310, %260 : vector<8x32xf32>
    %320 = arith.addf %318, %319 : vector<8x32xf32>
    %c32_93 = arith.constant 32 : index
    %c0_94 = arith.constant 0 : index
    %321 = vector.load %arg20[%c32_93, %c0_94] : memref<64x32xf32, #tpu.memory_space<vmem>>, vector<8x32xf32>
    tpu.vector_store %arg20[%c32_93, %c0_94], %291 {strides = array<i32>} : memref<64x32xf32, #tpu.memory_space<vmem>>, vector<8x32xf32>,
    %c24_95 = arith.constant 24 : index
    %c0_96 = arith.constant 0 : index
    %322 = vector.load %arg21[%c24_95, %c0_96] : memref<64x32xf32, #tpu.memory_space<vmem>>, vector<8x32xf32>
    tpu.vector_store %arg21[%c24_95, %c0_96], %320 {strides = array<i32>} : memref<64x32xf32, #tpu.memory_space<vmem>>, vector<8x32xf32>,
    %c40_97 = arith.constant 40 : index
    %c0_98 = arith.constant 0 : index
    %323 = vector.load %arg18[%c40_97, %c0_98] : memref<64x96xf32, #tpu.memory_space<vmem>>, vector<8x96xf32>
    %cst_99 = arith.constant dense<0.000000e+00> : vector<8x96xf32>
    %324 = tpu.matmul %291, %13, %cst_99 {dimension_numbers = #tpu.dot_dimension_numbers<[1], [0], [0], [1], [0, 0, 1, 1], [], []>} : vector<8x32xf32>, vector<32x96xf32>, vector<8x96xf32> -> vector<8x96xf32>
    %325 = arith.addf %324, %17 : vector<8x96xf32>
    %326 = vector.extract_strided_slice %323 {offsets = [0, 0], sizes = [8, 32], strides = [1, 1]} : vector<8x96xf32> to vector<8x32xf32>
    %327 = vector.extract_strided_slice %325 {offsets = [0, 0], sizes = [8, 32], strides = [1, 1]} : vector<8x96xf32> to vector<8x32xf32>
    %328 = arith.addf %326, %327 : vector<8x32xf32>
    %329 = arith.negf %328 : vector<8x32xf32>
    %330 = math.exp %329 : vector<8x32xf32>
    %cst_100 = arith.constant 1.000000e+00 : f32
    %331 = vector.broadcast %cst_100 : f32 to vector<8x32xf32>
    %332 = arith.addf %331, %330 : vector<8x32xf32>
    %333 = arith.divf %331, %332 : vector<8x32xf32>
    %334 = vector.extract_strided_slice %323 {offsets = [0, 32], sizes = [8, 32], strides = [1, 1]} : vector<8x96xf32> to vector<8x32xf32>
    %335 = vector.extract_strided_slice %325 {offsets = [0, 32], sizes = [8, 32], strides = [1, 1]} : vector<8x96xf32> to vector<8x32xf32>
    %336 = arith.addf %334, %335 : vector<8x32xf32>
    %337 = arith.negf %336 : vector<8x32xf32>
    %338 = math.exp %337 : vector<8x32xf32>
    %cst_101 = arith.constant 1.000000e+00 : f32
    %339 = vector.broadcast %cst_101 : f32 to vector<8x32xf32>
    %340 = arith.addf %339, %338 : vector<8x32xf32>
    %341 = arith.divf %339, %340 : vector<8x32xf32>
    %342 = vector.extract_strided_slice %323 {offsets = [0, 64], sizes = [8, 32], strides = [1, 1]} : vector<8x96xf32> to vector<8x32xf32>
    %343 = vector.extract_strided_slice %325 {offsets = [0, 64], sizes = [8, 32], strides = [1, 1]} : vector<8x96xf32> to vector<8x32xf32>
    %344 = arith.mulf %333, %343 : vector<8x32xf32>
    %345 = arith.addf %342, %344 : vector<8x32xf32>
    %346 = math.tanh %345 : vector<8x32xf32>
    %cst_102 = arith.constant 1.000000e+00 : f32
    %347 = vector.broadcast %cst_102 : f32 to vector<8x32xf32>
    %348 = arith.subf %347, %341 : vector<8x32xf32>
    %349 = arith.mulf %348, %346 : vector<8x32xf32>
    %350 = arith.mulf %341, %291 : vector<8x32xf32>
    %351 = arith.addf %349, %350 : vector<8x32xf32>
    %c16_103 = arith.constant 16 : index
    %c0_104 = arith.constant 0 : index
    %352 = vector.load %arg19[%c16_103, %c0_104] : memref<64x96xf32, #tpu.memory_space<vmem>>, vector<8x96xf32>
    %cst_105 = arith.constant dense<0.000000e+00> : vector<8x96xf32>
    %353 = tpu.matmul %320, %14, %cst_105 {dimension_numbers = #tpu.dot_dimension_numbers<[1], [0], [0], [1], [0, 0, 1, 1], [], []>} : vector<8x32xf32>, vector<32x96xf32>, vector<8x96xf32> -> vector<8x96xf32>
    %354 = arith.addf %353, %20 : vector<8x96xf32>
    %355 = vector.extract_strided_slice %352 {offsets = [0, 0], sizes = [8, 32], strides = [1, 1]} : vector<8x96xf32> to vector<8x32xf32>
    %356 = vector.extract_strided_slice %354 {offsets = [0, 0], sizes = [8, 32], strides = [1, 1]} : vector<8x96xf32> to vector<8x32xf32>
    %357 = arith.addf %355, %356 : vector<8x32xf32>
    %358 = arith.negf %357 : vector<8x32xf32>
    %359 = math.exp %358 : vector<8x32xf32>
    %cst_106 = arith.constant 1.000000e+00 : f32
    %360 = vector.broadcast %cst_106 : f32 to vector<8x32xf32>
    %361 = arith.addf %360, %359 : vector<8x32xf32>
    %362 = arith.divf %360, %361 : vector<8x32xf32>
    %363 = vector.extract_strided_slice %352 {offsets = [0, 32], sizes = [8, 32], strides = [1, 1]} : vector<8x96xf32> to vector<8x32xf32>
    %364 = vector.extract_strided_slice %354 {offsets = [0, 32], sizes = [8, 32], strides = [1, 1]} : vector<8x96xf32> to vector<8x32xf32>
    %365 = arith.addf %363, %364 : vector<8x32xf32>
    %366 = arith.negf %365 : vector<8x32xf32>
    %367 = math.exp %366 : vector<8x32xf32>
    %cst_107 = arith.constant 1.000000e+00 : f32
    %368 = vector.broadcast %cst_107 : f32 to vector<8x32xf32>
    %369 = arith.addf %368, %367 : vector<8x32xf32>
    %370 = arith.divf %368, %369 : vector<8x32xf32>
    %371 = vector.extract_strided_slice %352 {offsets = [0, 64], sizes = [8, 32], strides = [1, 1]} : vector<8x96xf32> to vector<8x32xf32>
    %372 = vector.extract_strided_slice %354 {offsets = [0, 64], sizes = [8, 32], strides = [1, 1]} : vector<8x96xf32> to vector<8x32xf32>
    %373 = arith.mulf %362, %372 : vector<8x32xf32>
    %374 = arith.addf %371, %373 : vector<8x32xf32>
    %375 = math.tanh %374 : vector<8x32xf32>
    %cst_108 = arith.constant 1.000000e+00 : f32
    %376 = vector.broadcast %cst_108 : f32 to vector<8x32xf32>
    %377 = arith.subf %376, %370 : vector<8x32xf32>
    %378 = arith.mulf %377, %375 : vector<8x32xf32>
    %379 = arith.mulf %370, %320 : vector<8x32xf32>
    %380 = arith.addf %378, %379 : vector<8x32xf32>
    %c40_109 = arith.constant 40 : index
    %c0_110 = arith.constant 0 : index
    %381 = vector.load %arg20[%c40_109, %c0_110] : memref<64x32xf32, #tpu.memory_space<vmem>>, vector<8x32xf32>
    tpu.vector_store %arg20[%c40_109, %c0_110], %351 {strides = array<i32>} : memref<64x32xf32, #tpu.memory_space<vmem>>, vector<8x32xf32>,
    %c16_111 = arith.constant 16 : index
    %c0_112 = arith.constant 0 : index
    %382 = vector.load %arg21[%c16_111, %c0_112] : memref<64x32xf32, #tpu.memory_space<vmem>>, vector<8x32xf32>
    tpu.vector_store %arg21[%c16_111, %c0_112], %380 {strides = array<i32>} : memref<64x32xf32, #tpu.memory_space<vmem>>, vector<8x32xf32>,
    %c48_113 = arith.constant 48 : index
    %c0_114 = arith.constant 0 : index
    %383 = vector.load %arg18[%c48_113, %c0_114] : memref<64x96xf32, #tpu.memory_space<vmem>>, vector<8x96xf32>
    %cst_115 = arith.constant dense<0.000000e+00> : vector<8x96xf32>
    %384 = tpu.matmul %351, %13, %cst_115 {dimension_numbers = #tpu.dot_dimension_numbers<[1], [0], [0], [1], [0, 0, 1, 1], [], []>} : vector<8x32xf32>, vector<32x96xf32>, vector<8x96xf32> -> vector<8x96xf32>
    %385 = arith.addf %384, %17 : vector<8x96xf32>
    %386 = vector.extract_strided_slice %383 {offsets = [0, 0], sizes = [8, 32], strides = [1, 1]} : vector<8x96xf32> to vector<8x32xf32>
    %387 = vector.extract_strided_slice %385 {offsets = [0, 0], sizes = [8, 32], strides = [1, 1]} : vector<8x96xf32> to vector<8x32xf32>
    %388 = arith.addf %386, %387 : vector<8x32xf32>
    %389 = arith.negf %388 : vector<8x32xf32>
    %390 = math.exp %389 : vector<8x32xf32>
    %cst_116 = arith.constant 1.000000e+00 : f32
    %391 = vector.broadcast %cst_116 : f32 to vector<8x32xf32>
    %392 = arith.addf %391, %390 : vector<8x32xf32>
    %393 = arith.divf %391, %392 : vector<8x32xf32>
    %394 = vector.extract_strided_slice %383 {offsets = [0, 32], sizes = [8, 32], strides = [1, 1]} : vector<8x96xf32> to vector<8x32xf32>
    %395 = vector.extract_strided_slice %385 {offsets = [0, 32], sizes = [8, 32], strides = [1, 1]} : vector<8x96xf32> to vector<8x32xf32>
    %396 = arith.addf %394, %395 : vector<8x32xf32>
    %397 = arith.negf %396 : vector<8x32xf32>
    %398 = math.exp %397 : vector<8x32xf32>
    %cst_117 = arith.constant 1.000000e+00 : f32
    %399 = vector.broadcast %cst_117 : f32 to vector<8x32xf32>
    %400 = arith.addf %399, %398 : vector<8x32xf32>
    %401 = arith.divf %399, %400 : vector<8x32xf32>
    %402 = vector.extract_strided_slice %383 {offsets = [0, 64], sizes = [8, 32], strides = [1, 1]} : vector<8x96xf32> to vector<8x32xf32>
    %403 = vector.extract_strided_slice %385 {offsets = [0, 64], sizes = [8, 32], strides = [1, 1]} : vector<8x96xf32> to vector<8x32xf32>
    %404 = arith.mulf %393, %403 : vector<8x32xf32>
    %405 = arith.addf %402, %404 : vector<8x32xf32>
    %406 = math.tanh %405 : vector<8x32xf32>
    %cst_118 = arith.constant 1.000000e+00 : f32
    %407 = vector.broadcast %cst_118 : f32 to vector<8x32xf32>
    %408 = arith.subf %407, %401 : vector<8x32xf32>
    %409 = arith.mulf %408, %406 : vector<8x32xf32>
    %410 = arith.mulf %401, %351 : vector<8x32xf32>
    %411 = arith.addf %409, %410 : vector<8x32xf32>
    %c8_119 = arith.constant 8 : index
    %c0_120 = arith.constant 0 : index
    %412 = vector.load %arg19[%c8_119, %c0_120] : memref<64x96xf32, #tpu.memory_space<vmem>>, vector<8x96xf32>
    %cst_121 = arith.constant dense<0.000000e+00> : vector<8x96xf32>
    %413 = tpu.matmul %380, %14, %cst_121 {dimension_numbers = #tpu.dot_dimension_numbers<[1], [0], [0], [1], [0, 0, 1, 1], [], []>} : vector<8x32xf32>, vector<32x96xf32>, vector<8x96xf32> -> vector<8x96xf32>
    %414 = arith.addf %413, %20 : vector<8x96xf32>
    %415 = vector.extract_strided_slice %412 {offsets = [0, 0], sizes = [8, 32], strides = [1, 1]} : vector<8x96xf32> to vector<8x32xf32>
    %416 = vector.extract_strided_slice %414 {offsets = [0, 0], sizes = [8, 32], strides = [1, 1]} : vector<8x96xf32> to vector<8x32xf32>
    %417 = arith.addf %415, %416 : vector<8x32xf32>
    %418 = arith.negf %417 : vector<8x32xf32>
    %419 = math.exp %418 : vector<8x32xf32>
    %cst_122 = arith.constant 1.000000e+00 : f32
    %420 = vector.broadcast %cst_122 : f32 to vector<8x32xf32>
    %421 = arith.addf %420, %419 : vector<8x32xf32>
    %422 = arith.divf %420, %421 : vector<8x32xf32>
    %423 = vector.extract_strided_slice %412 {offsets = [0, 32], sizes = [8, 32], strides = [1, 1]} : vector<8x96xf32> to vector<8x32xf32>
    %424 = vector.extract_strided_slice %414 {offsets = [0, 32], sizes = [8, 32], strides = [1, 1]} : vector<8x96xf32> to vector<8x32xf32>
    %425 = arith.addf %423, %424 : vector<8x32xf32>
    %426 = arith.negf %425 : vector<8x32xf32>
    %427 = math.exp %426 : vector<8x32xf32>
    %cst_123 = arith.constant 1.000000e+00 : f32
    %428 = vector.broadcast %cst_123 : f32 to vector<8x32xf32>
    %429 = arith.addf %428, %427 : vector<8x32xf32>
    %430 = arith.divf %428, %429 : vector<8x32xf32>
    %431 = vector.extract_strided_slice %412 {offsets = [0, 64], sizes = [8, 32], strides = [1, 1]} : vector<8x96xf32> to vector<8x32xf32>
    %432 = vector.extract_strided_slice %414 {offsets = [0, 64], sizes = [8, 32], strides = [1, 1]} : vector<8x96xf32> to vector<8x32xf32>
    %433 = arith.mulf %422, %432 : vector<8x32xf32>
    %434 = arith.addf %431, %433 : vector<8x32xf32>
    %435 = math.tanh %434 : vector<8x32xf32>
    %cst_124 = arith.constant 1.000000e+00 : f32
    %436 = vector.broadcast %cst_124 : f32 to vector<8x32xf32>
    %437 = arith.subf %436, %430 : vector<8x32xf32>
    %438 = arith.mulf %437, %435 : vector<8x32xf32>
    %439 = arith.mulf %430, %380 : vector<8x32xf32>
    %440 = arith.addf %438, %439 : vector<8x32xf32>
    %c48_125 = arith.constant 48 : index
    %c0_126 = arith.constant 0 : index
    %441 = vector.load %arg20[%c48_125, %c0_126] : memref<64x32xf32, #tpu.memory_space<vmem>>, vector<8x32xf32>
    tpu.vector_store %arg20[%c48_125, %c0_126], %411 {strides = array<i32>} : memref<64x32xf32, #tpu.memory_space<vmem>>, vector<8x32xf32>,
    %c8_127 = arith.constant 8 : index
    %c0_128 = arith.constant 0 : index
    %442 = vector.load %arg21[%c8_127, %c0_128] : memref<64x32xf32, #tpu.memory_space<vmem>>, vector<8x32xf32>
    tpu.vector_store %arg21[%c8_127, %c0_128], %440 {strides = array<i32>} : memref<64x32xf32, #tpu.memory_space<vmem>>, vector<8x32xf32>,
    %c56_129 = arith.constant 56 : index
    %c0_130 = arith.constant 0 : index
    %443 = vector.load %arg18[%c56_129, %c0_130] : memref<64x96xf32, #tpu.memory_space<vmem>>, vector<8x96xf32>
    %cst_131 = arith.constant dense<0.000000e+00> : vector<8x96xf32>
    %444 = tpu.matmul %411, %13, %cst_131 {dimension_numbers = #tpu.dot_dimension_numbers<[1], [0], [0], [1], [0, 0, 1, 1], [], []>} : vector<8x32xf32>, vector<32x96xf32>, vector<8x96xf32> -> vector<8x96xf32>
    %445 = arith.addf %444, %17 : vector<8x96xf32>
    %446 = vector.extract_strided_slice %443 {offsets = [0, 0], sizes = [8, 32], strides = [1, 1]} : vector<8x96xf32> to vector<8x32xf32>
    %447 = vector.extract_strided_slice %445 {offsets = [0, 0], sizes = [8, 32], strides = [1, 1]} : vector<8x96xf32> to vector<8x32xf32>
    %448 = arith.addf %446, %447 : vector<8x32xf32>
    %449 = arith.negf %448 : vector<8x32xf32>
    %450 = math.exp %449 : vector<8x32xf32>
    %cst_132 = arith.constant 1.000000e+00 : f32
    %451 = vector.broadcast %cst_132 : f32 to vector<8x32xf32>
    %452 = arith.addf %451, %450 : vector<8x32xf32>
    %453 = arith.divf %451, %452 : vector<8x32xf32>
    %454 = vector.extract_strided_slice %443 {offsets = [0, 32], sizes = [8, 32], strides = [1, 1]} : vector<8x96xf32> to vector<8x32xf32>
    %455 = vector.extract_strided_slice %445 {offsets = [0, 32], sizes = [8, 32], strides = [1, 1]} : vector<8x96xf32> to vector<8x32xf32>
    %456 = arith.addf %454, %455 : vector<8x32xf32>
    %457 = arith.negf %456 : vector<8x32xf32>
    %458 = math.exp %457 : vector<8x32xf32>
    %cst_133 = arith.constant 1.000000e+00 : f32
    %459 = vector.broadcast %cst_133 : f32 to vector<8x32xf32>
    %460 = arith.addf %459, %458 : vector<8x32xf32>
    %461 = arith.divf %459, %460 : vector<8x32xf32>
    %462 = vector.extract_strided_slice %443 {offsets = [0, 64], sizes = [8, 32], strides = [1, 1]} : vector<8x96xf32> to vector<8x32xf32>
    %463 = vector.extract_strided_slice %445 {offsets = [0, 64], sizes = [8, 32], strides = [1, 1]} : vector<8x96xf32> to vector<8x32xf32>
    %464 = arith.mulf %453, %463 : vector<8x32xf32>
    %465 = arith.addf %462, %464 : vector<8x32xf32>
    %466 = math.tanh %465 : vector<8x32xf32>
    %cst_134 = arith.constant 1.000000e+00 : f32
    %467 = vector.broadcast %cst_134 : f32 to vector<8x32xf32>
    %468 = arith.subf %467, %461 : vector<8x32xf32>
    %469 = arith.mulf %468, %466 : vector<8x32xf32>
    %470 = arith.mulf %461, %411 : vector<8x32xf32>
    %471 = arith.addf %469, %470 : vector<8x32xf32>
    %c0_135 = arith.constant 0 : index
    %c0_136 = arith.constant 0 : index
    %472 = vector.load %arg19[%c0_135, %c0_136] : memref<64x96xf32, #tpu.memory_space<vmem>>, vector<8x96xf32>
    %cst_137 = arith.constant dense<0.000000e+00> : vector<8x96xf32>
    %473 = tpu.matmul %440, %14, %cst_137 {dimension_numbers = #tpu.dot_dimension_numbers<[1], [0], [0], [1], [0, 0, 1, 1], [], []>} : vector<8x32xf32>, vector<32x96xf32>, vector<8x96xf32> -> vector<8x96xf32>
    %474 = arith.addf %473, %20 : vector<8x96xf32>
    %475 = vector.extract_strided_slice %472 {offsets = [0, 0], sizes = [8, 32], strides = [1, 1]} : vector<8x96xf32> to vector<8x32xf32>
    %476 = vector.extract_strided_slice %474 {offsets = [0, 0], sizes = [8, 32], strides = [1, 1]} : vector<8x96xf32> to vector<8x32xf32>
    %477 = arith.addf %475, %476 : vector<8x32xf32>
    %478 = arith.negf %477 : vector<8x32xf32>
    %479 = math.exp %478 : vector<8x32xf32>
    %cst_138 = arith.constant 1.000000e+00 : f32
    %480 = vector.broadcast %cst_138 : f32 to vector<8x32xf32>
    %481 = arith.addf %480, %479 : vector<8x32xf32>
    %482 = arith.divf %480, %481 : vector<8x32xf32>
    %483 = vector.extract_strided_slice %472 {offsets = [0, 32], sizes = [8, 32], strides = [1, 1]} : vector<8x96xf32> to vector<8x32xf32>
    %484 = vector.extract_strided_slice %474 {offsets = [0, 32], sizes = [8, 32], strides = [1, 1]} : vector<8x96xf32> to vector<8x32xf32>
    %485 = arith.addf %483, %484 : vector<8x32xf32>
    %486 = arith.negf %485 : vector<8x32xf32>
    %487 = math.exp %486 : vector<8x32xf32>
    %cst_139 = arith.constant 1.000000e+00 : f32
    %488 = vector.broadcast %cst_139 : f32 to vector<8x32xf32>
    %489 = arith.addf %488, %487 : vector<8x32xf32>
    %490 = arith.divf %488, %489 : vector<8x32xf32>
    %491 = vector.extract_strided_slice %472 {offsets = [0, 64], sizes = [8, 32], strides = [1, 1]} : vector<8x96xf32> to vector<8x32xf32>
    %492 = vector.extract_strided_slice %474 {offsets = [0, 64], sizes = [8, 32], strides = [1, 1]} : vector<8x96xf32> to vector<8x32xf32>
    %493 = arith.mulf %482, %492 : vector<8x32xf32>
    %494 = arith.addf %491, %493 : vector<8x32xf32>
    %495 = math.tanh %494 : vector<8x32xf32>
    %cst_140 = arith.constant 1.000000e+00 : f32
    %496 = vector.broadcast %cst_140 : f32 to vector<8x32xf32>
    %497 = arith.subf %496, %490 : vector<8x32xf32>
    %498 = arith.mulf %497, %495 : vector<8x32xf32>
    %499 = arith.mulf %490, %440 : vector<8x32xf32>
    %500 = arith.addf %498, %499 : vector<8x32xf32>
    %c56_141 = arith.constant 56 : index
    %c0_142 = arith.constant 0 : index
    %501 = vector.load %arg20[%c56_141, %c0_142] : memref<64x32xf32, #tpu.memory_space<vmem>>, vector<8x32xf32>
    tpu.vector_store %arg20[%c56_141, %c0_142], %471 {strides = array<i32>} : memref<64x32xf32, #tpu.memory_space<vmem>>, vector<8x32xf32>,
    %c0_143 = arith.constant 0 : index
    %c0_144 = arith.constant 0 : index
    %502 = vector.load %arg21[%c0_143, %c0_144] : memref<64x32xf32, #tpu.memory_space<vmem>>, vector<8x32xf32>
    tpu.vector_store %arg21[%c0_143, %c0_144], %500 {strides = array<i32>} : memref<64x32xf32, #tpu.memory_space<vmem>>, vector<8x32xf32>,
    %c0_145 = arith.constant 0 : index
    %c0_146 = arith.constant 0 : index
    %503 = vector.load %arg20[%c0_145, %c0_146] : memref<64x32xf32, #tpu.memory_space<vmem>>, vector<64x32xf32>
    %c0_147 = arith.constant 0 : index
    %c0_148 = arith.constant 0 : index
    %504 = vector.load %arg21[%c0_147, %c0_148] : memref<64x32xf32, #tpu.memory_space<vmem>>, vector<64x32xf32>
    %c0_149 = arith.constant 0 : index
    %c0_150 = arith.constant 0 : index
    %505 = vector.load %arg9[%c0_149, %c0_150] : memref<64x96xf32, #tpu.memory_space<vmem>>, vector<32x96xf32>
    %cst_151 = arith.constant dense<0.000000e+00> : vector<64x96xf32>
    %506 = tpu.matmul %503, %505, %cst_151 {dimension_numbers = #tpu.dot_dimension_numbers<[1], [0], [0], [1], [0, 0, 1, 1], [], []>} : vector<64x32xf32>, vector<32x96xf32>, vector<64x96xf32> -> vector<64x96xf32>
    %c32_152 = arith.constant 32 : index
    %c0_153 = arith.constant 0 : index
    %507 = vector.load %arg9[%c32_152, %c0_153] : memref<64x96xf32, #tpu.memory_space<vmem>>, vector<32x96xf32>
    %cst_154 = arith.constant dense<0.000000e+00> : vector<64x96xf32>
    %508 = tpu.matmul %504, %507, %cst_154 {dimension_numbers = #tpu.dot_dimension_numbers<[1], [0], [0], [1], [0, 0, 1, 1], [], []>} : vector<64x32xf32>, vector<32x96xf32>, vector<64x96xf32> -> vector<64x96xf32>
    %509 = arith.addf %506, %508 : vector<64x96xf32>
    %c0_155 = arith.constant 0 : index
    %c0_156 = arith.constant 0 : index
    %510 = vector.load %arg11[%c0_155, %c0_156] : memref<1x96xf32, #tpu.memory_space<vmem>>, vector<1x96xf32>
    %511 = vector.broadcast %510 : vector<1x96xf32> to vector<64x96xf32>
    %512 = arith.addf %509, %511 : vector<64x96xf32>
    %c0_157 = arith.constant 0 : index
    %c0_158 = arith.constant 0 : index
    %513 = vector.load %arg22[%c0_157, %c0_158] : memref<64x96xf32, #tpu.memory_space<vmem>>, vector<64x96xf32>
    tpu.vector_store %arg22[%c0_157, %c0_158], %512 {strides = array<i32>} : memref<64x96xf32, #tpu.memory_space<vmem>>, vector<64x96xf32>,
    %c0_159 = arith.constant 0 : index
    %c0_160 = arith.constant 0 : index
    %514 = vector.load %arg13[%c0_159, %c0_160] : memref<64x96xf32, #tpu.memory_space<vmem>>, vector<32x96xf32>
    %cst_161 = arith.constant dense<0.000000e+00> : vector<64x96xf32>
    %515 = tpu.matmul %503, %514, %cst_161 {dimension_numbers = #tpu.dot_dimension_numbers<[1], [0], [0], [1], [0, 0, 1, 1], [], []>} : vector<64x32xf32>, vector<32x96xf32>, vector<64x96xf32> -> vector<64x96xf32>
    %c32_162 = arith.constant 32 : index
    %c0_163 = arith.constant 0 : index
    %516 = vector.load %arg13[%c32_162, %c0_163] : memref<64x96xf32, #tpu.memory_space<vmem>>, vector<32x96xf32>
    %cst_164 = arith.constant dense<0.000000e+00> : vector<64x96xf32>
    %517 = tpu.matmul %504, %516, %cst_164 {dimension_numbers = #tpu.dot_dimension_numbers<[1], [0], [0], [1], [0, 0, 1, 1], [], []>} : vector<64x32xf32>, vector<32x96xf32>, vector<64x96xf32> -> vector<64x96xf32>
    %518 = arith.addf %515, %517 : vector<64x96xf32>
    %c0_165 = arith.constant 0 : index
    %c0_166 = arith.constant 0 : index
    %519 = vector.load %arg15[%c0_165, %c0_166] : memref<1x96xf32, #tpu.memory_space<vmem>>, vector<1x96xf32>
    %520 = vector.broadcast %519 : vector<1x96xf32> to vector<64x96xf32>
    %521 = arith.addf %518, %520 : vector<64x96xf32>
    %c0_167 = arith.constant 0 : index
    %c0_168 = arith.constant 0 : index
    %522 = vector.load %arg23[%c0_167, %c0_168] : memref<64x96xf32, #tpu.memory_space<vmem>>, vector<64x96xf32>
    tpu.vector_store %arg23[%c0_167, %c0_168], %521 {strides = array<i32>} : memref<64x96xf32, #tpu.memory_space<vmem>>, vector<64x96xf32>,
    %c0_169 = arith.constant 0 : index
    %c0_170 = arith.constant 0 : index
    %523 = vector.load %arg10[%c0_169, %c0_170] : memref<32x96xf32, #tpu.memory_space<vmem>>, vector<32x96xf32>
    %c0_171 = arith.constant 0 : index
    %c0_172 = arith.constant 0 : index
    %524 = vector.load %arg14[%c0_171, %c0_172] : memref<32x96xf32, #tpu.memory_space<vmem>>, vector<32x96xf32>
    %c0_173 = arith.constant 0 : index
    %c0_174 = arith.constant 0 : index
    %525 = vector.load %arg12[%c0_173, %c0_174] : memref<1x96xf32, #tpu.memory_space<vmem>>, vector<1x96xf32>
    %526 = vector.shape_cast %525 : vector<1x96xf32> to vector<1x96xf32>
    %527 = vector.broadcast %526 : vector<1x96xf32> to vector<8x96xf32>
    %c0_175 = arith.constant 0 : index
    %c0_176 = arith.constant 0 : index
    %528 = vector.load %arg16[%c0_175, %c0_176] : memref<1x96xf32, #tpu.memory_space<vmem>>, vector<1x96xf32>
    %529 = vector.shape_cast %528 : vector<1x96xf32> to vector<1x96xf32>
    %530 = vector.broadcast %529 : vector<1x96xf32> to vector<8x96xf32>
    %cst_177 = arith.constant 0.000000e+00 : f32
    %531 = vector.broadcast %cst_177 : f32 to vector<8x32xf32>
    %cst_178 = arith.constant 0.000000e+00 : f32
    %532 = vector.broadcast %cst_178 : f32 to vector<8x32xf32>
    %c0_179 = arith.constant 0 : index
    %c0_180 = arith.constant 0 : index
    %533 = vector.load %arg22[%c0_179, %c0_180] : memref<64x96xf32, #tpu.memory_space<vmem>>, vector<8x96xf32>
    %cst_181 = arith.constant dense<0.000000e+00> : vector<8x96xf32>
    %534 = tpu.matmul %531, %523, %cst_181 {dimension_numbers = #tpu.dot_dimension_numbers<[1], [0], [0], [1], [0, 0, 1, 1], [], []>} : vector<8x32xf32>, vector<32x96xf32>, vector<8x96xf32> -> vector<8x96xf32>
    %535 = arith.addf %534, %527 : vector<8x96xf32>
    %536 = vector.extract_strided_slice %533 {offsets = [0, 0], sizes = [8, 32], strides = [1, 1]} : vector<8x96xf32> to vector<8x32xf32>
    %537 = vector.extract_strided_slice %535 {offsets = [0, 0], sizes = [8, 32], strides = [1, 1]} : vector<8x96xf32> to vector<8x32xf32>
    %538 = arith.addf %536, %537 : vector<8x32xf32>
    %539 = arith.negf %538 : vector<8x32xf32>
    %540 = math.exp %539 : vector<8x32xf32>
    %cst_182 = arith.constant 1.000000e+00 : f32
    %541 = vector.broadcast %cst_182 : f32 to vector<8x32xf32>
    %542 = arith.addf %541, %540 : vector<8x32xf32>
    %543 = arith.divf %541, %542 : vector<8x32xf32>
    %544 = vector.extract_strided_slice %533 {offsets = [0, 32], sizes = [8, 32], strides = [1, 1]} : vector<8x96xf32> to vector<8x32xf32>
    %545 = vector.extract_strided_slice %535 {offsets = [0, 32], sizes = [8, 32], strides = [1, 1]} : vector<8x96xf32> to vector<8x32xf32>
    %546 = arith.addf %544, %545 : vector<8x32xf32>
    %547 = arith.negf %546 : vector<8x32xf32>
    %548 = math.exp %547 : vector<8x32xf32>
    %cst_183 = arith.constant 1.000000e+00 : f32
    %549 = vector.broadcast %cst_183 : f32 to vector<8x32xf32>
    %550 = arith.addf %549, %548 : vector<8x32xf32>
    %551 = arith.divf %549, %550 : vector<8x32xf32>
    %552 = vector.extract_strided_slice %533 {offsets = [0, 64], sizes = [8, 32], strides = [1, 1]} : vector<8x96xf32> to vector<8x32xf32>
    %553 = vector.extract_strided_slice %535 {offsets = [0, 64], sizes = [8, 32], strides = [1, 1]} : vector<8x96xf32> to vector<8x32xf32>
    %554 = arith.mulf %543, %553 : vector<8x32xf32>
    %555 = arith.addf %552, %554 : vector<8x32xf32>
    %556 = math.tanh %555 : vector<8x32xf32>
    %cst_184 = arith.constant 1.000000e+00 : f32
    %557 = vector.broadcast %cst_184 : f32 to vector<8x32xf32>
    %558 = arith.subf %557, %551 : vector<8x32xf32>
    %559 = arith.mulf %558, %556 : vector<8x32xf32>
    %560 = arith.mulf %551, %531 : vector<8x32xf32>
    %561 = arith.addf %559, %560 : vector<8x32xf32>
    %c56_185 = arith.constant 56 : index
    %c0_186 = arith.constant 0 : index
    %562 = vector.load %arg23[%c56_185, %c0_186] : memref<64x96xf32, #tpu.memory_space<vmem>>, vector<8x96xf32>
    %cst_187 = arith.constant dense<0.000000e+00> : vector<8x96xf32>
    %563 = tpu.matmul %532, %524, %cst_187 {dimension_numbers = #tpu.dot_dimension_numbers<[1], [0], [0], [1], [0, 0, 1, 1], [], []>} : vector<8x32xf32>, vector<32x96xf32>, vector<8x96xf32> -> vector<8x96xf32>
    %564 = arith.addf %563, %530 : vector<8x96xf32>
    %565 = vector.extract_strided_slice %562 {offsets = [0, 0], sizes = [8, 32], strides = [1, 1]} : vector<8x96xf32> to vector<8x32xf32>
    %566 = vector.extract_strided_slice %564 {offsets = [0, 0], sizes = [8, 32], strides = [1, 1]} : vector<8x96xf32> to vector<8x32xf32>
    %567 = arith.addf %565, %566 : vector<8x32xf32>
    %568 = arith.negf %567 : vector<8x32xf32>
    %569 = math.exp %568 : vector<8x32xf32>
    %cst_188 = arith.constant 1.000000e+00 : f32
    %570 = vector.broadcast %cst_188 : f32 to vector<8x32xf32>
    %571 = arith.addf %570, %569 : vector<8x32xf32>
    %572 = arith.divf %570, %571 : vector<8x32xf32>
    %573 = vector.extract_strided_slice %562 {offsets = [0, 32], sizes = [8, 32], strides = [1, 1]} : vector<8x96xf32> to vector<8x32xf32>
    %574 = vector.extract_strided_slice %564 {offsets = [0, 32], sizes = [8, 32], strides = [1, 1]} : vector<8x96xf32> to vector<8x32xf32>
    %575 = arith.addf %573, %574 : vector<8x32xf32>
    %576 = arith.negf %575 : vector<8x32xf32>
    %577 = math.exp %576 : vector<8x32xf32>
    %cst_189 = arith.constant 1.000000e+00 : f32
    %578 = vector.broadcast %cst_189 : f32 to vector<8x32xf32>
    %579 = arith.addf %578, %577 : vector<8x32xf32>
    %580 = arith.divf %578, %579 : vector<8x32xf32>
    %581 = vector.extract_strided_slice %562 {offsets = [0, 64], sizes = [8, 32], strides = [1, 1]} : vector<8x96xf32> to vector<8x32xf32>
    %582 = vector.extract_strided_slice %564 {offsets = [0, 64], sizes = [8, 32], strides = [1, 1]} : vector<8x96xf32> to vector<8x32xf32>
    %583 = arith.mulf %572, %582 : vector<8x32xf32>
    %584 = arith.addf %581, %583 : vector<8x32xf32>
    %585 = math.tanh %584 : vector<8x32xf32>
    %cst_190 = arith.constant 1.000000e+00 : f32
    %586 = vector.broadcast %cst_190 : f32 to vector<8x32xf32>
    %587 = arith.subf %586, %580 : vector<8x32xf32>
    %588 = arith.mulf %587, %585 : vector<8x32xf32>
    %589 = arith.mulf %580, %532 : vector<8x32xf32>
    %590 = arith.addf %588, %589 : vector<8x32xf32>
    %c8_191 = arith.constant 8 : index
    %c0_192 = arith.constant 0 : index
    %591 = vector.load %arg22[%c8_191, %c0_192] : memref<64x96xf32, #tpu.memory_space<vmem>>, vector<8x96xf32>
    %cst_193 = arith.constant dense<0.000000e+00> : vector<8x96xf32>
    %592 = tpu.matmul %561, %523, %cst_193 {dimension_numbers = #tpu.dot_dimension_numbers<[1], [0], [0], [1], [0, 0, 1, 1], [], []>} : vector<8x32xf32>, vector<32x96xf32>, vector<8x96xf32> -> vector<8x96xf32>
    %593 = arith.addf %592, %527 : vector<8x96xf32>
    %594 = vector.extract_strided_slice %591 {offsets = [0, 0], sizes = [8, 32], strides = [1, 1]} : vector<8x96xf32> to vector<8x32xf32>
    %595 = vector.extract_strided_slice %593 {offsets = [0, 0], sizes = [8, 32], strides = [1, 1]} : vector<8x96xf32> to vector<8x32xf32>
    %596 = arith.addf %594, %595 : vector<8x32xf32>
    %597 = arith.negf %596 : vector<8x32xf32>
    %598 = math.exp %597 : vector<8x32xf32>
    %cst_194 = arith.constant 1.000000e+00 : f32
    %599 = vector.broadcast %cst_194 : f32 to vector<8x32xf32>
    %600 = arith.addf %599, %598 : vector<8x32xf32>
    %601 = arith.divf %599, %600 : vector<8x32xf32>
    %602 = vector.extract_strided_slice %591 {offsets = [0, 32], sizes = [8, 32], strides = [1, 1]} : vector<8x96xf32> to vector<8x32xf32>
    %603 = vector.extract_strided_slice %593 {offsets = [0, 32], sizes = [8, 32], strides = [1, 1]} : vector<8x96xf32> to vector<8x32xf32>
    %604 = arith.addf %602, %603 : vector<8x32xf32>
    %605 = arith.negf %604 : vector<8x32xf32>
    %606 = math.exp %605 : vector<8x32xf32>
    %cst_195 = arith.constant 1.000000e+00 : f32
    %607 = vector.broadcast %cst_195 : f32 to vector<8x32xf32>
    %608 = arith.addf %607, %606 : vector<8x32xf32>
    %609 = arith.divf %607, %608 : vector<8x32xf32>
    %610 = vector.extract_strided_slice %591 {offsets = [0, 64], sizes = [8, 32], strides = [1, 1]} : vector<8x96xf32> to vector<8x32xf32>
    %611 = vector.extract_strided_slice %593 {offsets = [0, 64], sizes = [8, 32], strides = [1, 1]} : vector<8x96xf32> to vector<8x32xf32>
    %612 = arith.mulf %601, %611 : vector<8x32xf32>
    %613 = arith.addf %610, %612 : vector<8x32xf32>
    %614 = math.tanh %613 : vector<8x32xf32>
    %cst_196 = arith.constant 1.000000e+00 : f32
    %615 = vector.broadcast %cst_196 : f32 to vector<8x32xf32>
    %616 = arith.subf %615, %609 : vector<8x32xf32>
    %617 = arith.mulf %616, %614 : vector<8x32xf32>
    %618 = arith.mulf %609, %561 : vector<8x32xf32>
    %619 = arith.addf %617, %618 : vector<8x32xf32>
    %c48_197 = arith.constant 48 : index
    %c0_198 = arith.constant 0 : index
    %620 = vector.load %arg23[%c48_197, %c0_198] : memref<64x96xf32, #tpu.memory_space<vmem>>, vector<8x96xf32>
    %cst_199 = arith.constant dense<0.000000e+00> : vector<8x96xf32>
    %621 = tpu.matmul %590, %524, %cst_199 {dimension_numbers = #tpu.dot_dimension_numbers<[1], [0], [0], [1], [0, 0, 1, 1], [], []>} : vector<8x32xf32>, vector<32x96xf32>, vector<8x96xf32> -> vector<8x96xf32>
    %622 = arith.addf %621, %530 : vector<8x96xf32>
    %623 = vector.extract_strided_slice %620 {offsets = [0, 0], sizes = [8, 32], strides = [1, 1]} : vector<8x96xf32> to vector<8x32xf32>
    %624 = vector.extract_strided_slice %622 {offsets = [0, 0], sizes = [8, 32], strides = [1, 1]} : vector<8x96xf32> to vector<8x32xf32>
    %625 = arith.addf %623, %624 : vector<8x32xf32>
    %626 = arith.negf %625 : vector<8x32xf32>
    %627 = math.exp %626 : vector<8x32xf32>
    %cst_200 = arith.constant 1.000000e+00 : f32
    %628 = vector.broadcast %cst_200 : f32 to vector<8x32xf32>
    %629 = arith.addf %628, %627 : vector<8x32xf32>
    %630 = arith.divf %628, %629 : vector<8x32xf32>
    %631 = vector.extract_strided_slice %620 {offsets = [0, 32], sizes = [8, 32], strides = [1, 1]} : vector<8x96xf32> to vector<8x32xf32>
    %632 = vector.extract_strided_slice %622 {offsets = [0, 32], sizes = [8, 32], strides = [1, 1]} : vector<8x96xf32> to vector<8x32xf32>
    %633 = arith.addf %631, %632 : vector<8x32xf32>
    %634 = arith.negf %633 : vector<8x32xf32>
    %635 = math.exp %634 : vector<8x32xf32>
    %cst_201 = arith.constant 1.000000e+00 : f32
    %636 = vector.broadcast %cst_201 : f32 to vector<8x32xf32>
    %637 = arith.addf %636, %635 : vector<8x32xf32>
    %638 = arith.divf %636, %637 : vector<8x32xf32>
    %639 = vector.extract_strided_slice %620 {offsets = [0, 64], sizes = [8, 32], strides = [1, 1]} : vector<8x96xf32> to vector<8x32xf32>
    %640 = vector.extract_strided_slice %622 {offsets = [0, 64], sizes = [8, 32], strides = [1, 1]} : vector<8x96xf32> to vector<8x32xf32>
    %641 = arith.mulf %630, %640 : vector<8x32xf32>
    %642 = arith.addf %639, %641 : vector<8x32xf32>
    %643 = math.tanh %642 : vector<8x32xf32>
    %cst_202 = arith.constant 1.000000e+00 : f32
    %644 = vector.broadcast %cst_202 : f32 to vector<8x32xf32>
    %645 = arith.subf %644, %638 : vector<8x32xf32>
    %646 = arith.mulf %645, %643 : vector<8x32xf32>
    %647 = arith.mulf %638, %590 : vector<8x32xf32>
    %648 = arith.addf %646, %647 : vector<8x32xf32>
    %c16_203 = arith.constant 16 : index
    %c0_204 = arith.constant 0 : index
    %649 = vector.load %arg22[%c16_203, %c0_204] : memref<64x96xf32, #tpu.memory_space<vmem>>, vector<8x96xf32>
    %cst_205 = arith.constant dense<0.000000e+00> : vector<8x96xf32>
    %650 = tpu.matmul %619, %523, %cst_205 {dimension_numbers = #tpu.dot_dimension_numbers<[1], [0], [0], [1], [0, 0, 1, 1], [], []>} : vector<8x32xf32>, vector<32x96xf32>, vector<8x96xf32> -> vector<8x96xf32>
    %651 = arith.addf %650, %527 : vector<8x96xf32>
    %652 = vector.extract_strided_slice %649 {offsets = [0, 0], sizes = [8, 32], strides = [1, 1]} : vector<8x96xf32> to vector<8x32xf32>
    %653 = vector.extract_strided_slice %651 {offsets = [0, 0], sizes = [8, 32], strides = [1, 1]} : vector<8x96xf32> to vector<8x32xf32>
    %654 = arith.addf %652, %653 : vector<8x32xf32>
    %655 = arith.negf %654 : vector<8x32xf32>
    %656 = math.exp %655 : vector<8x32xf32>
    %cst_206 = arith.constant 1.000000e+00 : f32
    %657 = vector.broadcast %cst_206 : f32 to vector<8x32xf32>
    %658 = arith.addf %657, %656 : vector<8x32xf32>
    %659 = arith.divf %657, %658 : vector<8x32xf32>
    %660 = vector.extract_strided_slice %649 {offsets = [0, 32], sizes = [8, 32], strides = [1, 1]} : vector<8x96xf32> to vector<8x32xf32>
    %661 = vector.extract_strided_slice %651 {offsets = [0, 32], sizes = [8, 32], strides = [1, 1]} : vector<8x96xf32> to vector<8x32xf32>
    %662 = arith.addf %660, %661 : vector<8x32xf32>
    %663 = arith.negf %662 : vector<8x32xf32>
    %664 = math.exp %663 : vector<8x32xf32>
    %cst_207 = arith.constant 1.000000e+00 : f32
    %665 = vector.broadcast %cst_207 : f32 to vector<8x32xf32>
    %666 = arith.addf %665, %664 : vector<8x32xf32>
    %667 = arith.divf %665, %666 : vector<8x32xf32>
    %668 = vector.extract_strided_slice %649 {offsets = [0, 64], sizes = [8, 32], strides = [1, 1]} : vector<8x96xf32> to vector<8x32xf32>
    %669 = vector.extract_strided_slice %651 {offsets = [0, 64], sizes = [8, 32], strides = [1, 1]} : vector<8x96xf32> to vector<8x32xf32>
    %670 = arith.mulf %659, %669 : vector<8x32xf32>
    %671 = arith.addf %668, %670 : vector<8x32xf32>
    %672 = math.tanh %671 : vector<8x32xf32>
    %cst_208 = arith.constant 1.000000e+00 : f32
    %673 = vector.broadcast %cst_208 : f32 to vector<8x32xf32>
    %674 = arith.subf %673, %667 : vector<8x32xf32>
    %675 = arith.mulf %674, %672 : vector<8x32xf32>
    %676 = arith.mulf %667, %619 : vector<8x32xf32>
    %677 = arith.addf %675, %676 : vector<8x32xf32>
    %c40_209 = arith.constant 40 : index
    %c0_210 = arith.constant 0 : index
    %678 = vector.load %arg23[%c40_209, %c0_210] : memref<64x96xf32, #tpu.memory_space<vmem>>, vector<8x96xf32>
    %cst_211 = arith.constant dense<0.000000e+00> : vector<8x96xf32>
    %679 = tpu.matmul %648, %524, %cst_211 {dimension_numbers = #tpu.dot_dimension_numbers<[1], [0], [0], [1], [0, 0, 1, 1], [], []>} : vector<8x32xf32>, vector<32x96xf32>, vector<8x96xf32> -> vector<8x96xf32>
    %680 = arith.addf %679, %530 : vector<8x96xf32>
    %681 = vector.extract_strided_slice %678 {offsets = [0, 0], sizes = [8, 32], strides = [1, 1]} : vector<8x96xf32> to vector<8x32xf32>
    %682 = vector.extract_strided_slice %680 {offsets = [0, 0], sizes = [8, 32], strides = [1, 1]} : vector<8x96xf32> to vector<8x32xf32>
    %683 = arith.addf %681, %682 : vector<8x32xf32>
    %684 = arith.negf %683 : vector<8x32xf32>
    %685 = math.exp %684 : vector<8x32xf32>
    %cst_212 = arith.constant 1.000000e+00 : f32
    %686 = vector.broadcast %cst_212 : f32 to vector<8x32xf32>
    %687 = arith.addf %686, %685 : vector<8x32xf32>
    %688 = arith.divf %686, %687 : vector<8x32xf32>
    %689 = vector.extract_strided_slice %678 {offsets = [0, 32], sizes = [8, 32], strides = [1, 1]} : vector<8x96xf32> to vector<8x32xf32>
    %690 = vector.extract_strided_slice %680 {offsets = [0, 32], sizes = [8, 32], strides = [1, 1]} : vector<8x96xf32> to vector<8x32xf32>
    %691 = arith.addf %689, %690 : vector<8x32xf32>
    %692 = arith.negf %691 : vector<8x32xf32>
    %693 = math.exp %692 : vector<8x32xf32>
    %cst_213 = arith.constant 1.000000e+00 : f32
    %694 = vector.broadcast %cst_213 : f32 to vector<8x32xf32>
    %695 = arith.addf %694, %693 : vector<8x32xf32>
    %696 = arith.divf %694, %695 : vector<8x32xf32>
    %697 = vector.extract_strided_slice %678 {offsets = [0, 64], sizes = [8, 32], strides = [1, 1]} : vector<8x96xf32> to vector<8x32xf32>
    %698 = vector.extract_strided_slice %680 {offsets = [0, 64], sizes = [8, 32], strides = [1, 1]} : vector<8x96xf32> to vector<8x32xf32>
    %699 = arith.mulf %688, %698 : vector<8x32xf32>
    %700 = arith.addf %697, %699 : vector<8x32xf32>
    %701 = math.tanh %700 : vector<8x32xf32>
    %cst_214 = arith.constant 1.000000e+00 : f32
    %702 = vector.broadcast %cst_214 : f32 to vector<8x32xf32>
    %703 = arith.subf %702, %696 : vector<8x32xf32>
    %704 = arith.mulf %703, %701 : vector<8x32xf32>
    %705 = arith.mulf %696, %648 : vector<8x32xf32>
    %706 = arith.addf %704, %705 : vector<8x32xf32>
    %c24_215 = arith.constant 24 : index
    %c0_216 = arith.constant 0 : index
    %707 = vector.load %arg22[%c24_215, %c0_216] : memref<64x96xf32, #tpu.memory_space<vmem>>, vector<8x96xf32>
    %cst_217 = arith.constant dense<0.000000e+00> : vector<8x96xf32>
    %708 = tpu.matmul %677, %523, %cst_217 {dimension_numbers = #tpu.dot_dimension_numbers<[1], [0], [0], [1], [0, 0, 1, 1], [], []>} : vector<8x32xf32>, vector<32x96xf32>, vector<8x96xf32> -> vector<8x96xf32>
    %709 = arith.addf %708, %527 : vector<8x96xf32>
    %710 = vector.extract_strided_slice %707 {offsets = [0, 0], sizes = [8, 32], strides = [1, 1]} : vector<8x96xf32> to vector<8x32xf32>
    %711 = vector.extract_strided_slice %709 {offsets = [0, 0], sizes = [8, 32], strides = [1, 1]} : vector<8x96xf32> to vector<8x32xf32>
    %712 = arith.addf %710, %711 : vector<8x32xf32>
    %713 = arith.negf %712 : vector<8x32xf32>
    %714 = math.exp %713 : vector<8x32xf32>
    %cst_218 = arith.constant 1.000000e+00 : f32
    %715 = vector.broadcast %cst_218 : f32 to vector<8x32xf32>
    %716 = arith.addf %715, %714 : vector<8x32xf32>
    %717 = arith.divf %715, %716 : vector<8x32xf32>
    %718 = vector.extract_strided_slice %707 {offsets = [0, 32], sizes = [8, 32], strides = [1, 1]} : vector<8x96xf32> to vector<8x32xf32>
    %719 = vector.extract_strided_slice %709 {offsets = [0, 32], sizes = [8, 32], strides = [1, 1]} : vector<8x96xf32> to vector<8x32xf32>
    %720 = arith.addf %718, %719 : vector<8x32xf32>
    %721 = arith.negf %720 : vector<8x32xf32>
    %722 = math.exp %721 : vector<8x32xf32>
    %cst_219 = arith.constant 1.000000e+00 : f32
    %723 = vector.broadcast %cst_219 : f32 to vector<8x32xf32>
    %724 = arith.addf %723, %722 : vector<8x32xf32>
    %725 = arith.divf %723, %724 : vector<8x32xf32>
    %726 = vector.extract_strided_slice %707 {offsets = [0, 64], sizes = [8, 32], strides = [1, 1]} : vector<8x96xf32> to vector<8x32xf32>
    %727 = vector.extract_strided_slice %709 {offsets = [0, 64], sizes = [8, 32], strides = [1, 1]} : vector<8x96xf32> to vector<8x32xf32>
    %728 = arith.mulf %717, %727 : vector<8x32xf32>
    %729 = arith.addf %726, %728 : vector<8x32xf32>
    %730 = math.tanh %729 : vector<8x32xf32>
    %cst_220 = arith.constant 1.000000e+00 : f32
    %731 = vector.broadcast %cst_220 : f32 to vector<8x32xf32>
    %732 = arith.subf %731, %725 : vector<8x32xf32>
    %733 = arith.mulf %732, %730 : vector<8x32xf32>
    %734 = arith.mulf %725, %677 : vector<8x32xf32>
    %735 = arith.addf %733, %734 : vector<8x32xf32>
    %c32_221 = arith.constant 32 : index
    %c0_222 = arith.constant 0 : index
    %736 = vector.load %arg23[%c32_221, %c0_222] : memref<64x96xf32, #tpu.memory_space<vmem>>, vector<8x96xf32>
    %cst_223 = arith.constant dense<0.000000e+00> : vector<8x96xf32>
    %737 = tpu.matmul %706, %524, %cst_223 {dimension_numbers = #tpu.dot_dimension_numbers<[1], [0], [0], [1], [0, 0, 1, 1], [], []>} : vector<8x32xf32>, vector<32x96xf32>, vector<8x96xf32> -> vector<8x96xf32>
    %738 = arith.addf %737, %530 : vector<8x96xf32>
    %739 = vector.extract_strided_slice %736 {offsets = [0, 0], sizes = [8, 32], strides = [1, 1]} : vector<8x96xf32> to vector<8x32xf32>
    %740 = vector.extract_strided_slice %738 {offsets = [0, 0], sizes = [8, 32], strides = [1, 1]} : vector<8x96xf32> to vector<8x32xf32>
    %741 = arith.addf %739, %740 : vector<8x32xf32>
    %742 = arith.negf %741 : vector<8x32xf32>
    %743 = math.exp %742 : vector<8x32xf32>
    %cst_224 = arith.constant 1.000000e+00 : f32
    %744 = vector.broadcast %cst_224 : f32 to vector<8x32xf32>
    %745 = arith.addf %744, %743 : vector<8x32xf32>
    %746 = arith.divf %744, %745 : vector<8x32xf32>
    %747 = vector.extract_strided_slice %736 {offsets = [0, 32], sizes = [8, 32], strides = [1, 1]} : vector<8x96xf32> to vector<8x32xf32>
    %748 = vector.extract_strided_slice %738 {offsets = [0, 32], sizes = [8, 32], strides = [1, 1]} : vector<8x96xf32> to vector<8x32xf32>
    %749 = arith.addf %747, %748 : vector<8x32xf32>
    %750 = arith.negf %749 : vector<8x32xf32>
    %751 = math.exp %750 : vector<8x32xf32>
    %cst_225 = arith.constant 1.000000e+00 : f32
    %752 = vector.broadcast %cst_225 : f32 to vector<8x32xf32>
    %753 = arith.addf %752, %751 : vector<8x32xf32>
    %754 = arith.divf %752, %753 : vector<8x32xf32>
    %755 = vector.extract_strided_slice %736 {offsets = [0, 64], sizes = [8, 32], strides = [1, 1]} : vector<8x96xf32> to vector<8x32xf32>
    %756 = vector.extract_strided_slice %738 {offsets = [0, 64], sizes = [8, 32], strides = [1, 1]} : vector<8x96xf32> to vector<8x32xf32>
    %757 = arith.mulf %746, %756 : vector<8x32xf32>
    %758 = arith.addf %755, %757 : vector<8x32xf32>
    %759 = math.tanh %758 : vector<8x32xf32>
    %cst_226 = arith.constant 1.000000e+00 : f32
    %760 = vector.broadcast %cst_226 : f32 to vector<8x32xf32>
    %761 = arith.subf %760, %754 : vector<8x32xf32>
    %762 = arith.mulf %761, %759 : vector<8x32xf32>
    %763 = arith.mulf %754, %706 : vector<8x32xf32>
    %764 = arith.addf %762, %763 : vector<8x32xf32>
    %c32_227 = arith.constant 32 : index
    %c0_228 = arith.constant 0 : index
    %765 = vector.load %arg22[%c32_227, %c0_228] : memref<64x96xf32, #tpu.memory_space<vmem>>, vector<8x96xf32>
    %cst_229 = arith.constant dense<0.000000e+00> : vector<8x96xf32>
    %766 = tpu.matmul %735, %523, %cst_229 {dimension_numbers = #tpu.dot_dimension_numbers<[1], [0], [0], [1], [0, 0, 1, 1], [], []>} : vector<8x32xf32>, vector<32x96xf32>, vector<8x96xf32> -> vector<8x96xf32>
    %767 = arith.addf %766, %527 : vector<8x96xf32>
    %768 = vector.extract_strided_slice %765 {offsets = [0, 0], sizes = [8, 32], strides = [1, 1]} : vector<8x96xf32> to vector<8x32xf32>
    %769 = vector.extract_strided_slice %767 {offsets = [0, 0], sizes = [8, 32], strides = [1, 1]} : vector<8x96xf32> to vector<8x32xf32>
    %770 = arith.addf %768, %769 : vector<8x32xf32>
    %771 = arith.negf %770 : vector<8x32xf32>
    %772 = math.exp %771 : vector<8x32xf32>
    %cst_230 = arith.constant 1.000000e+00 : f32
    %773 = vector.broadcast %cst_230 : f32 to vector<8x32xf32>
    %774 = arith.addf %773, %772 : vector<8x32xf32>
    %775 = arith.divf %773, %774 : vector<8x32xf32>
    %776 = vector.extract_strided_slice %765 {offsets = [0, 32], sizes = [8, 32], strides = [1, 1]} : vector<8x96xf32> to vector<8x32xf32>
    %777 = vector.extract_strided_slice %767 {offsets = [0, 32], sizes = [8, 32], strides = [1, 1]} : vector<8x96xf32> to vector<8x32xf32>
    %778 = arith.addf %776, %777 : vector<8x32xf32>
    %779 = arith.negf %778 : vector<8x32xf32>
    %780 = math.exp %779 : vector<8x32xf32>
    %cst_231 = arith.constant 1.000000e+00 : f32
    %781 = vector.broadcast %cst_231 : f32 to vector<8x32xf32>
    %782 = arith.addf %781, %780 : vector<8x32xf32>
    %783 = arith.divf %781, %782 : vector<8x32xf32>
    %784 = vector.extract_strided_slice %765 {offsets = [0, 64], sizes = [8, 32], strides = [1, 1]} : vector<8x96xf32> to vector<8x32xf32>
    %785 = vector.extract_strided_slice %767 {offsets = [0, 64], sizes = [8, 32], strides = [1, 1]} : vector<8x96xf32> to vector<8x32xf32>
    %786 = arith.mulf %775, %785 : vector<8x32xf32>
    %787 = arith.addf %784, %786 : vector<8x32xf32>
    %788 = math.tanh %787 : vector<8x32xf32>
    %cst_232 = arith.constant 1.000000e+00 : f32
    %789 = vector.broadcast %cst_232 : f32 to vector<8x32xf32>
    %790 = arith.subf %789, %783 : vector<8x32xf32>
    %791 = arith.mulf %790, %788 : vector<8x32xf32>
    %792 = arith.mulf %783, %735 : vector<8x32xf32>
    %793 = arith.addf %791, %792 : vector<8x32xf32>
    %c24_233 = arith.constant 24 : index
    %c0_234 = arith.constant 0 : index
    %794 = vector.load %arg23[%c24_233, %c0_234] : memref<64x96xf32, #tpu.memory_space<vmem>>, vector<8x96xf32>
    %cst_235 = arith.constant dense<0.000000e+00> : vector<8x96xf32>
    %795 = tpu.matmul %764, %524, %cst_235 {dimension_numbers = #tpu.dot_dimension_numbers<[1], [0], [0], [1], [0, 0, 1, 1], [], []>} : vector<8x32xf32>, vector<32x96xf32>, vector<8x96xf32> -> vector<8x96xf32>
    %796 = arith.addf %795, %530 : vector<8x96xf32>
    %797 = vector.extract_strided_slice %794 {offsets = [0, 0], sizes = [8, 32], strides = [1, 1]} : vector<8x96xf32> to vector<8x32xf32>
    %798 = vector.extract_strided_slice %796 {offsets = [0, 0], sizes = [8, 32], strides = [1, 1]} : vector<8x96xf32> to vector<8x32xf32>
    %799 = arith.addf %797, %798 : vector<8x32xf32>
    %800 = arith.negf %799 : vector<8x32xf32>
    %801 = math.exp %800 : vector<8x32xf32>
    %cst_236 = arith.constant 1.000000e+00 : f32
    %802 = vector.broadcast %cst_236 : f32 to vector<8x32xf32>
    %803 = arith.addf %802, %801 : vector<8x32xf32>
    %804 = arith.divf %802, %803 : vector<8x32xf32>
    %805 = vector.extract_strided_slice %794 {offsets = [0, 32], sizes = [8, 32], strides = [1, 1]} : vector<8x96xf32> to vector<8x32xf32>
    %806 = vector.extract_strided_slice %796 {offsets = [0, 32], sizes = [8, 32], strides = [1, 1]} : vector<8x96xf32> to vector<8x32xf32>
    %807 = arith.addf %805, %806 : vector<8x32xf32>
    %808 = arith.negf %807 : vector<8x32xf32>
    %809 = math.exp %808 : vector<8x32xf32>
    %cst_237 = arith.constant 1.000000e+00 : f32
    %810 = vector.broadcast %cst_237 : f32 to vector<8x32xf32>
    %811 = arith.addf %810, %809 : vector<8x32xf32>
    %812 = arith.divf %810, %811 : vector<8x32xf32>
    %813 = vector.extract_strided_slice %794 {offsets = [0, 64], sizes = [8, 32], strides = [1, 1]} : vector<8x96xf32> to vector<8x32xf32>
    %814 = vector.extract_strided_slice %796 {offsets = [0, 64], sizes = [8, 32], strides = [1, 1]} : vector<8x96xf32> to vector<8x32xf32>
    %815 = arith.mulf %804, %814 : vector<8x32xf32>
    %816 = arith.addf %813, %815 : vector<8x32xf32>
    %817 = math.tanh %816 : vector<8x32xf32>
    %cst_238 = arith.constant 1.000000e+00 : f32
    %818 = vector.broadcast %cst_238 : f32 to vector<8x32xf32>
    %819 = arith.subf %818, %812 : vector<8x32xf32>
    %820 = arith.mulf %819, %817 : vector<8x32xf32>
    %821 = arith.mulf %812, %764 : vector<8x32xf32>
    %822 = arith.addf %820, %821 : vector<8x32xf32>
    %c40_239 = arith.constant 40 : index
    %c0_240 = arith.constant 0 : index
    %823 = vector.load %arg22[%c40_239, %c0_240] : memref<64x96xf32, #tpu.memory_space<vmem>>, vector<8x96xf32>
    %cst_241 = arith.constant dense<0.000000e+00> : vector<8x96xf32>
    %824 = tpu.matmul %793, %523, %cst_241 {dimension_numbers = #tpu.dot_dimension_numbers<[1], [0], [0], [1], [0, 0, 1, 1], [], []>} : vector<8x32xf32>, vector<32x96xf32>, vector<8x96xf32> -> vector<8x96xf32>
    %825 = arith.addf %824, %527 : vector<8x96xf32>
    %826 = vector.extract_strided_slice %823 {offsets = [0, 0], sizes = [8, 32], strides = [1, 1]} : vector<8x96xf32> to vector<8x32xf32>
    %827 = vector.extract_strided_slice %825 {offsets = [0, 0], sizes = [8, 32], strides = [1, 1]} : vector<8x96xf32> to vector<8x32xf32>
    %828 = arith.addf %826, %827 : vector<8x32xf32>
    %829 = arith.negf %828 : vector<8x32xf32>
    %830 = math.exp %829 : vector<8x32xf32>
    %cst_242 = arith.constant 1.000000e+00 : f32
    %831 = vector.broadcast %cst_242 : f32 to vector<8x32xf32>
    %832 = arith.addf %831, %830 : vector<8x32xf32>
    %833 = arith.divf %831, %832 : vector<8x32xf32>
    %834 = vector.extract_strided_slice %823 {offsets = [0, 32], sizes = [8, 32], strides = [1, 1]} : vector<8x96xf32> to vector<8x32xf32>
    %835 = vector.extract_strided_slice %825 {offsets = [0, 32], sizes = [8, 32], strides = [1, 1]} : vector<8x96xf32> to vector<8x32xf32>
    %836 = arith.addf %834, %835 : vector<8x32xf32>
    %837 = arith.negf %836 : vector<8x32xf32>
    %838 = math.exp %837 : vector<8x32xf32>
    %cst_243 = arith.constant 1.000000e+00 : f32
    %839 = vector.broadcast %cst_243 : f32 to vector<8x32xf32>
    %840 = arith.addf %839, %838 : vector<8x32xf32>
    %841 = arith.divf %839, %840 : vector<8x32xf32>
    %842 = vector.extract_strided_slice %823 {offsets = [0, 64], sizes = [8, 32], strides = [1, 1]} : vector<8x96xf32> to vector<8x32xf32>
    %843 = vector.extract_strided_slice %825 {offsets = [0, 64], sizes = [8, 32], strides = [1, 1]} : vector<8x96xf32> to vector<8x32xf32>
    %844 = arith.mulf %833, %843 : vector<8x32xf32>
    %845 = arith.addf %842, %844 : vector<8x32xf32>
    %846 = math.tanh %845 : vector<8x32xf32>
    %cst_244 = arith.constant 1.000000e+00 : f32
    %847 = vector.broadcast %cst_244 : f32 to vector<8x32xf32>
    %848 = arith.subf %847, %841 : vector<8x32xf32>
    %849 = arith.mulf %848, %846 : vector<8x32xf32>
    %850 = arith.mulf %841, %793 : vector<8x32xf32>
    %851 = arith.addf %849, %850 : vector<8x32xf32>
    %c16_245 = arith.constant 16 : index
    %c0_246 = arith.constant 0 : index
    %852 = vector.load %arg23[%c16_245, %c0_246] : memref<64x96xf32, #tpu.memory_space<vmem>>, vector<8x96xf32>
    %cst_247 = arith.constant dense<0.000000e+00> : vector<8x96xf32>
    %853 = tpu.matmul %822, %524, %cst_247 {dimension_numbers = #tpu.dot_dimension_numbers<[1], [0], [0], [1], [0, 0, 1, 1], [], []>} : vector<8x32xf32>, vector<32x96xf32>, vector<8x96xf32> -> vector<8x96xf32>
    %854 = arith.addf %853, %530 : vector<8x96xf32>
    %855 = vector.extract_strided_slice %852 {offsets = [0, 0], sizes = [8, 32], strides = [1, 1]} : vector<8x96xf32> to vector<8x32xf32>
    %856 = vector.extract_strided_slice %854 {offsets = [0, 0], sizes = [8, 32], strides = [1, 1]} : vector<8x96xf32> to vector<8x32xf32>
    %857 = arith.addf %855, %856 : vector<8x32xf32>
    %858 = arith.negf %857 : vector<8x32xf32>
    %859 = math.exp %858 : vector<8x32xf32>
    %cst_248 = arith.constant 1.000000e+00 : f32
    %860 = vector.broadcast %cst_248 : f32 to vector<8x32xf32>
    %861 = arith.addf %860, %859 : vector<8x32xf32>
    %862 = arith.divf %860, %861 : vector<8x32xf32>
    %863 = vector.extract_strided_slice %852 {offsets = [0, 32], sizes = [8, 32], strides = [1, 1]} : vector<8x96xf32> to vector<8x32xf32>
    %864 = vector.extract_strided_slice %854 {offsets = [0, 32], sizes = [8, 32], strides = [1, 1]} : vector<8x96xf32> to vector<8x32xf32>
    %865 = arith.addf %863, %864 : vector<8x32xf32>
    %866 = arith.negf %865 : vector<8x32xf32>
    %867 = math.exp %866 : vector<8x32xf32>
    %cst_249 = arith.constant 1.000000e+00 : f32
    %868 = vector.broadcast %cst_249 : f32 to vector<8x32xf32>
    %869 = arith.addf %868, %867 : vector<8x32xf32>
    %870 = arith.divf %868, %869 : vector<8x32xf32>
    %871 = vector.extract_strided_slice %852 {offsets = [0, 64], sizes = [8, 32], strides = [1, 1]} : vector<8x96xf32> to vector<8x32xf32>
    %872 = vector.extract_strided_slice %854 {offsets = [0, 64], sizes = [8, 32], strides = [1, 1]} : vector<8x96xf32> to vector<8x32xf32>
    %873 = arith.mulf %862, %872 : vector<8x32xf32>
    %874 = arith.addf %871, %873 : vector<8x32xf32>
    %875 = math.tanh %874 : vector<8x32xf32>
    %cst_250 = arith.constant 1.000000e+00 : f32
    %876 = vector.broadcast %cst_250 : f32 to vector<8x32xf32>
    %877 = arith.subf %876, %870 : vector<8x32xf32>
    %878 = arith.mulf %877, %875 : vector<8x32xf32>
    %879 = arith.mulf %870, %822 : vector<8x32xf32>
    %880 = arith.addf %878, %879 : vector<8x32xf32>
    %c48_251 = arith.constant 48 : index
    %c0_252 = arith.constant 0 : index
    %881 = vector.load %arg22[%c48_251, %c0_252] : memref<64x96xf32, #tpu.memory_space<vmem>>, vector<8x96xf32>
    %cst_253 = arith.constant dense<0.000000e+00> : vector<8x96xf32>
    %882 = tpu.matmul %851, %523, %cst_253 {dimension_numbers = #tpu.dot_dimension_numbers<[1], [0], [0], [1], [0, 0, 1, 1], [], []>} : vector<8x32xf32>, vector<32x96xf32>, vector<8x96xf32> -> vector<8x96xf32>
    %883 = arith.addf %882, %527 : vector<8x96xf32>
    %884 = vector.extract_strided_slice %881 {offsets = [0, 0], sizes = [8, 32], strides = [1, 1]} : vector<8x96xf32> to vector<8x32xf32>
    %885 = vector.extract_strided_slice %883 {offsets = [0, 0], sizes = [8, 32], strides = [1, 1]} : vector<8x96xf32> to vector<8x32xf32>
    %886 = arith.addf %884, %885 : vector<8x32xf32>
    %887 = arith.negf %886 : vector<8x32xf32>
    %888 = math.exp %887 : vector<8x32xf32>
    %cst_254 = arith.constant 1.000000e+00 : f32
    %889 = vector.broadcast %cst_254 : f32 to vector<8x32xf32>
    %890 = arith.addf %889, %888 : vector<8x32xf32>
    %891 = arith.divf %889, %890 : vector<8x32xf32>
    %892 = vector.extract_strided_slice %881 {offsets = [0, 32], sizes = [8, 32], strides = [1, 1]} : vector<8x96xf32> to vector<8x32xf32>
    %893 = vector.extract_strided_slice %883 {offsets = [0, 32], sizes = [8, 32], strides = [1, 1]} : vector<8x96xf32> to vector<8x32xf32>
    %894 = arith.addf %892, %893 : vector<8x32xf32>
    %895 = arith.negf %894 : vector<8x32xf32>
    %896 = math.exp %895 : vector<8x32xf32>
    %cst_255 = arith.constant 1.000000e+00 : f32
    %897 = vector.broadcast %cst_255 : f32 to vector<8x32xf32>
    %898 = arith.addf %897, %896 : vector<8x32xf32>
    %899 = arith.divf %897, %898 : vector<8x32xf32>
    %900 = vector.extract_strided_slice %881 {offsets = [0, 64], sizes = [8, 32], strides = [1, 1]} : vector<8x96xf32> to vector<8x32xf32>
    %901 = vector.extract_strided_slice %883 {offsets = [0, 64], sizes = [8, 32], strides = [1, 1]} : vector<8x96xf32> to vector<8x32xf32>
    %902 = arith.mulf %891, %901 : vector<8x32xf32>
    %903 = arith.addf %900, %902 : vector<8x32xf32>
    %904 = math.tanh %903 : vector<8x32xf32>
    %cst_256 = arith.constant 1.000000e+00 : f32
    %905 = vector.broadcast %cst_256 : f32 to vector<8x32xf32>
    %906 = arith.subf %905, %899 : vector<8x32xf32>
    %907 = arith.mulf %906, %904 : vector<8x32xf32>
    %908 = arith.mulf %899, %851 : vector<8x32xf32>
    %909 = arith.addf %907, %908 : vector<8x32xf32>
    %c8_257 = arith.constant 8 : index
    %c0_258 = arith.constant 0 : index
    %910 = vector.load %arg23[%c8_257, %c0_258] : memref<64x96xf32, #tpu.memory_space<vmem>>, vector<8x96xf32>
    %cst_259 = arith.constant dense<0.000000e+00> : vector<8x96xf32>
    %911 = tpu.matmul %880, %524, %cst_259 {dimension_numbers = #tpu.dot_dimension_numbers<[1], [0], [0], [1], [0, 0, 1, 1], [], []>} : vector<8x32xf32>, vector<32x96xf32>, vector<8x96xf32> -> vector<8x96xf32>
    %912 = arith.addf %911, %530 : vector<8x96xf32>
    %913 = vector.extract_strided_slice %910 {offsets = [0, 0], sizes = [8, 32], strides = [1, 1]} : vector<8x96xf32> to vector<8x32xf32>
    %914 = vector.extract_strided_slice %912 {offsets = [0, 0], sizes = [8, 32], strides = [1, 1]} : vector<8x96xf32> to vector<8x32xf32>
    %915 = arith.addf %913, %914 : vector<8x32xf32>
    %916 = arith.negf %915 : vector<8x32xf32>
    %917 = math.exp %916 : vector<8x32xf32>
    %cst_260 = arith.constant 1.000000e+00 : f32
    %918 = vector.broadcast %cst_260 : f32 to vector<8x32xf32>
    %919 = arith.addf %918, %917 : vector<8x32xf32>
    %920 = arith.divf %918, %919 : vector<8x32xf32>
    %921 = vector.extract_strided_slice %910 {offsets = [0, 32], sizes = [8, 32], strides = [1, 1]} : vector<8x96xf32> to vector<8x32xf32>
    %922 = vector.extract_strided_slice %912 {offsets = [0, 32], sizes = [8, 32], strides = [1, 1]} : vector<8x96xf32> to vector<8x32xf32>
    %923 = arith.addf %921, %922 : vector<8x32xf32>
    %924 = arith.negf %923 : vector<8x32xf32>
    %925 = math.exp %924 : vector<8x32xf32>
    %cst_261 = arith.constant 1.000000e+00 : f32
    %926 = vector.broadcast %cst_261 : f32 to vector<8x32xf32>
    %927 = arith.addf %926, %925 : vector<8x32xf32>
    %928 = arith.divf %926, %927 : vector<8x32xf32>
    %929 = vector.extract_strided_slice %910 {offsets = [0, 64], sizes = [8, 32], strides = [1, 1]} : vector<8x96xf32> to vector<8x32xf32>
    %930 = vector.extract_strided_slice %912 {offsets = [0, 64], sizes = [8, 32], strides = [1, 1]} : vector<8x96xf32> to vector<8x32xf32>
    %931 = arith.mulf %920, %930 : vector<8x32xf32>
    %932 = arith.addf %929, %931 : vector<8x32xf32>
    %933 = math.tanh %932 : vector<8x32xf32>
    %cst_262 = arith.constant 1.000000e+00 : f32
    %934 = vector.broadcast %cst_262 : f32 to vector<8x32xf32>
    %935 = arith.subf %934, %928 : vector<8x32xf32>
    %936 = arith.mulf %935, %933 : vector<8x32xf32>
    %937 = arith.mulf %928, %880 : vector<8x32xf32>
    %938 = arith.addf %936, %937 : vector<8x32xf32>
    %c56_263 = arith.constant 56 : index
    %c0_264 = arith.constant 0 : index
    %939 = vector.load %arg22[%c56_263, %c0_264] : memref<64x96xf32, #tpu.memory_space<vmem>>, vector<8x96xf32>
    %cst_265 = arith.constant dense<0.000000e+00> : vector<8x96xf32>
    %940 = tpu.matmul %909, %523, %cst_265 {dimension_numbers = #tpu.dot_dimension_numbers<[1], [0], [0], [1], [0, 0, 1, 1], [], []>} : vector<8x32xf32>, vector<32x96xf32>, vector<8x96xf32> -> vector<8x96xf32>
    %941 = arith.addf %940, %527 : vector<8x96xf32>
    %942 = vector.extract_strided_slice %939 {offsets = [0, 0], sizes = [8, 32], strides = [1, 1]} : vector<8x96xf32> to vector<8x32xf32>
    %943 = vector.extract_strided_slice %941 {offsets = [0, 0], sizes = [8, 32], strides = [1, 1]} : vector<8x96xf32> to vector<8x32xf32>
    %944 = arith.addf %942, %943 : vector<8x32xf32>
    %945 = arith.negf %944 : vector<8x32xf32>
    %946 = math.exp %945 : vector<8x32xf32>
    %cst_266 = arith.constant 1.000000e+00 : f32
    %947 = vector.broadcast %cst_266 : f32 to vector<8x32xf32>
    %948 = arith.addf %947, %946 : vector<8x32xf32>
    %949 = arith.divf %947, %948 : vector<8x32xf32>
    %950 = vector.extract_strided_slice %939 {offsets = [0, 32], sizes = [8, 32], strides = [1, 1]} : vector<8x96xf32> to vector<8x32xf32>
    %951 = vector.extract_strided_slice %941 {offsets = [0, 32], sizes = [8, 32], strides = [1, 1]} : vector<8x96xf32> to vector<8x32xf32>
    %952 = arith.addf %950, %951 : vector<8x32xf32>
    %953 = arith.negf %952 : vector<8x32xf32>
    %954 = math.exp %953 : vector<8x32xf32>
    %cst_267 = arith.constant 1.000000e+00 : f32
    %955 = vector.broadcast %cst_267 : f32 to vector<8x32xf32>
    %956 = arith.addf %955, %954 : vector<8x32xf32>
    %957 = arith.divf %955, %956 : vector<8x32xf32>
    %958 = vector.extract_strided_slice %939 {offsets = [0, 64], sizes = [8, 32], strides = [1, 1]} : vector<8x96xf32> to vector<8x32xf32>
    %959 = vector.extract_strided_slice %941 {offsets = [0, 64], sizes = [8, 32], strides = [1, 1]} : vector<8x96xf32> to vector<8x32xf32>
    %960 = arith.mulf %949, %959 : vector<8x32xf32>
    %961 = arith.addf %958, %960 : vector<8x32xf32>
    %962 = math.tanh %961 : vector<8x32xf32>
    %cst_268 = arith.constant 1.000000e+00 : f32
    %963 = vector.broadcast %cst_268 : f32 to vector<8x32xf32>
    %964 = arith.subf %963, %957 : vector<8x32xf32>
    %965 = arith.mulf %964, %962 : vector<8x32xf32>
    %966 = arith.mulf %957, %909 : vector<8x32xf32>
    %967 = arith.addf %965, %966 : vector<8x32xf32>
    %c0_269 = arith.constant 0 : index
    %c0_270 = arith.constant 0 : index
    %968 = vector.load %arg23[%c0_269, %c0_270] : memref<64x96xf32, #tpu.memory_space<vmem>>, vector<8x96xf32>
    %cst_271 = arith.constant dense<0.000000e+00> : vector<8x96xf32>
    %969 = tpu.matmul %938, %524, %cst_271 {dimension_numbers = #tpu.dot_dimension_numbers<[1], [0], [0], [1], [0, 0, 1, 1], [], []>} : vector<8x32xf32>, vector<32x96xf32>, vector<8x96xf32> -> vector<8x96xf32>
    %970 = arith.addf %969, %530 : vector<8x96xf32>
    %971 = vector.extract_strided_slice %968 {offsets = [0, 0], sizes = [8, 32], strides = [1, 1]} : vector<8x96xf32> to vector<8x32xf32>
    %972 = vector.extract_strided_slice %970 {offsets = [0, 0], sizes = [8, 32], strides = [1, 1]} : vector<8x96xf32> to vector<8x32xf32>
    %973 = arith.addf %971, %972 : vector<8x32xf32>
    %974 = arith.negf %973 : vector<8x32xf32>
    %975 = math.exp %974 : vector<8x32xf32>
    %cst_272 = arith.constant 1.000000e+00 : f32
    %976 = vector.broadcast %cst_272 : f32 to vector<8x32xf32>
    %977 = arith.addf %976, %975 : vector<8x32xf32>
    %978 = arith.divf %976, %977 : vector<8x32xf32>
    %979 = vector.extract_strided_slice %968 {offsets = [0, 32], sizes = [8, 32], strides = [1, 1]} : vector<8x96xf32> to vector<8x32xf32>
    %980 = vector.extract_strided_slice %970 {offsets = [0, 32], sizes = [8, 32], strides = [1, 1]} : vector<8x96xf32> to vector<8x32xf32>
    %981 = arith.addf %979, %980 : vector<8x32xf32>
    %982 = arith.negf %981 : vector<8x32xf32>
    %983 = math.exp %982 : vector<8x32xf32>
    %cst_273 = arith.constant 1.000000e+00 : f32
    %984 = vector.broadcast %cst_273 : f32 to vector<8x32xf32>
    %985 = arith.addf %984, %983 : vector<8x32xf32>
    %986 = arith.divf %984, %985 : vector<8x32xf32>
    %987 = vector.extract_strided_slice %968 {offsets = [0, 64], sizes = [8, 32], strides = [1, 1]} : vector<8x96xf32> to vector<8x32xf32>
    %988 = vector.extract_strided_slice %970 {offsets = [0, 64], sizes = [8, 32], strides = [1, 1]} : vector<8x96xf32> to vector<8x32xf32>
    %989 = arith.mulf %978, %988 : vector<8x32xf32>
    %990 = arith.addf %987, %989 : vector<8x32xf32>
    %991 = math.tanh %990 : vector<8x32xf32>
    %cst_274 = arith.constant 1.000000e+00 : f32
    %992 = vector.broadcast %cst_274 : f32 to vector<8x32xf32>
    %993 = arith.subf %992, %986 : vector<8x32xf32>
    %994 = arith.mulf %993, %991 : vector<8x32xf32>
    %995 = arith.mulf %986, %938 : vector<8x32xf32>
    %996 = arith.addf %994, %995 : vector<8x32xf32>
    %997 = tpu.concatenate %471, %500, %967, %996 in 1 : vector<8x32xf32>, vector<8x32xf32>, vector<8x32xf32>, vector<8x32xf32> -> vector<8x128xf32>
    %c0_275 = arith.constant 0 : index
    %c0_276 = arith.constant 0 : index
    %998 = vector.load %arg17[%c0_275, %c0_276] : memref<8x128xf32, #tpu.memory_space<vmem>>, vector<8x128xf32>
    tpu.vector_store %arg17[%c0_275, %c0_276], %997 {strides = array<i32>} : memref<8x128xf32, #tpu.memory_space<vmem>>, vector<8x128xf32>,
    return
  }
}

</mosaic_0001>

<llo_original>
// kernel: tpu_custom_call.1
$region0: #{tpu_custom_call.1}
  #allocation0 [shape = 'u32[]', space=smem, size = 0x4, offset = 0x4, fixed_abs, tag = 'smem constant byte address 0x4 - core index']
  #allocation1 [shape = 'u32[144,128]{1,0:T(1,128)}', space=vmem, size = 0x12000, scoped, tag = 'internal scratch']
  #allocation2 [shape = 'f32[64,96]{1,0:T(8,128)}', space=vmem, size = 0x8000, scoped, tag = 'scratch operand']
  #allocation3 [shape = 'f32[64,96]{1,0:T(8,128)}', space=vmem, size = 0x8000, scoped, tag = 'scratch operand']
  #allocation4 [shape = 'f32[64,32]{1,0:T(8,128)}', space=vmem, size = 0x8000, scoped, tag = 'scratch operand']
  #allocation5 [shape = 'f32[64,32]{1,0:T(8,128)}', space=vmem, size = 0x8000, scoped, tag = 'scratch operand']
  #allocation6 [shape = 'f32[64,96]{1,0:T(8,128)}', space=vmem, size = 0x8000, scoped, tag = 'scratch operand']
  #allocation7 [shape = 'f32[64,96]{1,0:T(8,128)}', space=vmem, size = 0x8000, scoped, tag = 'scratch operand']
  %s0 = inlined_call_operand.vmem [shape: f32[64,8], index: 0, kind: input, shape index: {}]
  %s1 = inlined_call_operand.vmem [shape: f32[8,96], index: 1, kind: input, shape index: {}]
  %s2 = inlined_call_operand.vmem [shape: f32[32,96], index: 2, kind: input, shape index: {}]
  %s3 = inlined_call_operand.vmem [shape: f32[1,96], index: 3, kind: input, shape index: {}]
  %s4 = inlined_call_operand.vmem [shape: f32[1,96], index: 4, kind: input, shape index: {}]
  %s5 = inlined_call_operand.hbm [shape: f32[8,96], index: 5, kind: input, shape index: {}]
  %s6 = inlined_call_operand.hbm [shape: f32[32,96], index: 6, kind: input, shape index: {}]
  %s7 = inlined_call_operand.hbm [shape: f32[1,96], index: 7, kind: input, shape index: {}]
  %s8 = inlined_call_operand.hbm [shape: f32[1,96], index: 8, kind: input, shape index: {}]
  %s9 = inlined_call_operand.vmem [shape: f32[64,96], index: 9, kind: input, shape index: {}]
  %s10 = inlined_call_operand.hbm [shape: f32[32,96], index: 10, kind: input, shape index: {}]
  %s11 = inlined_call_operand.vmem [shape: f32[1,96], index: 11, kind: input, shape index: {}]
  %s12 = inlined_call_operand.vmem [shape: f32[1,96], index: 12, kind: input, shape index: {}]
  %s13 = inlined_call_operand.hbm [shape: f32[64,96], index: 13, kind: input, shape index: {}]
  %s14 = inlined_call_operand.hbm [shape: f32[32,96], index: 14, kind: input, shape index: {}]
  %s15 = inlined_call_operand.vmem [shape: f32[1,96], index: 15, kind: input, shape index: {}]
  %s16 = inlined_call_operand.vmem [shape: f32[1,96], index: 16, kind: input, shape index: {}]
  %s17 = inlined_call_operand.hbm [shape: f32[8,128], index: 17, kind: output, shape index: {}]
  %s18 = sld [smem:[#allocation0]]
  $region106: #{tpu_custom_call.1} parent=0
    _
  %s20 = ssub.s32 1, %s18
  %s21 = scalar_select 0, %s20, %s18
  $region1: #{tpu_custom_call.1} parent=0
    #allocation8 [shape = 'u8[4096]{0}', space=vmem, size = 0x1000, scoped, tag = 'input window, operand 5, single buffered']
    #allocation9 [shape = 's32[1]{0}', space=sflag, size = 0x4, scoped, tag = 'scoped memory for tpu_custom_call.1']
    #allocation10 [shape = 's32[1]{0}', space=sflag, size = 0x4, scoped, tag = 'scoped memory for tpu_custom_call.1']
    #allocation11 [shape = 'u8[16384]{0}', space=vmem, size = 0x4000, scoped, tag = 'input window, operand 6, single buffered']
    #allocation12 [shape = 's32[1]{0}', space=sflag, size = 0x4, scoped, tag = 'scoped memory for tpu_custom_call.1']
    #allocation13 [shape = 'u8[512]{0}', space=vmem, size = 0x400, scoped, tag = 'input window, operand 7, single buffered']
    #allocation14 [shape = 'u8[512]{0}', space=vmem, size = 0x400, scoped, tag = 'input window, operand 8, single buffered']
    #allocation15 [shape = 's32[1]{0}', space=sflag, size = 0x4, scoped, tag = 'scoped memory for tpu_custom_call.1']
    #allocation16 [shape = 'u8[16384]{0}', space=vmem, size = 0x4000, scoped, tag = 'input window, operand 10, single buffered']
    #allocation17 [shape = 'u8[32768]{0}', space=vmem, size = 0x8000, scoped, tag = 'input window, operand 13, single buffered']
    #allocation18 [shape = 's32[1]{0}', space=sflag, size = 0x4, scoped, tag = 'scoped memory for tpu_custom_call.1']
    #allocation19 [shape = 'u8[16384]{0}', space=vmem, size = 0x4000, scoped, tag = 'input window, operand 14, single buffered']
    #allocation20 [shape = 'u8[4096]{0}', space=vmem, size = 0x1000, scoped, tag = 'output window, operand 0, single buffered']
    %22 = vsyncpa [#allocation9], 0
    %23 = vsyncpa [#allocation12], 0
    %24 = vsyncpa [#allocation15], 0
    %25 = vsyncpa [#allocation18], 0
    %26 = vsyncpa [#allocation10], 0
    // Predicated region
    $region2: #{tpu_custom_call.1} parent=1 // pred_check
      _
    $region3: #{tpu_custom_call.1} parent=1 // pred_check_branch
      %28 = sbr.rel (0) target = $region5
    $region4: #{tpu_custom_call.1} parent=1 // pred_region
      _
    $region5: #{tpu_custom_call.1} parent=1 // pred_fallthru
      _
    // Predicated region
    $region6: #{tpu_custom_call.1} parent=1 // pred_check
      _
    $region7: #{tpu_custom_call.1} parent=1 // pred_check_branch
      %30 = sbr.rel (0) target = $region9
    $region8: #{tpu_custom_call.1} parent=1 // pred_region
      _
    $region9: #{tpu_custom_call.1} parent=1 // pred_fallthru
      _
    // Predicated region
    $region10: #{tpu_custom_call.1} parent=1 // pred_check
      _
    $region11: #{tpu_custom_call.1} parent=1 // pred_check_branch
      %32 = sbr.rel (0) target = $region13
    $region12: #{tpu_custom_call.1} parent=1 // pred_region
      _
    $region13: #{tpu_custom_call.1} parent=1 // pred_fallthru
      _
    // Predicated region
    $region14: #{tpu_custom_call.1} parent=1 // pred_check
      _
    $region15: #{tpu_custom_call.1} parent=1 // pred_check_branch
      %34 = sbr.rel (0) target = $region17
    $region16: #{tpu_custom_call.1} parent=1 // pred_region
      _
    $region17: #{tpu_custom_call.1} parent=1 // pred_fallthru
      _
    // Predicated region
    $region18: #{tpu_custom_call.1} parent=1 // pred_check
      _
    $region19: #{tpu_custom_call.1} parent=1 // pred_check_branch
      %36 = sbr.rel (0) target = $region21
    $region20: #{tpu_custom_call.1} parent=1 // pred_region
      _
    $region21: #{tpu_custom_call.1} parent=1 // pred_fallthru
      _
    // Predicated region
    $region22: #{tpu_custom_call.1} parent=1 // pred_check
      _
    $region23: #{tpu_custom_call.1} parent=1 // pred_check_branch
      %38 = sbr.rel (0) target = $region25
    $region24: #{tpu_custom_call.1} parent=1 // pred_region
      %s40 = ssub.s32 128, 128
      %41 = vsyncadd [#allocation9], %s40
      %s43 = sshll.u32 [#allocation8], 4
      %s44 = int_to_ptr.vmem [resolvable:$true] %s43
      %46 = dma.hbm_to_vmem [thread:$0]  %s5, 128, %s44, [#allocation9]
    $region25: #{tpu_custom_call.1} parent=1 // pred_fallthru
      _
    // Predicated region
    $region26: #{tpu_custom_call.1} parent=1 // pred_check
      _
    $region27: #{tpu_custom_call.1} parent=1 // pred_check_branch
      %48 = sbr.rel (0) target = $region29
    $region28: #{tpu_custom_call.1} parent=1 // pred_region
      %s50 = ssub.s32 512, 512
      %51 = vsyncadd [#allocation12], %s50
      %s52 = sshll.u32 [#allocation11], 4
      %s53 = int_to_ptr.vmem [resolvable:$true] %s52
      %58 = dma.hbm_to_vmem [thread:$0]  %s6, 512, %s53, [#allocation12], 128, 128, 8
    $region29: #{tpu_custom_call.1} parent=1 // pred_fallthru
      _
    // Predicated region
    $region30: #{tpu_custom_call.1} parent=1 // pred_check
      _
    $region31: #{tpu_custom_call.1} parent=1 // pred_check_branch
      %60 = sbr.rel (0) target = $region33
    $region32: #{tpu_custom_call.1} parent=1 // pred_region
      %s62 = ssub.s32 16, 16
      %63 = vsyncadd [#allocation12], %s62
      %s65 = sshll.u32 [#allocation13], 4
      %s66 = int_to_ptr.vmem [resolvable:$true] %s65
      %68 = dma.hbm_to_vmem [thread:$0]  %s7, 16, %s66, [#allocation12]
    $region33: #{tpu_custom_call.1} parent=1 // pred_fallthru
      _
    // Predicated region
    $region34: #{tpu_custom_call.1} parent=1 // pred_check
      _
    $region35: #{tpu_custom_call.1} parent=1 // pred_check_branch
      %70 = sbr.rel (0) target = $region37
    $region36: #{tpu_custom_call.1} parent=1 // pred_region
      %s72 = ssub.s32 16, 16
      %73 = vsyncadd [#allocation15], %s72
      %s75 = sshll.u32 [#allocation14], 4
      %s76 = int_to_ptr.vmem [resolvable:$true] %s75
      %78 = dma.hbm_to_vmem [thread:$0]  %s8, 16, %s76, [#allocation15]
    $region37: #{tpu_custom_call.1} parent=1 // pred_fallthru
      _
    // Predicated region
    $region38: #{tpu_custom_call.1} parent=1 // pred_check
      _
    $region39: #{tpu_custom_call.1} parent=1 // pred_check_branch
      %80 = sbr.rel (0) target = $region41
    $region40: #{tpu_custom_call.1} parent=1 // pred_region
      _
    $region41: #{tpu_custom_call.1} parent=1 // pred_fallthru
      _
    // Predicated region
    $region42: #{tpu_custom_call.1} parent=1 // pred_check
      _
    $region43: #{tpu_custom_call.1} parent=1 // pred_check_branch
      %82 = sbr.rel (0) target = $region45
    $region44: #{tpu_custom_call.1} parent=1 // pred_region
      %s84 = ssub.s32 512, 512
      %85 = vsyncadd [#allocation15], %s84
      %s86 = sshll.u32 [#allocation16], 4
      %s87 = int_to_ptr.vmem [resolvable:$true] %s86
      %92 = dma.hbm_to_vmem [thread:$0]  %s10, 512, %s87, [#allocation15], 128, 128, 8
    $region45: #{tpu_custom_call.1} parent=1 // pred_fallthru
      _
    // Predicated region
    $region46: #{tpu_custom_call.1} parent=1 // pred_check
      _
    $region47: #{tpu_custom_call.1} parent=1 // pred_check_branch
      %94 = sbr.rel (0) target = $region49
    $region48: #{tpu_custom_call.1} parent=1 // pred_region
      _
    $region49: #{tpu_custom_call.1} parent=1 // pred_fallthru
      _
    // Predicated region
    $region50: #{tpu_custom_call.1} parent=1 // pred_check
      _
    $region51: #{tpu_custom_call.1} parent=1 // pred_check_branch
      %96 = sbr.rel (0) target = $region53
    $region52: #{tpu_custom_call.1} parent=1 // pred_region
      _
    $region53: #{tpu_custom_call.1} parent=1 // pred_fallthru
      _
    // Predicated region
    $region54: #{tpu_custom_call.1} parent=1 // pred_check
      _
    $region55: #{tpu_custom_call.1} parent=1 // pred_check_branch
      %98 = sbr.rel (0) target = $region57
    $region56: #{tpu_custom_call.1} parent=1 // pred_region
      %s100 = ssub.s32 1024, 1024
      %101 = vsyncadd [#allocation18], %s100
      %s102 = sshll.u32 [#allocation17], 4
      %s103 = int_to_ptr.vmem [resolvable:$true] %s102
      %108 = dma.hbm_to_vmem [thread:$0]  %s13, 1024, %s103, [#allocation18], 128, 128, 8
    $region57: #{tpu_custom_call.1} parent=1 // pred_fallthru
      _
    // Predicated region
    $region58: #{tpu_custom_call.1} parent=1 // pred_check
      _
    $region59: #{tpu_custom_call.1} parent=1 // pred_check_branch
      %110 = sbr.rel (0) target = $region61
    $region60: #{tpu_custom_call.1} parent=1 // pred_region
      %s112 = ssub.s32 512, 512
      %113 = vsyncadd [#allocation18], %s112
      %s114 = sshll.u32 [#allocation19], 4
      %s115 = int_to_ptr.vmem [resolvable:$true] %s114
      %120 = dma.hbm_to_vmem [thread:$0]  %s14, 512, %s115, [#allocation18], 128, 128, 8
    $region61: #{tpu_custom_call.1} parent=1 // pred_fallthru
      _
    // Predicated region
    $region62: #{tpu_custom_call.1} parent=1 // pred_check
      _
    $region63: #{tpu_custom_call.1} parent=1 // pred_check_branch
      %122 = sbr.rel (0) target = $region65
    $region64: #{tpu_custom_call.1} parent=1 // pred_region
      _
    $region65: #{tpu_custom_call.1} parent=1 // pred_fallthru
      _
    // Predicated region
    $region66: #{tpu_custom_call.1} parent=1 // pred_check
      _
    $region67: #{tpu_custom_call.1} parent=1 // pred_check_branch
      %124 = sbr.rel (0) target = $region69
    $region68: #{tpu_custom_call.1} parent=1 // pred_region
      _
    $region69: #{tpu_custom_call.1} parent=1 // pred_fallthru
      _
    // Predicated region
    $region70: #{tpu_custom_call.1} parent=1 // pred_check
      _
    $region71: #{tpu_custom_call.1} parent=1 // pred_check_branch
      %126 = sbr.rel (0) target = $region73
    $region72: #{tpu_custom_call.1} parent=1 // pred_region
      %127 = dma.done [#allocation9], 128
    $region73: #{tpu_custom_call.1} parent=1 // pred_fallthru
      _
    // Predicated region
    $region74: #{tpu_custom_call.1} parent=1 // pred_check
      _
    $region75: #{tpu_custom_call.1} parent=1 // pred_check_branch
      %129 = sbr.rel (0) target = $region77
    $region76: #{tpu_custom_call.1} parent=1 // pred_region
      %130 = dma.done [#allocation12], 512
    $region77: #{tpu_custom_call.1} parent=1 // pred_fallthru
      _
    // Predicated region
    $region78: #{tpu_custom_call.1} parent=1 // pred_check
      _
    $region79: #{tpu_custom_call.1} parent=1 // pred_check_branch
      %132 = sbr.rel (0) target = $region81
    $region80: #{tpu_custom_call.1} parent=1 // pred_region
      %133 = dma.done [#allocation12], 16
    $region81: #{tpu_custom_call.1} parent=1 // pred_fallthru
      _
    // Predicated region
    $region82: #{tpu_custom_call.1} parent=1 // pred_check
      _
    $region83: #{tpu_custom_call.1} parent=1 // pred_check_branch
      %135 = sbr.rel (0) target = $region85
    $region84: #{tpu_custom_call.1} parent=1 // pred_region
      %136 = dma.done [#allocation15], 16
    $region85: #{tpu_custom_call.1} parent=1 // pred_fallthru
      _
    // Predicated region
    $region86: #{tpu_custom_call.1} parent=1 // pred_check
      _
    $region87: #{tpu_custom_call.1} parent=1 // pred_check_branch
      %138 = sbr.rel (0) target = $region89
    $region88: #{tpu_custom_call.1} parent=1 // pred_region
      %139 = dma.done [#allocation15], 512
    $region89: #{tpu_custom_call.1} parent=1 // pred_fallthru
      _
    // Predicated region
    $region90: #{tpu_custom_call.1} parent=1 // pred_check
      _
    $region91: #{tpu_custom_call.1} parent=1 // pred_check_branch
      %141 = sbr.rel (0) target = $region93
    $region92: #{tpu_custom_call.1} parent=1 // pred_region
      %142 = dma.done [#allocation18], 1024
    $region93: #{tpu_custom_call.1} parent=1 // pred_fallthru
      _
    // Predicated region
    $region94: #{tpu_custom_call.1} parent=1 // pred_check
      _
    $region95: #{tpu_custom_call.1} parent=1 // pred_check_branch
      %144 = sbr.rel (0) target = $region97
    $region96: #{tpu_custom_call.1} parent=1 // pred_region
      %145 = dma.done [#allocation18], 512
    $region97: #{tpu_custom_call.1} parent=1 // pred_fallthru
      _
    %v146 = vld [vmem:[%s0] sm:$0xff]
    %v147 = vld [vmem:[%s0 + $0x8] sm:$0xff]
    %v148 = vld [vmem:[%s0 + $0x10] sm:$0xff]
    %v149 = vld [vmem:[%s0 + $0x18] sm:$0xff]
    %v150 = vld [vmem:[%s0 + $0x20] sm:$0xff]
    %v151 = vld [vmem:[%s0 + $0x28] sm:$0xff]
    %v152 = vld [vmem:[%s0 + $0x30] sm:$0xff]
    %v153 = vld [vmem:[%s0 + $0x38] sm:$0xff]
    %v154 = vld [vmem:[%s1] sm:$0xff]
    %v155 = vld [vmem:[%s3] sm:$0x1]
    %v157 = vlaneseq
    %v158 = vshrl.u32 %v157, 7
    %v159 = vsub.s32 0, %v158
    %v160 = vrot.slane %v155, %v159
    %vm162 = vcmask 64512
    %v164 = vsel %vm162, %v146, 0
    %v167 = vsel %vm162, %v147, 0
    %v170 = vsel %vm162, %v148, 0
    %v173 = vsel %vm162, %v149, 0
    %v176 = vsel %vm162, %v150, 0
    %v179 = vsel %vm162, %v151, 0
    %v182 = vsel %vm162, %v152, 0
    %v185 = vsel %vm162, %v153, 0
    %187 = vmatprep.subr.mxu0 0.0
    %188 = vmatpush1.msra.mxu0 %v154
    %189 = vmatprep.subr.mxu0 0.0
    %190 = vmatpush1.msra.mxu0 0.0
    %191 = vmatprep.subr.mxu0 0.0
    %192 = vmatpush1.msra.mxu0 0.0
    %193 = vmatprep.subr.mxu0 0.0
    %194 = vmatpush1.msra.mxu0 0.0
    %195 = vmatprep.subr.mxu0 0.0
    %196 = vmatpush1.msra.mxu0 0.0
    %197 = vmatprep.subr.mxu0 0.0
    %198 = vmatpush1.msra.mxu0 0.0
    %199 = vmatprep.subr.mxu0 0.0
    %200 = vmatpush1.msra.mxu0 0.0
    %201 = vmatprep.subr.mxu0 0.0
    %202 = vmatpush1.msra.mxu0 0.0
    %203 = vmatprep.subr.mxu0 0.0
    %204 = vmatpush1.msra.mxu0 0.0
    %205 = vmatprep.subr.mxu0 0.0
    %206 = vmatpush1.msra.mxu0 0.0
    %207 = vmatprep.subr.mxu0 0.0
    %208 = vmatpush1.msra.mxu0 0.0
    %209 = vmatprep.subr.mxu0 0.0
    %210 = vmatpush1.msra.mxu0 0.0
    %211 = vmatprep.subr.mxu0 0.0
    %212 = vmatpush1.msra.mxu0 0.0
    %213 = vmatprep.subr.mxu0 0.0
    %214 = vmatpush1.msra.mxu0 0.0
    %215 = vmatprep.subr.mxu0 0.0
    %216 = vmatpush1.msra.mxu0 0.0
    %217 = vmatprep.subr.mxu0 0.0
    %218 = vmatpush1.msra.mxu0 0.0
    %219 = vmatprep.subr.mxu0 0.0
    %220 = vmatpush1.msra.mxu0 0.0
    %221 = vmatprep.subr.mxu0 0.0
    %222 = vmatpush1.msra.mxu0 0.0
    %223 = vmatprep.subr.mxu0 0.0
    %224 = vmatpush1.msra.mxu0 0.0
    %225 = vmatprep.subr.mxu0 0.0
    %226 = vmatpush1.msra.mxu0 0.0
    %227 = vmatprep.subr.mxu0 0.0
    %228 = vmatpush1.msra.mxu0 0.0
    %229 = vmatprep.subr.mxu0 0.0
    %230 = vmatpush1.msra.mxu0 0.0
    %231 = vmatprep.subr.mxu0 0.0
    %232 = vmatpush1.msra.mxu0 0.0
    %233 = vmatprep.subr.mxu0 0.0
    %234 = vmatpush1.msra.mxu0 0.0
    %235 = vmatprep.subr.mxu0 0.0
    %236 = vmatpush1.msra.mxu0 0.0
    %237 = vmatprep.subr.mxu0 0.0
    %238 = vmatpush1.msra.mxu0 0.0
    %239 = vmatprep.subr.mxu0 0.0
    %240 = vmatpush1.msra.mxu0 0.0
    %241 = vmatprep.subr.mxu0 0.0
    %242 = vmatpush1.msra.mxu0 0.0
    %243 = vmatprep.subr.mxu0 0.0
    %244 = vmatpush1.msra.mxu0 0.0
    %245 = vmatprep.subr.mxu0 0.0
    %246 = vmatpush1.msra.mxu0 0.0
    %247 = vmatprep.subr.mxu0 0.0
    %248 = vmatpush1.msra.mxu0 0.0
    %249 = vmatprep.subr.mxu0 0.0
    %250 = vmatpush1.msra.mxu0 0.0
    %251 = vmatprep.mubr.f32.mxu0 0.0
    %252 = vmatmul.mubr.f32.gmra.mrb[0].mxu0 %v164
    %v253 = vpop.f32.mrb[0].mxu0
    %v254 = vadd.f32 %v160, %v253
    %v255 = vpop.f32.mrb[0].mxu0
    %256 = vmatprep.mubr.f32.mxu0 0.0
    %257 = vmatmul.mubr.f32.gmra.mrb[0].mxu0 %v167
    %v258 = vpop.f32.mrb[0].mxu0
    %v259 = vadd.f32 %v160, %v258
    %v260 = vpop.f32.mrb[0].mxu0
    %261 = vmatprep.mubr.f32.mxu0 0.0
    %262 = vmatmul.mubr.f32.gmra.mrb[0].mxu0 %v170
    %v263 = vpop.f32.mrb[0].mxu0
    %v264 = vadd.f32 %v160, %v263
    %v265 = vpop.f32.mrb[0].mxu0
    %266 = vmatprep.mubr.f32.mxu0 0.0
    %267 = vmatmul.mubr.f32.gmra.mrb[0].mxu0 %v173
    %v268 = vpop.f32.mrb[0].mxu0
    %v269 = vadd.f32 %v160, %v268
    %v270 = vpop.f32.mrb[0].mxu0
    %271 = vmatprep.mubr.f32.mxu0 0.0
    %272 = vmatmul.mubr.f32.gmra.mrb[0].mxu0 %v176
    %v273 = vpop.f32.mrb[0].mxu0
    %v274 = vadd.f32 %v160, %v273
    %v275 = vpop.f32.mrb[0].mxu0
    %276 = vmatprep.mubr.f32.mxu0 0.0
    %277 = vmatmul.mubr.f32.gmra.mrb[0].mxu0 %v179
    %v278 = vpop.f32.mrb[0].mxu0
    %v279 = vadd.f32 %v160, %v278
    %v280 = vpop.f32.mrb[0].mxu0
    %281 = vmatprep.mubr.f32.mxu0 0.0
    %282 = vmatmul.mubr.f32.gmra.mrb[0].mxu0 %v182
    %v283 = vpop.f32.mrb[0].mxu0
    %v284 = vadd.f32 %v160, %v283
    %v285 = vpop.f32.mrb[0].mxu0
    %286 = vmatprep.mubr.f32.mxu0 0.0
    %287 = vmatmul.mubr.f32.gmra.mrb[0].mxu0 %v185
    %v288 = vpop.f32.mrb[0].mxu0
    %v289 = vadd.f32 %v160, %v288
    %v290 = vpop.f32.mrb[0].mxu0
    %291 = vdwg.mxu0
    %vm292 = vcmask 785408
    %293 = vst.msk [vmem:[#allocation2] sm:$0xff] %vm292, %v254
    %294 = vst.msk [vmem:[#allocation2 + $0x8] sm:$0xff] %vm292, %v259
    %295 = vst.msk [vmem:[#allocation2 + $0x10] sm:$0xff] %vm292, %v264
    %296 = vst.msk [vmem:[#allocation2 + $0x18] sm:$0xff] %vm292, %v269
    %297 = vst.msk [vmem:[#allocation2 + $0x20] sm:$0xff] %vm292, %v274
    %298 = vst.msk [vmem:[#allocation2 + $0x28] sm:$0xff] %vm292, %v279
    %299 = vst.msk [vmem:[#allocation2 + $0x30] sm:$0xff] %vm292, %v284
    %300 = vst.msk [vmem:[#allocation2 + $0x38] sm:$0xff] %vm292, %v289
    %v301 = vld [vmem:[#allocation8] sm:$0xff]
    %v302 = vld [vmem:[#allocation13] sm:$0x1]
    %v304 = vlaneseq
    %v305 = vshrl.u32 %v304, 7
    %v306 = vsub.s32 0, %v305
    %v307 = vrot.slane %v302, %v306
    %309 = vmatprep.subr.mxu0 0.0
    %310 = vmatpush1.msra.mxu0 %v301
    %311 = vmatprep.subr.mxu0 0.0
    %312 = vmatpush1.msra.mxu0 0.0
    %313 = vmatprep.subr.mxu0 0.0
    %314 = vmatpush1.msra.mxu0 0.0
    %315 = vmatprep.subr.mxu0 0.0
    %316 = vmatpush1.msra.mxu0 0.0
    %317 = vmatprep.subr.mxu0 0.0
    %318 = vmatpush1.msra.mxu0 0.0
    %319 = vmatprep.subr.mxu0 0.0
    %320 = vmatpush1.msra.mxu0 0.0
    %321 = vmatprep.subr.mxu0 0.0
    %322 = vmatpush1.msra.mxu0 0.0
    %323 = vmatprep.subr.mxu0 0.0
    %324 = vmatpush1.msra.mxu0 0.0
    %325 = vmatprep.subr.mxu0 0.0
    %326 = vmatpush1.msra.mxu0 0.0
    %327 = vmatprep.subr.mxu0 0.0
    %328 = vmatpush1.msra.mxu0 0.0
    %329 = vmatprep.subr.mxu0 0.0
    %330 = vmatpush1.msra.mxu0 0.0
    %331 = vmatprep.subr.mxu0 0.0
    %332 = vmatpush1.msra.mxu0 0.0
    %333 = vmatprep.subr.mxu0 0.0
    %334 = vmatpush1.msra.mxu0 0.0
    %335 = vmatprep.subr.mxu0 0.0
    %336 = vmatpush1.msra.mxu0 0.0
    %337 = vmatprep.subr.mxu0 0.0
    %338 = vmatpush1.msra.mxu0 0.0
    %339 = vmatprep.subr.mxu0 0.0
    %340 = vmatpush1.msra.mxu0 0.0
    %341 = vmatprep.subr.mxu0 0.0
    %342 = vmatpush1.msra.mxu0 0.0
    %343 = vmatprep.subr.mxu0 0.0
    %344 = vmatpush1.msra.mxu0 0.0
    %345 = vmatprep.subr.mxu0 0.0
    %346 = vmatpush1.msra.mxu0 0.0
    %347 = vmatprep.subr.mxu0 0.0
    %348 = vmatpush1.msra.mxu0 0.0
    %349 = vmatprep.subr.mxu0 0.0
    %350 = vmatpush1.msra.mxu0 0.0
    %351 = vmatprep.subr.mxu0 0.0
    %352 = vmatpush1.msra.mxu0 0.0
    %353 = vmatprep.subr.mxu0 0.0
    %354 = vmatpush1.msra.mxu0 0.0
    %355 = vmatprep.subr.mxu0 0.0
    %356 = vmatpush1.msra.mxu0 0.0
    %357 = vmatprep.subr.mxu0 0.0
    %358 = vmatpush1.msra.mxu0 0.0
    %359 = vmatprep.subr.mxu0 0.0
    %360 = vmatpush1.msra.mxu0 0.0
    %361 = vmatprep.subr.mxu0 0.0
    %362 = vmatpush1.msra.mxu0 0.0
    %363 = vmatprep.subr.mxu0 0.0
    %364 = vmatpush1.msra.mxu0 0.0
    %365 = vmatprep.subr.mxu0 0.0
    %366 = vmatpush1.msra.mxu0 0.0
    %367 = vmatprep.subr.mxu0 0.0
    %368 = vmatpush1.msra.mxu0 0.0
    %369 = vmatprep.subr.mxu0 0.0
    %370 = vmatpush1.msra.mxu0 0.0
    %371 = vmatprep.subr.mxu0 0.0
    %372 = vmatpush1.msra.mxu0 0.0
    %373 = vmatprep.mubr.f32.mxu0 0.0
    %374 = vmatmul.mubr.f32.gmra.mrb[0].mxu0 %v164
    %v375 = vpop.f32.mrb[0].mxu0
    %v376 = vadd.f32 %v307, %v375
    %v377 = vpop.f32.mrb[0].mxu0
    %378 = vmatprep.mubr.f32.mxu0 0.0
    %379 = vmatmul.mubr.f32.gmra.mrb[0].mxu0 %v167
    %v380 = vpop.f32.mrb[0].mxu0
    %v381 = vadd.f32 %v307, %v380
    %v382 = vpop.f32.mrb[0].mxu0
    %383 = vmatprep.mubr.f32.mxu0 0.0
    %384 = vmatmul.mubr.f32.gmra.mrb[0].mxu0 %v170
    %v385 = vpop.f32.mrb[0].mxu0
    %v386 = vadd.f32 %v307, %v385
    %v387 = vpop.f32.mrb[0].mxu0
    %388 = vmatprep.mubr.f32.mxu0 0.0
    %389 = vmatmul.mubr.f32.gmra.mrb[0].mxu0 %v173
    %v390 = vpop.f32.mrb[0].mxu0
    %v391 = vadd.f32 %v307, %v390
    %v392 = vpop.f32.mrb[0].mxu0
    %393 = vmatprep.mubr.f32.mxu0 0.0
    %394 = vmatmul.mubr.f32.gmra.mrb[0].mxu0 %v176
    %v395 = vpop.f32.mrb[0].mxu0
    %v396 = vadd.f32 %v307, %v395
    %v397 = vpop.f32.mrb[0].mxu0
    %398 = vmatprep.mubr.f32.mxu0 0.0
    %399 = vmatmul.mubr.f32.gmra.mrb[0].mxu0 %v179
    %v400 = vpop.f32.mrb[0].mxu0
    %v401 = vadd.f32 %v307, %v400
    %v402 = vpop.f32.mrb[0].mxu0
    %403 = vmatprep.mubr.f32.mxu0 0.0
    %404 = vmatmul.mubr.f32.gmra.mrb[0].mxu0 %v182
    %v405 = vpop.f32.mrb[0].mxu0
    %v406 = vadd.f32 %v307, %v405
    %v407 = vpop.f32.mrb[0].mxu0
    %408 = vmatprep.mubr.f32.mxu0 0.0
    %409 = vmatmul.mubr.f32.gmra.mrb[0].mxu0 %v185
    %v410 = vpop.f32.mrb[0].mxu0
    %v411 = vadd.f32 %v307, %v410
    %v412 = vpop.f32.mrb[0].mxu0
    %413 = vdwg.mxu0
    %414 = vst.msk [vmem:[#allocation3] sm:$0xff] %vm292, %v376
    %415 = vst.msk [vmem:[#allocation3 + $0x8] sm:$0xff] %vm292, %v381
    %416 = vst.msk [vmem:[#allocation3 + $0x10] sm:$0xff] %vm292, %v386
    %417 = vst.msk [vmem:[#allocation3 + $0x18] sm:$0xff] %vm292, %v391
    %418 = vst.msk [vmem:[#allocation3 + $0x20] sm:$0xff] %vm292, %v396
    %419 = vst.msk [vmem:[#allocation3 + $0x28] sm:$0xff] %vm292, %v401
    %420 = vst.msk [vmem:[#allocation3 + $0x30] sm:$0xff] %vm292, %v406
    %421 = vst.msk [vmem:[#allocation3 + $0x38] sm:$0xff] %vm292, %v411
    %v422 = vld [vmem:[%s2] sm:$0xff]
    %v423 = vld [vmem:[%s2 + $0x8] sm:$0xff]
    %v424 = vld [vmem:[%s2 + $0x10] sm:$0xff]
    %v425 = vld [vmem:[%s2 + $0x18] sm:$0xff]
    %v426 = vld [vmem:[#allocation11] sm:$0xff]
    %v427 = vld [vmem:[#allocation11 + $0x8] sm:$0xff]
    %v428 = vld [vmem:[#allocation11 + $0x10] sm:$0xff]
    %v429 = vld [vmem:[#allocation11 + $0x18] sm:$0xff]
    %v430 = vld [vmem:[%s4] sm:$0x1]
    %v432 = vlaneseq
    %v433 = vshrl.u32 %v432, 7
    %v434 = vsub.s32 0, %v433
    %v435 = vrot.slane %v430, %v434
    %v437 = vld [vmem:[#allocation14] sm:$0x1]
    %v439 = vlaneseq
    %v440 = vshrl.u32 %v439, 7
    %v441 = vsub.s32 0, %v440
    %v442 = vrot.slane %v437, %v441
    %v444 = vld [vmem:[#allocation2] sm:$0xff]
    %vm445 = vcmask 261120
    %v447 = vsel %vm445, 0.0, 0
    %449 = vmatprep.subr.mxu0 0.0
    %450 = vmatpush1.msra.mxu0 %v422
    %451 = vmatprep.subr.mxu0 0.0
    %452 = vmatpush1.msra.mxu0 %v423
    %453 = vmatprep.subr.mxu0 0.0
    %454 = vmatpush1.msra.mxu0 %v424
    %455 = vmatprep.subr.mxu0 0.0
    %456 = vmatpush1.msra.mxu0 %v425
    %457 = vmatprep.subr.mxu0 0.0
    %458 = vmatpush1.msra.mxu0 0.0
    %459 = vmatprep.subr.mxu0 0.0
    %460 = vmatpush1.msra.mxu0 0.0
    %461 = vmatprep.subr.mxu0 0.0
    %462 = vmatpush1.msra.mxu0 0.0
    %463 = vmatprep.subr.mxu0 0.0
    %464 = vmatpush1.msra.mxu0 0.0
    %465 = vmatprep.subr.mxu0 0.0
    %466 = vmatpush1.msra.mxu0 0.0
    %467 = vmatprep.subr.mxu0 0.0
    %468 = vmatpush1.msra.mxu0 0.0
    %469 = vmatprep.subr.mxu0 0.0
    %470 = vmatpush1.msra.mxu0 0.0
    %471 = vmatprep.subr.mxu0 0.0
    %472 = vmatpush1.msra.mxu0 0.0
    %473 = vmatprep.subr.mxu0 0.0
    %474 = vmatpush1.msra.mxu0 0.0
    %475 = vmatprep.subr.mxu0 0.0
    %476 = vmatpush1.msra.mxu0 0.0
    %477 = vmatprep.subr.mxu0 0.0
    %478 = vmatpush1.msra.mxu0 0.0
    %479 = vmatprep.subr.mxu0 0.0
    %480 = vmatpush1.msra.mxu0 0.0
    %481 = vmatprep.subr.mxu0 0.0
    %482 = vmatpush1.msra.mxu0 0.0
    %483 = vmatprep.subr.mxu0 0.0
    %484 = vmatpush1.msra.mxu0 0.0
    %485 = vmatprep.subr.mxu0 0.0
    %486 = vmatpush1.msra.mxu0 0.0
    %487 = vmatprep.subr.mxu0 0.0
    %488 = vmatpush1.msra.mxu0 0.0
    %489 = vmatprep.subr.mxu0 0.0
    %490 = vmatpush1.msra.mxu0 0.0
    %491 = vmatprep.subr.mxu0 0.0
    %492 = vmatpush1.msra.mxu0 0.0
    %493 = vmatprep.subr.mxu0 0.0
    %494 = vmatpush1.msra.mxu0 0.0
    %495 = vmatprep.subr.mxu0 0.0
    %496 = vmatpush1.msra.mxu0 0.0
    %497 = vmatprep.subr.mxu0 0.0
    %498 = vmatpush1.msra.mxu0 0.0
    %499 = vmatprep.subr.mxu0 0.0
    %500 = vmatpush1.msra.mxu0 0.0
    %501 = vmatprep.subr.mxu0 0.0
    %502 = vmatpush1.msra.mxu0 0.0
    %503 = vmatprep.subr.mxu0 0.0
    %504 = vmatpush1.msra.mxu0 0.0
    %505 = vmatprep.subr.mxu0 0.0
    %506 = vmatpush1.msra.mxu0 0.0
    %507 = vmatprep.subr.mxu0 0.0
    %508 = vmatpush1.msra.mxu0 0.0
    %509 = vmatprep.subr.mxu0 0.0
    %510 = vmatpush1.msra.mxu0 0.0
    %511 = vmatprep.subr.mxu0 0.0
    %512 = vmatpush1.msra.mxu0 0.0
    %513 = vmatprep.mubr.f32.mxu0 0.0
    %514 = vmatmul.mubr.f32.gmra.mrb[0].mxu0 %v447
    %v515 = vpop.f32.mrb[0].mxu0
    %v516 = vadd.f32 %v435, %v515
    %v517 = vpop.f32.mrb[0].mxu0
    %518 = vdwg.mxu0
    %v519 = vadd.f32 %v444, %v516
    %v520 = vxor.u32 %v519, 2147483648
    %v521 = vmul.f32 %v520, 1.442695
    %v522 = vpow.pop %v521
    %v523 = vadd.f32 %v522, 1.0
    %v524 = vrcp.pop %v523
    %v525 = vmul.f32 1.0, %v524
    %527 = vrot.lane.b32.xlu0 %v516, 64
    %v528 = vpop.permute.xlu0 %527
    %v530 = vmul.f32 %v525, %v528
    %532 = vrot.lane.b32.xlu0 %v530, 64
    %v533 = vpop.permute.xlu0 %532
    %v535 = vadd.f32 %v444, %v533
    %v536 = vtanh.pop %v535
    %v537 = vsub.f32 1.0, %v525
    %539 = vrot.lane.b32.xlu0 %v536, 96
    %v540 = vpop.permute.xlu0 %539
    %v542 = vmul.f32 %v537, %v540
    %v543 = vmul.f32 %v525, 0.0
    %v544 = vadd.f32 %v542, %v543
    %v545 = vld [vmem:[#allocation3 + $0x38] sm:$0xff]
    %546 = vmatprep.subr.mxu0 0.0
    %547 = vmatpush1.msra.mxu0 %v426
    %548 = vmatprep.subr.mxu0 0.0
    %549 = vmatpush1.msra.mxu0 %v427
    %550 = vmatprep.subr.mxu0 0.0
    %551 = vmatpush1.msra.mxu0 %v428
    %552 = vmatprep.subr.mxu0 0.0
    %553 = vmatpush1.msra.mxu0 %v429
    %554 = vmatprep.subr.mxu0 0.0
    %555 = vmatpush1.msra.mxu0 0.0
    %556 = vmatprep.subr.mxu0 0.0
    %557 = vmatpush1.msra.mxu0 0.0
    %558 = vmatprep.subr.mxu0 0.0
    %559 = vmatpush1.msra.mxu0 0.0
    %560 = vmatprep.subr.mxu0 0.0
    %561 = vmatpush1.msra.mxu0 0.0
    %562 = vmatprep.subr.mxu0 0.0
    %563 = vmatpush1.msra.mxu0 0.0
    %564 = vmatprep.subr.mxu0 0.0
    %565 = vmatpush1.msra.mxu0 0.0
    %566 = vmatprep.subr.mxu0 0.0
    %567 = vmatpush1.msra.mxu0 0.0
    %568 = vmatprep.subr.mxu0 0.0
    %569 = vmatpush1.msra.mxu0 0.0
    %570 = vmatprep.subr.mxu0 0.0
    %571 = vmatpush1.msra.mxu0 0.0
    %572 = vmatprep.subr.mxu0 0.0
    %573 = vmatpush1.msra.mxu0 0.0
    %574 = vmatprep.subr.mxu0 0.0
    %575 = vmatpush1.msra.mxu0 0.0
    %576 = vmatprep.subr.mxu0 0.0
    %577 = vmatpush1.msra.mxu0 0.0
    %578 = vmatprep.subr.mxu0 0.0
    %579 = vmatpush1.msra.mxu0 0.0
    %580 = vmatprep.subr.mxu0 0.0
    %581 = vmatpush1.msra.mxu0 0.0
    %582 = vmatprep.subr.mxu0 0.0
    %583 = vmatpush1.msra.mxu0 0.0
    %584 = vmatprep.subr.mxu0 0.0
    %585 = vmatpush1.msra.mxu0 0.0
    %586 = vmatprep.subr.mxu0 0.0
    %587 = vmatpush1.msra.mxu0 0.0
    %588 = vmatprep.subr.mxu0 0.0
    %589 = vmatpush1.msra.mxu0 0.0
    %590 = vmatprep.subr.mxu0 0.0
    %591 = vmatpush1.msra.mxu0 0.0
    %592 = vmatprep.subr.mxu0 0.0
    %593 = vmatpush1.msra.mxu0 0.0
    %594 = vmatprep.subr.mxu0 0.0
    %595 = vmatpush1.msra.mxu0 0.0
    %596 = vmatprep.subr.mxu0 0.0
    %597 = vmatpush1.msra.mxu0 0.0
    %598 = vmatprep.subr.mxu0 0.0
    %599 = vmatpush1.msra.mxu0 0.0
    %600 = vmatprep.subr.mxu0 0.0
    %601 = vmatpush1.msra.mxu0 0.0
    %602 = vmatprep.subr.mxu0 0.0
    %603 = vmatpush1.msra.mxu0 0.0
    %604 = vmatprep.subr.mxu0 0.0
    %605 = vmatpush1.msra.mxu0 0.0
    %606 = vmatprep.subr.mxu0 0.0
    %607 = vmatpush1.msra.mxu0 0.0
    %608 = vmatprep.subr.mxu0 0.0
    %609 = vmatpush1.msra.mxu0 0.0
    %610 = vmatprep.mubr.f32.mxu0 0.0
    %611 = vmatmul.mubr.f32.gmra.mrb[0].mxu0 %v447
    %v612 = vpop.f32.mrb[0].mxu0
    %v613 = vadd.f32 %v442, %v612
    %v614 = vpop.f32.mrb[0].mxu0
    %615 = vdwg.mxu0
    %v616 = vadd.f32 %v545, %v613
    %v617 = vxor.u32 %v616, 2147483648
    %v618 = vmul.f32 %v617, 1.442695
    %v619 = vpow.pop %v618
    %v620 = vadd.f32 %v619, 1.0
    %v621 = vrcp.pop %v620
    %v622 = vmul.f32 1.0, %v621
    %624 = vrot.lane.b32.xlu0 %v613, 64
    %v625 = vpop.permute.xlu0 %624
    %v627 = vmul.f32 %v622, %v625
    %629 = vrot.lane.b32.xlu0 %v627, 64
    %v630 = vpop.permute.xlu0 %629
    %v632 = vadd.f32 %v545, %v630
    %v633 = vtanh.pop %v632
    %v634 = vsub.f32 1.0, %v622
    %636 = vrot.lane.b32.xlu0 %v633, 96
    %v637 = vpop.permute.xlu0 %636
    %v639 = vmul.f32 %v634, %v637
    %v640 = vmul.f32 %v622, 0.0
    %v641 = vadd.f32 %v639, %v640
    %643 = vrot.lane.b32.xlu0 %v544, 96
    %v644 = vpop.permute.xlu0 %643
    %646 = vst.msk [vmem:[#allocation4] sm:$0xff] %vm445, %v644
    %648 = vrot.lane.b32.xlu0 %v641, 96
    %v649 = vpop.permute.xlu0 %648
    %651 = vst.msk [vmem:[#allocation5 + $0x38] sm:$0xff] %vm445, %v649
    %v652 = vld [vmem:[#allocation2 + $0x8] sm:$0xff]
    %v653 = vsel %vm445, %v644, 0
    %655 = vmatprep.subr.mxu0 0.0
    %656 = vmatpush1.msra.mxu0 %v422
    %657 = vmatprep.subr.mxu0 0.0
    %658 = vmatpush1.msra.mxu0 %v423
    %659 = vmatprep.subr.mxu0 0.0
    %660 = vmatpush1.msra.mxu0 %v424
    %661 = vmatprep.subr.mxu0 0.0
    %662 = vmatpush1.msra.mxu0 %v425
    %663 = vmatprep.subr.mxu0 0.0
    %664 = vmatpush1.msra.mxu0 0.0
    %665 = vmatprep.subr.mxu0 0.0
    %666 = vmatpush1.msra.mxu0 0.0
    %667 = vmatprep.subr.mxu0 0.0
    %668 = vmatpush1.msra.mxu0 0.0
    %669 = vmatprep.subr.mxu0 0.0
    %670 = vmatpush1.msra.mxu0 0.0
    %671 = vmatprep.subr.mxu0 0.0
    %672 = vmatpush1.msra.mxu0 0.0
    %673 = vmatprep.subr.mxu0 0.0
    %674 = vmatpush1.msra.mxu0 0.0
    %675 = vmatprep.subr.mxu0 0.0
    %676 = vmatpush1.msra.mxu0 0.0
    %677 = vmatprep.subr.mxu0 0.0
    %678 = vmatpush1.msra.mxu0 0.0
    %679 = vmatprep.subr.mxu0 0.0
    %680 = vmatpush1.msra.mxu0 0.0
    %681 = vmatprep.subr.mxu0 0.0
    %682 = vmatpush1.msra.mxu0 0.0
    %683 = vmatprep.subr.mxu0 0.0
    %684 = vmatpush1.msra.mxu0 0.0
    %685 = vmatprep.subr.mxu0 0.0
    %686 = vmatpush1.msra.mxu0 0.0
    %687 = vmatprep.subr.mxu0 0.0
    %688 = vmatpush1.msra.mxu0 0.0
    %689 = vmatprep.subr.mxu0 0.0
    %690 = vmatpush1.msra.mxu0 0.0
    %691 = vmatprep.subr.mxu0 0.0
    %692 = vmatpush1.msra.mxu0 0.0
    %693 = vmatprep.subr.mxu0 0.0
    %694 = vmatpush1.msra.mxu0 0.0
    %695 = vmatprep.subr.mxu0 0.0
    %696 = vmatpush1.msra.mxu0 0.0
    %697 = vmatprep.subr.mxu0 0.0
    %698 = vmatpush1.msra.mxu0 0.0
    %699 = vmatprep.subr.mxu0 0.0
    %700 = vmatpush1.msra.mxu0 0.0
    %701 = vmatprep.subr.mxu0 0.0
    %702 = vmatpush1.msra.mxu0 0.0
    %703 = vmatprep.subr.mxu0 0.0
    %704 = vmatpush1.msra.mxu0 0.0
    %705 = vmatprep.subr.mxu0 0.0
    %706 = vmatpush1.msra.mxu0 0.0
    %707 = vmatprep.subr.mxu0 0.0
    %708 = vmatpush1.msra.mxu0 0.0
    %709 = vmatprep.subr.mxu0 0.0
    %710 = vmatpush1.msra.mxu0 0.0
    %711 = vmatprep.subr.mxu0 0.0
    %712 = vmatpush1.msra.mxu0 0.0
    %713 = vmatprep.subr.mxu0 0.0
    %714 = vmatpush1.msra.mxu0 0.0
    %715 = vmatprep.subr.mxu0 0.0
    %716 = vmatpush1.msra.mxu0 0.0
    %717 = vmatprep.subr.mxu0 0.0
    %718 = vmatpush1.msra.mxu0 0.0
    %719 = vmatprep.mubr.f32.mxu0 0.0
    %720 = vmatmul.mubr.f32.gmra.mrb[0].mxu0 %v653
    %v721 = vpop.f32.mrb[0].mxu0
    %v722 = vadd.f32 %v435, %v721
    %v723 = vpop.f32.mrb[0].mxu0
    %724 = vdwg.mxu0
    %v725 = vadd.f32 %v652, %v722
    %v726 = vxor.u32 %v725, 2147483648
    %v727 = vmul.f32 %v726, 1.442695
    %v728 = vpow.pop %v727
    %v729 = vadd.f32 %v728, 1.0
    %v730 = vrcp.pop %v729
    %v731 = vmul.f32 1.0, %v730
    %733 = vrot.lane.b32.xlu0 %v722, 64
    %v734 = vpop.permute.xlu0 %733
    %v736 = vmul.f32 %v731, %v734
    %738 = vrot.lane.b32.xlu0 %v736, 64
    %v739 = vpop.permute.xlu0 %738
    %v741 = vadd.f32 %v652, %v739
    %v742 = vtanh.pop %v741
    %v743 = vsub.f32 1.0, %v731
    %745 = vrot.lane.b32.xlu0 %v742, 96
    %v746 = vpop.permute.xlu0 %745
    %v748 = vmul.f32 %v743, %v746
    %v749 = vmul.f32 %v731, %v544
    %v750 = vadd.f32 %v748, %v749
    %v751 = vld [vmem:[#allocation3 + $0x30] sm:$0xff]
    %v752 = vsel %vm445, %v649, 0
    %754 = vmatprep.subr.mxu0 0.0
    %755 = vmatpush1.msra.mxu0 %v426
    %756 = vmatprep.subr.mxu0 0.0
    %757 = vmatpush1.msra.mxu0 %v427
    %758 = vmatprep.subr.mxu0 0.0
    %759 = vmatpush1.msra.mxu0 %v428
    %760 = vmatprep.subr.mxu0 0.0
    %761 = vmatpush1.msra.mxu0 %v429
    %762 = vmatprep.subr.mxu0 0.0
    %763 = vmatpush1.msra.mxu0 0.0
    %764 = vmatprep.subr.mxu0 0.0
    %765 = vmatpush1.msra.mxu0 0.0
    %766 = vmatprep.subr.mxu0 0.0
    %767 = vmatpush1.msra.mxu0 0.0
    %768 = vmatprep.subr.mxu0 0.0
    %769 = vmatpush1.msra.mxu0 0.0
    %770 = vmatprep.subr.mxu0 0.0
    %771 = vmatpush1.msra.mxu0 0.0
    %772 = vmatprep.subr.mxu0 0.0
    %773 = vmatpush1.msra.mxu0 0.0
    %774 = vmatprep.subr.mxu0 0.0
    %775 = vmatpush1.msra.mxu0 0.0
    %776 = vmatprep.subr.mxu0 0.0
    %777 = vmatpush1.msra.mxu0 0.0
    %778 = vmatprep.subr.mxu0 0.0
    %779 = vmatpush1.msra.mxu0 0.0
    %780 = vmatprep.subr.mxu0 0.0
    %781 = vmatpush1.msra.mxu0 0.0
    %782 = vmatprep.subr.mxu0 0.0
    %783 = vmatpush1.msra.mxu0 0.0
    %784 = vmatprep.subr.mxu0 0.0
    %785 = vmatpush1.msra.mxu0 0.0
    %786 = vmatprep.subr.mxu0 0.0
    %787 = vmatpush1.msra.mxu0 0.0
    %788 = vmatprep.subr.mxu0 0.0
    %789 = vmatpush1.msra.mxu0 0.0
    %790 = vmatprep.subr.mxu0 0.0
    %791 = vmatpush1.msra.mxu0 0.0
    %792 = vmatprep.subr.mxu0 0.0
    %793 = vmatpush1.msra.mxu0 0.0
    %794 = vmatprep.subr.mxu0 0.0
    %795 = vmatpush1.msra.mxu0 0.0
    %796 = vmatprep.subr.mxu0 0.0
    %797 = vmatpush1.msra.mxu0 0.0
    %798 = vmatprep.subr.mxu0 0.0
    %799 = vmatpush1.msra.mxu0 0.0
    %800 = vmatprep.subr.mxu0 0.0
    %801 = vmatpush1.msra.mxu0 0.0
    %802 = vmatprep.subr.mxu0 0.0
    %803 = vmatpush1.msra.mxu0 0.0
    %804 = vmatprep.subr.mxu0 0.0
    %805 = vmatpush1.msra.mxu0 0.0
    %806 = vmatprep.subr.mxu0 0.0
    %807 = vmatpush1.msra.mxu0 0.0
    %808 = vmatprep.subr.mxu0 0.0
    %809 = vmatpush1.msra.mxu0 0.0
    %810 = vmatprep.subr.mxu0 0.0
    %811 = vmatpush1.msra.mxu0 0.0
    %812 = vmatprep.subr.mxu0 0.0
    %813 = vmatpush1.msra.mxu0 0.0
    %814 = vmatprep.subr.mxu0 0.0
    %815 = vmatpush1.msra.mxu0 0.0
    %816 = vmatprep.subr.mxu0 0.0
    %817 = vmatpush1.msra.mxu0 0.0
    %818 = vmatprep.mubr.f32.mxu0 0.0
    %819 = vmatmul.mubr.f32.gmra.mrb[0].mxu0 %v752
    %v820 = vpop.f32.mrb[0].mxu0
    %v821 = vadd.f32 %v442, %v820
    %v822 = vpop.f32.mrb[0].mxu0
    %823 = vdwg.mxu0
    %v824 = vadd.f32 %v751, %v821
    %v825 = vxor.u32 %v824, 2147483648
    %v826 = vmul.f32 %v825, 1.442695
    %v827 = vpow.pop %v826
    %v828 = vadd.f32 %v827, 1.0
    %v829 = vrcp.pop %v828
    %v830 = vmul.f32 1.0, %v829
    %832 = vrot.lane.b32.xlu0 %v821, 64
    %v833 = vpop.permute.xlu0 %832
    %v835 = vmul.f32 %v830, %v833
    %837 = vrot.lane.b32.xlu0 %v835, 64
    %v838 = vpop.permute.xlu0 %837
    %v840 = vadd.f32 %v751, %v838
    %v841 = vtanh.pop %v840
    %v842 = vsub.f32 1.0, %v830
    %844 = vrot.lane.b32.xlu0 %v841, 96
    %v845 = vpop.permute.xlu0 %844
    %v847 = vmul.f32 %v842, %v845
    %v848 = vmul.f32 %v830, %v641
    %v849 = vadd.f32 %v847, %v848
    %851 = vrot.lane.b32.xlu0 %v750, 96
    %v852 = vpop.permute.xlu0 %851
    %854 = vst.msk [vmem:[#allocation4 + $0x8] sm:$0xff] %vm445, %v852
    %856 = vrot.lane.b32.xlu0 %v849, 96
    %v857 = vpop.permute.xlu0 %856
    %859 = vst.msk [vmem:[#allocation5 + $0x30] sm:$0xff] %vm445, %v857
    %v860 = vld [vmem:[#allocation2 + $0x10] sm:$0xff]
    %v861 = vsel %vm445, %v852, 0
    %863 = vmatprep.subr.mxu0 0.0
    %864 = vmatpush1.msra.mxu0 %v422
    %865 = vmatprep.subr.mxu0 0.0
    %866 = vmatpush1.msra.mxu0 %v423
    %867 = vmatprep.subr.mxu0 0.0
    %868 = vmatpush1.msra.mxu0 %v424
    %869 = vmatprep.subr.mxu0 0.0
    %870 = vmatpush1.msra.mxu0 %v425
    %871 = vmatprep.subr.mxu0 0.0
    %872 = vmatpush1.msra.mxu0 0.0
    %873 = vmatprep.subr.mxu0 0.0
    %874 = vmatpush1.msra.mxu0 0.0
    %875 = vmatprep.subr.mxu0 0.0
    %876 = vmatpush1.msra.mxu0 0.0
    %877 = vmatprep.subr.mxu0 0.0
    %878 = vmatpush1.msra.mxu0 0.0
    %879 = vmatprep.subr.mxu0 0.0
    %880 = vmatpush1.msra.mxu0 0.0
    %881 = vmatprep.subr.mxu0 0.0
    %882 = vmatpush1.msra.mxu0 0.0
    %883 = vmatprep.subr.mxu0 0.0
    %884 = vmatpush1.msra.mxu0 0.0
    %885 = vmatprep.subr.mxu0 0.0
    %886 = vmatpush1.msra.mxu0 0.0
    %887 = vmatprep.subr.mxu0 0.0
    %888 = vmatpush1.msra.mxu0 0.0
    %889 = vmatprep.subr.mxu0 0.0
    %890 = vmatpush1.msra.mxu0 0.0
    %891 = vmatprep.subr.mxu0 0.0
    %892 = vmatpush1.msra.mxu0 0.0
    %893 = vmatprep.subr.mxu0 0.0
    %894 = vmatpush1.msra.mxu0 0.0
    %895 = vmatprep.subr.mxu0 0.0
    %896 = vmatpush1.msra.mxu0 0.0
    %897 = vmatprep.subr.mxu0 0.0
    %898 = vmatpush1.msra.mxu0 0.0
    %899 = vmatprep.subr.mxu0 0.0
    %900 = vmatpush1.msra.mxu0 0.0
    %901 = vmatprep.subr.mxu0 0.0
    %902 = vmatpush1.msra.mxu0 0.0
    %903 = vmatprep.subr.mxu0 0.0
    %904 = vmatpush1.msra.mxu0 0.0
    %905 = vmatprep.subr.mxu0 0.0
    %906 = vmatpush1.msra.mxu0 0.0
    %907 = vmatprep.subr.mxu0 0.0
    %908 = vmatpush1.msra.mxu0 0.0
    %909 = vmatprep.subr.mxu0 0.0
    %910 = vmatpush1.msra.mxu0 0.0
    %911 = vmatprep.subr.mxu0 0.0
    %912 = vmatpush1.msra.mxu0 0.0
    %913 = vmatprep.subr.mxu0 0.0
    %914 = vmatpush1.msra.mxu0 0.0
    %915 = vmatprep.subr.mxu0 0.0
    %916 = vmatpush1.msra.mxu0 0.0
    %917 = vmatprep.subr.mxu0 0.0
    %918 = vmatpush1.msra.mxu0 0.0
    %919 = vmatprep.subr.mxu0 0.0
    %920 = vmatpush1.msra.mxu0 0.0
    %921 = vmatprep.subr.mxu0 0.0
    %922 = vmatpush1.msra.mxu0 0.0
    %923 = vmatprep.subr.mxu0 0.0
    %924 = vmatpush1.msra.mxu0 0.0
    %925 = vmatprep.subr.mxu0 0.0
    %926 = vmatpush1.msra.mxu0 0.0
    %927 = vmatprep.mubr.f32.mxu0 0.0
    %928 = vmatmul.mubr.f32.gmra.mrb[0].mxu0 %v861
    %v929 = vpop.f32.mrb[0].mxu0
    %v930 = vadd.f32 %v435, %v929
    %v931 = vpop.f32.mrb[0].mxu0
    %932 = vdwg.mxu0
    %v933 = vadd.f32 %v860, %v930
    %v934 = vxor.u32 %v933, 2147483648
    %v935 = vmul.f32 %v934, 1.442695
    %v936 = vpow.pop %v935
    %v937 = vadd.f32 %v936, 1.0
    %v938 = vrcp.pop %v937
    %v939 = vmul.f32 1.0, %v938
    %941 = vrot.lane.b32.xlu0 %v930, 64
    %v942 = vpop.permute.xlu0 %941
    %v944 = vmul.f32 %v939, %v942
    %946 = vrot.lane.b32.xlu0 %v944, 64
    %v947 = vpop.permute.xlu0 %946
    %v949 = vadd.f32 %v860, %v947
    %v950 = vtanh.pop %v949
    %v951 = vsub.f32 1.0, %v939
    %953 = vrot.lane.b32.xlu0 %v950, 96
    %v954 = vpop.permute.xlu0 %953
    %v956 = vmul.f32 %v951, %v954
    %v957 = vmul.f32 %v939, %v750
    %v958 = vadd.f32 %v956, %v957
    %v959 = vld [vmem:[#allocation3 + $0x28] sm:$0xff]
    %v960 = vsel %vm445, %v857, 0
    %962 = vmatprep.subr.mxu0 0.0
    %963 = vmatpush1.msra.mxu0 %v426
    %964 = vmatprep.subr.mxu0 0.0
    %965 = vmatpush1.msra.mxu0 %v427
    %966 = vmatprep.subr.mxu0 0.0
    %967 = vmatpush1.msra.mxu0 %v428
    %968 = vmatprep.subr.mxu0 0.0
    %969 = vmatpush1.msra.mxu0 %v429
    %970 = vmatprep.subr.mxu0 0.0
    %971 = vmatpush1.msra.mxu0 0.0
    %972 = vmatprep.subr.mxu0 0.0
    %973 = vmatpush1.msra.mxu0 0.0
    %974 = vmatprep.subr.mxu0 0.0
    %975 = vmatpush1.msra.mxu0 0.0
    %976 = vmatprep.subr.mxu0 0.0
    %977 = vmatpush1.msra.mxu0 0.0
    %978 = vmatprep.subr.mxu0 0.0
    %979 = vmatpush1.msra.mxu0 0.0
    %980 = vmatprep.subr.mxu0 0.0
    %981 = vmatpush1.msra.mxu0 0.0
    %982 = vmatprep.subr.mxu0 0.0
    %983 = vmatpush1.msra.mxu0 0.0
    %984 = vmatprep.subr.mxu0 0.0
    %985 = vmatpush1.msra.mxu0 0.0
    %986 = vmatprep.subr.mxu0 0.0
    %987 = vmatpush1.msra.mxu0 0.0
    %988 = vmatprep.subr.mxu0 0.0
    %989 = vmatpush1.msra.mxu0 0.0
    %990 = vmatprep.subr.mxu0 0.0
    %991 = vmatpush1.msra.mxu0 0.0
    %992 = vmatprep.subr.mxu0 0.0
    %993 = vmatpush1.msra.mxu0 0.0
    %994 = vmatprep.subr.mxu0 0.0
    %995 = vmatpush1.msra.mxu0 0.0
    %996 = vmatprep.subr.mxu0 0.0
    %997 = vmatpush1.msra.mxu0 0.0
    %998 = vmatprep.subr.mxu0 0.0
    %999 = vmatpush1.msra.mxu0 0.0
    %1000 = vmatprep.subr.mxu0 0.0
    %1001 = vmatpush1.msra.mxu0 0.0
    %1002 = vmatprep.subr.mxu0 0.0
    %1003 = vmatpush1.msra.mxu0 0.0
    %1004 = vmatprep.subr.mxu0 0.0
    %1005 = vmatpush1.msra.mxu0 0.0
    %1006 = vmatprep.subr.mxu0 0.0
    %1007 = vmatpush1.msra.mxu0 0.0
    %1008 = vmatprep.subr.mxu0 0.0
    %1009 = vmatpush1.msra.mxu0 0.0
    %1010 = vmatprep.subr.mxu0 0.0
    %1011 = vmatpush1.msra.mxu0 0.0
    %1012 = vmatprep.subr.mxu0 0.0
    %1013 = vmatpush1.msra.mxu0 0.0
    %1014 = vmatprep.subr.mxu0 0.0
    %1015 = vmatpush1.msra.mxu0 0.0
    %1016 = vmatprep.subr.mxu0 0.0
    %1017 = vmatpush1.msra.mxu0 0.0
    %1018 = vmatprep.subr.mxu0 0.0
    %1019 = vmatpush1.msra.mxu0 0.0
    %1020 = vmatprep.subr.mxu0 0.0
    %1021 = vmatpush1.msra.mxu0 0.0
    %1022 = vmatprep.subr.mxu0 0.0
    %1023 = vmatpush1.msra.mxu0 0.0
    %1024 = vmatprep.subr.mxu0 0.0
    %1025 = vmatpush1.msra.mxu0 0.0
    %1026 = vmatprep.mubr.f32.mxu0 0.0
    %1027 = vmatmul.mubr.f32.gmra.mrb[0].mxu0 %v960
    %v1028 = vpop.f32.mrb[0].mxu0
    %v1029 = vadd.f32 %v442, %v1028
    %v1030 = vpop.f32.mrb[0].mxu0
    %1031 = vdwg.mxu0
    %v1032 = vadd.f32 %v959, %v1029
    %v1033 = vxor.u32 %v1032, 2147483648
    %v1034 = vmul.f32 %v1033, 1.442695
    %v1035 = vpow.pop %v1034
    %v1036 = vadd.f32 %v1035, 1.0
    %v1037 = vrcp.pop %v1036
    %v1038 = vmul.f32 1.0, %v1037
    %1040 = vrot.lane.b32.xlu0 %v1029, 64
    %v1041 = vpop.permute.xlu0 %1040
    %v1043 = vmul.f32 %v1038, %v1041
    %1045 = vrot.lane.b32.xlu0 %v1043, 64
    %v1046 = vpop.permute.xlu0 %1045
    %v1048 = vadd.f32 %v959, %v1046
    %v1049 = vtanh.pop %v1048
    %v1050 = vsub.f32 1.0, %v1038
    %1052 = vrot.lane.b32.xlu0 %v1049, 96
    %v1053 = vpop.permute.xlu0 %1052
    %v1055 = vmul.f32 %v1050, %v1053
    %v1056 = vmul.f32 %v1038, %v849
    %v1057 = vadd.f32 %v1055, %v1056
    %1059 = vrot.lane.b32.xlu0 %v958, 96
    %v1060 = vpop.permute.xlu0 %1059
    %1062 = vst.msk [vmem:[#allocation4 + $0x10] sm:$0xff] %vm445, %v1060
    %1064 = vrot.lane.b32.xlu0 %v1057, 96
    %v1065 = vpop.permute.xlu0 %1064
    %1067 = vst.msk [vmem:[#allocation5 + $0x28] sm:$0xff] %vm445, %v1065
    %v1068 = vld [vmem:[#allocation2 + $0x18] sm:$0xff]
    %v1069 = vsel %vm445, %v1060, 0
    %1071 = vmatprep.subr.mxu0 0.0
    %1072 = vmatpush1.msra.mxu0 %v422
    %1073 = vmatprep.subr.mxu0 0.0
    %1074 = vmatpush1.msra.mxu0 %v423
    %1075 = vmatprep.subr.mxu0 0.0
    %1076 = vmatpush1.msra.mxu0 %v424
    %1077 = vmatprep.subr.mxu0 0.0
    %1078 = vmatpush1.msra.mxu0 %v425
    %1079 = vmatprep.subr.mxu0 0.0
    %1080 = vmatpush1.msra.mxu0 0.0
    %1081 = vmatprep.subr.mxu0 0.0
    %1082 = vmatpush1.msra.mxu0 0.0
    %1083 = vmatprep.subr.mxu0 0.0
    %1084 = vmatpush1.msra.mxu0 0.0
    %1085 = vmatprep.subr.mxu0 0.0
    %1086 = vmatpush1.msra.mxu0 0.0
    %1087 = vmatprep.subr.mxu0 0.0
    %1088 = vmatpush1.msra.mxu0 0.0
    %1089 = vmatprep.subr.mxu0 0.0
    %1090 = vmatpush1.msra.mxu0 0.0
    %1091 = vmatprep.subr.mxu0 0.0
    %1092 = vmatpush1.msra.mxu0 0.0
    %1093 = vmatprep.subr.mxu0 0.0
    %1094 = vmatpush1.msra.mxu0 0.0
    %1095 = vmatprep.subr.mxu0 0.0
    %1096 = vmatpush1.msra.mxu0 0.0
    %1097 = vmatprep.subr.mxu0 0.0
    %1098 = vmatpush1.msra.mxu0 0.0
    %1099 = vmatprep.subr.mxu0 0.0
    %1100 = vmatpush1.msra.mxu0 0.0
    %1101 = vmatprep.subr.mxu0 0.0
    %1102 = vmatpush1.msra.mxu0 0.0
    %1103 = vmatprep.subr.mxu0 0.0
    %1104 = vmatpush1.msra.mxu0 0.0
    %1105 = vmatprep.subr.mxu0 0.0
    %1106 = vmatpush1.msra.mxu0 0.0
    %1107 = vmatprep.subr.mxu0 0.0
    %1108 = vmatpush1.msra.mxu0 0.0
    %1109 = vmatprep.subr.mxu0 0.0
    %1110 = vmatpush1.msra.mxu0 0.0
    %1111 = vmatprep.subr.mxu0 0.0
    %1112 = vmatpush1.msra.mxu0 0.0
    %1113 = vmatprep.subr.mxu0 0.0
    %1114 = vmatpush1.msra.mxu0 0.0
    %1115 = vmatprep.subr.mxu0 0.0
    %1116 = vmatpush1.msra.mxu0 0.0
    %1117 = vmatprep.subr.mxu0 0.0
    %1118 = vmatpush1.msra.mxu0 0.0
    %1119 = vmatprep.subr.mxu0 0.0
    %1120 = vmatpush1.msra.mxu0 0.0
    %1121 = vmatprep.subr.mxu0 0.0
    %1122 = vmatpush1.msra.mxu0 0.0
    %1123 = vmatprep.subr.mxu0 0.0
    %1124 = vmatpush1.msra.mxu0 0.0
    %1125 = vmatprep.subr.mxu0 0.0
    %1126 = vmatpush1.msra.mxu0 0.0
    %1127 = vmatprep.subr.mxu0 0.0
    %1128 = vmatpush1.msra.mxu0 0.0
    %1129 = vmatprep.subr.mxu0 0.0
    %1130 = vmatpush1.msra.mxu0 0.0
    %1131 = vmatprep.subr.mxu0 0.0
    %1132 = vmatpush1.msra.mxu0 0.0
    %1133 = vmatprep.subr.mxu0 0.0
    %1134 = vmatpush1.msra.mxu0 0.0
    %1135 = vmatprep.mubr.f32.mxu0 0.0
    %1136 = vmatmul.mubr.f32.gmra.mrb[0].mxu0 %v1069
    %v1137 = vpop.f32.mrb[0].mxu0
    %v1138 = vadd.f32 %v435, %v1137
    %v1139 = vpop.f32.mrb[0].mxu0
    %1140 = vdwg.mxu0
    %v1141 = vadd.f32 %v1068, %v1138
    %v1142 = vxor.u32 %v1141, 2147483648
    %v1143 = vmul.f32 %v1142, 1.442695
    %v1144 = vpow.pop %v1143
    %v1145 = vadd.f32 %v1144, 1.0
    %v1146 = vrcp.pop %v1145
    %v1147 = vmul.f32 1.0, %v1146
    %1149 = vrot.lane.b32.xlu0 %v1138, 64
    %v1150 = vpop.permute.xlu0 %1149
    %v1152 = vmul.f32 %v1147, %v1150
    %1154 = vrot.lane.b32.xlu0 %v1152, 64
    %v1155 = vpop.permute.xlu0 %1154
    %v1157 = vadd.f32 %v1068, %v1155
    %v1158 = vtanh.pop %v1157
    %v1159 = vsub.f32 1.0, %v1147
    %1161 = vrot.lane.b32.xlu0 %v1158, 96
    %v1162 = vpop.permute.xlu0 %1161
    %v1164 = vmul.f32 %v1159, %v1162
    %v1165 = vmul.f32 %v1147, %v958
    %v1166 = vadd.f32 %v1164, %v1165
    %v1167 = vld [vmem:[#allocation3 + $0x20] sm:$0xff]
    %v1168 = vsel %vm445, %v1065, 0
    %1170 = vmatprep.subr.mxu0 0.0
    %1171 = vmatpush1.msra.mxu0 %v426
    %1172 = vmatprep.subr.mxu0 0.0
    %1173 = vmatpush1.msra.mxu0 %v427
    %1174 = vmatprep.subr.mxu0 0.0
    %1175 = vmatpush1.msra.mxu0 %v428
    %1176 = vmatprep.subr.mxu0 0.0
    %1177 = vmatpush1.msra.mxu0 %v429
    %1178 = vmatprep.subr.mxu0 0.0
    %1179 = vmatpush1.msra.mxu0 0.0
    %1180 = vmatprep.subr.mxu0 0.0
    %1181 = vmatpush1.msra.mxu0 0.0
    %1182 = vmatprep.subr.mxu0 0.0
    %1183 = vmatpush1.msra.mxu0 0.0
    %1184 = vmatprep.subr.mxu0 0.0
    %1185 = vmatpush1.msra.mxu0 0.0
    %1186 = vmatprep.subr.mxu0 0.0
    %1187 = vmatpush1.msra.mxu0 0.0
    %1188 = vmatprep.subr.mxu0 0.0
    %1189 = vmatpush1.msra.mxu0 0.0
    %1190 = vmatprep.subr.mxu0 0.0
    %1191 = vmatpush1.msra.mxu0 0.0
    %1192 = vmatprep.subr.mxu0 0.0
    %1193 = vmatpush1.msra.mxu0 0.0
    %1194 = vmatprep.subr.mxu0 0.0
    %1195 = vmatpush1.msra.mxu0 0.0
    %1196 = vmatprep.subr.mxu0 0.0
    %1197 = vmatpush1.msra.mxu0 0.0
    %1198 = vmatprep.subr.mxu0 0.0
    %1199 = vmatpush1.msra.mxu0 0.0
    %1200 = vmatprep.subr.mxu0 0.0
    %1201 = vmatpush1.msra.mxu0 0.0
    %1202 = vmatprep.subr.mxu0 0.0
    %1203 = vmatpush1.msra.mxu0 0.0
    %1204 = vmatprep.subr.mxu0 0.0
    %1205 = vmatpush1.msra.mxu0 0.0
    %1206 = vmatprep.subr.mxu0 0.0
    %1207 = vmatpush1.msra.mxu0 0.0
    %1208 = vmatprep.subr.mxu0 0.0
    %1209 = vmatpush1.msra.mxu0 0.0
    %1210 = vmatprep.subr.mxu0 0.0
    %1211 = vmatpush1.msra.mxu0 0.0
    %1212 = vmatprep.subr.mxu0 0.0
    %1213 = vmatpush1.msra.mxu0 0.0
    %1214 = vmatprep.subr.mxu0 0.0
    %1215 = vmatpush1.msra.mxu0 0.0
    %1216 = vmatprep.subr.mxu0 0.0
    %1217 = vmatpush1.msra.mxu0 0.0
    %1218 = vmatprep.subr.mxu0 0.0
    %1219 = vmatpush1.msra.mxu0 0.0
    %1220 = vmatprep.subr.mxu0 0.0
    %1221 = vmatpush1.msra.mxu0 0.0
    %1222 = vmatprep.subr.mxu0 0.0
    %1223 = vmatpush1.msra.mxu0 0.0
    %1224 = vmatprep.subr.mxu0 0.0
    %1225 = vmatpush1.msra.mxu0 0.0
    %1226 = vmatprep.subr.mxu0 0.0
    %1227 = vmatpush1.msra.mxu0 0.0
    %1228 = vmatprep.subr.mxu0 0.0
    %1229 = vmatpush1.msra.mxu0 0.0
    %1230 = vmatprep.subr.mxu0 0.0
    %1231 = vmatpush1.msra.mxu0 0.0
    %1232 = vmatprep.subr.mxu0 0.0
    %1233 = vmatpush1.msra.mxu0 0.0
    %1234 = vmatprep.mubr.f32.mxu0 0.0
    %1235 = vmatmul.mubr.f32.gmra.mrb[0].mxu0 %v1168
    %v1236 = vpop.f32.mrb[0].mxu0
    %v1237 = vadd.f32 %v442, %v1236
    %v1238 = vpop.f32.mrb[0].mxu0
    %1239 = vdwg.mxu0
    %v1240 = vadd.f32 %v1167, %v1237
    %v1241 = vxor.u32 %v1240, 2147483648
    %v1242 = vmul.f32 %v1241, 1.442695
    %v1243 = vpow.pop %v1242
    %v1244 = vadd.f32 %v1243, 1.0
    %v1245 = vrcp.pop %v1244
    %v1246 = vmul.f32 1.0, %v1245
    %1248 = vrot.lane.b32.xlu0 %v1237, 64
    %v1249 = vpop.permute.xlu0 %1248
    %v1251 = vmul.f32 %v1246, %v1249
    %1253 = vrot.lane.b32.xlu0 %v1251, 64
    %v1254 = vpop.permute.xlu0 %1253
    %v1256 = vadd.f32 %v1167, %v1254
    %v1257 = vtanh.pop %v1256
    %v1258 = vsub.f32 1.0, %v1246
    %1260 = vrot.lane.b32.xlu0 %v1257, 96
    %v1261 = vpop.permute.xlu0 %1260
    %v1263 = vmul.f32 %v1258, %v1261
    %v1264 = vmul.f32 %v1246, %v1057
    %v1265 = vadd.f32 %v1263, %v1264
    %1267 = vrot.lane.b32.xlu0 %v1166, 96
    %v1268 = vpop.permute.xlu0 %1267
    %1270 = vst.msk [vmem:[#allocation4 + $0x18] sm:$0xff] %vm445, %v1268
    %1272 = vrot.lane.b32.xlu0 %v1265, 96
    %v1273 = vpop.permute.xlu0 %1272
    %1275 = vst.msk [vmem:[#allocation5 + $0x20] sm:$0xff] %vm445, %v1273
    %v1276 = vld [vmem:[#allocation2 + $0x20] sm:$0xff]
    %v1277 = vsel %vm445, %v1268, 0
    %1279 = vmatprep.subr.mxu0 0.0
    %1280 = vmatpush1.msra.mxu0 %v422
    %1281 = vmatprep.subr.mxu0 0.0
    %1282 = vmatpush1.msra.mxu0 %v423
    %1283 = vmatprep.subr.mxu0 0.0
    %1284 = vmatpush1.msra.mxu0 %v424
    %1285 = vmatprep.subr.mxu0 0.0
    %1286 = vmatpush1.msra.mxu0 %v425
    %1287 = vmatprep.subr.mxu0 0.0
    %1288 = vmatpush1.msra.mxu0 0.0
    %1289 = vmatprep.subr.mxu0 0.0
    %1290 = vmatpush1.msra.mxu0 0.0
    %1291 = vmatprep.subr.mxu0 0.0
    %1292 = vmatpush1.msra.mxu0 0.0
    %1293 = vmatprep.subr.mxu0 0.0
    %1294 = vmatpush1.msra.mxu0 0.0
    %1295 = vmatprep.subr.mxu0 0.0
    %1296 = vmatpush1.msra.mxu0 0.0
    %1297 = vmatprep.subr.mxu0 0.0
    %1298 = vmatpush1.msra.mxu0 0.0
    %1299 = vmatprep.subr.mxu0 0.0
    %1300 = vmatpush1.msra.mxu0 0.0
    %1301 = vmatprep.subr.mxu0 0.0
    %1302 = vmatpush1.msra.mxu0 0.0
    %1303 = vmatprep.subr.mxu0 0.0
    %1304 = vmatpush1.msra.mxu0 0.0
    %1305 = vmatprep.subr.mxu0 0.0
    %1306 = vmatpush1.msra.mxu0 0.0
    %1307 = vmatprep.subr.mxu0 0.0
    %1308 = vmatpush1.msra.mxu0 0.0
    %1309 = vmatprep.subr.mxu0 0.0
    %1310 = vmatpush1.msra.mxu0 0.0
    %1311 = vmatprep.subr.mxu0 0.0
    %1312 = vmatpush1.msra.mxu0 0.0
    %1313 = vmatprep.subr.mxu0 0.0
    %1314 = vmatpush1.msra.mxu0 0.0
    %1315 = vmatprep.subr.mxu0 0.0
    %1316 = vmatpush1.msra.mxu0 0.0
    %1317 = vmatprep.subr.mxu0 0.0
    %1318 = vmatpush1.msra.mxu0 0.0
    %1319 = vmatprep.subr.mxu0 0.0
    %1320 = vmatpush1.msra.mxu0 0.0
    %1321 = vmatprep.subr.mxu0 0.0
    %1322 = vmatpush1.msra.mxu0 0.0
    %1323 = vmatprep.subr.mxu0 0.0
    %1324 = vmatpush1.msra.mxu0 0.0
    %1325 = vmatprep.subr.mxu0 0.0
    %1326 = vmatpush1.msra.mxu0 0.0
    %1327 = vmatprep.subr.mxu0 0.0
    %1328 = vmatpush1.msra.mxu0 0.0
    %1329 = vmatprep.subr.mxu0 0.0
    %1330 = vmatpush1.msra.mxu0 0.0
    %1331 = vmatprep.subr.mxu0 0.0
    %1332 = vmatpush1.msra.mxu0 0.0
    %1333 = vmatprep.subr.mxu0 0.0
    %1334 = vmatpush1.msra.mxu0 0.0
    %1335 = vmatprep.subr.mxu0 0.0
    %1336 = vmatpush1.msra.mxu0 0.0
    %1337 = vmatprep.subr.mxu0 0.0
    %1338 = vmatpush1.msra.mxu0 0.0
    %1339 = vmatprep.subr.mxu0 0.0
    %1340 = vmatpush1.msra.mxu0 0.0
    %1341 = vmatprep.subr.mxu0 0.0
    %1342 = vmatpush1.msra.mxu0 0.0
    %1343 = vmatprep.mubr.f32.mxu0 0.0
    %1344 = vmatmul.mubr.f32.gmra.mrb[0].mxu0 %v1277
    %v1345 = vpop.f32.mrb[0].mxu0
    %v1346 = vadd.f32 %v435, %v1345
    %v1347 = vpop.f32.mrb[0].mxu0
    %1348 = vdwg.mxu0
    %v1349 = vadd.f32 %v1276, %v1346
    %v1350 = vxor.u32 %v1349, 2147483648
    %v1351 = vmul.f32 %v1350, 1.442695
    %v1352 = vpow.pop %v1351
    %v1353 = vadd.f32 %v1352, 1.0
    %v1354 = vrcp.pop %v1353
    %v1355 = vmul.f32 1.0, %v1354
    %1357 = vrot.lane.b32.xlu0 %v1346, 64
    %v1358 = vpop.permute.xlu0 %1357
    %v1360 = vmul.f32 %v1355, %v1358
    %1362 = vrot.lane.b32.xlu0 %v1360, 64
    %v1363 = vpop.permute.xlu0 %1362
    %v1365 = vadd.f32 %v1276, %v1363
    %v1366 = vtanh.pop %v1365
    %v1367 = vsub.f32 1.0, %v1355
    %1369 = vrot.lane.b32.xlu0 %v1366, 96
    %v1370 = vpop.permute.xlu0 %1369
    %v1372 = vmul.f32 %v1367, %v1370
    %v1373 = vmul.f32 %v1355, %v1166
    %v1374 = vadd.f32 %v1372, %v1373
    %v1375 = vld [vmem:[#allocation3 + $0x18] sm:$0xff]
    %v1376 = vsel %vm445, %v1273, 0
    %1378 = vmatprep.subr.mxu0 0.0
    %1379 = vmatpush1.msra.mxu0 %v426
    %1380 = vmatprep.subr.mxu0 0.0
    %1381 = vmatpush1.msra.mxu0 %v427
    %1382 = vmatprep.subr.mxu0 0.0
    %1383 = vmatpush1.msra.mxu0 %v428
    %1384 = vmatprep.subr.mxu0 0.0
    %1385 = vmatpush1.msra.mxu0 %v429
    %1386 = vmatprep.subr.mxu0 0.0
    %1387 = vmatpush1.msra.mxu0 0.0
    %1388 = vmatprep.subr.mxu0 0.0
    %1389 = vmatpush1.msra.mxu0 0.0
    %1390 = vmatprep.subr.mxu0 0.0
    %1391 = vmatpush1.msra.mxu0 0.0
    %1392 = vmatprep.subr.mxu0 0.0
    %1393 = vmatpush1.msra.mxu0 0.0
    %1394 = vmatprep.subr.mxu0 0.0
    %1395 = vmatpush1.msra.mxu0 0.0
    %1396 = vmatprep.subr.mxu0 0.0
    %1397 = vmatpush1.msra.mxu0 0.0
    %1398 = vmatprep.subr.mxu0 0.0
    %1399 = vmatpush1.msra.mxu0 0.0
    %1400 = vmatprep.subr.mxu0 0.0
    %1401 = vmatpush1.msra.mxu0 0.0
    %1402 = vmatprep.subr.mxu0 0.0
    %1403 = vmatpush1.msra.mxu0 0.0
    %1404 = vmatprep.subr.mxu0 0.0
    %1405 = vmatpush1.msra.mxu0 0.0
    %1406 = vmatprep.subr.mxu0 0.0
    %1407 = vmatpush1.msra.mxu0 0.0
    %1408 = vmatprep.subr.mxu0 0.0
    %1409 = vmatpush1.msra.mxu0 0.0
    %1410 = vmatprep.subr.mxu0 0.0
    %1411 = vmatpush1.msra.mxu0 0.0
    %1412 = vmatprep.subr.mxu0 0.0
    %1413 = vmatpush1.msra.mxu0 0.0
    %1414 = vmatprep.subr.mxu0 0.0
    %1415 = vmatpush1.msra.mxu0 0.0
    %1416 = vmatprep.subr.mxu0 0.0
    %1417 = vmatpush1.msra.mxu0 0.0
    %1418 = vmatprep.subr.mxu0 0.0
    %1419 = vmatpush1.msra.mxu0 0.0
    %1420 = vmatprep.subr.mxu0 0.0
    %1421 = vmatpush1.msra.mxu0 0.0
    %1422 = vmatprep.subr.mxu0 0.0
    %1423 = vmatpush1.msra.mxu0 0.0
    %1424 = vmatprep.subr.mxu0 0.0
    %1425 = vmatpush1.msra.mxu0 0.0
    %1426 = vmatprep.subr.mxu0 0.0
    %1427 = vmatpush1.msra.mxu0 0.0
    %1428 = vmatprep.subr.mxu0 0.0
    %1429 = vmatpush1.msra.mxu0 0.0
    %1430 = vmatprep.subr.mxu0 0.0
    %1431 = vmatpush1.msra.mxu0 0.0
    %1432 = vmatprep.subr.mxu0 0.0
    %1433 = vmatpush1.msra.mxu0 0.0
    %1434 = vmatprep.subr.mxu0 0.0
    %1435 = vmatpush1.msra.mxu0 0.0
    %1436 = vmatprep.subr.mxu0 0.0
    %1437 = vmatpush1.msra.mxu0 0.0
    %1438 = vmatprep.subr.mxu0 0.0
    %1439 = vmatpush1.msra.mxu0 0.0
    %1440 = vmatprep.subr.mxu0 0.0
    %1441 = vmatpush1.msra.mxu0 0.0
    %1442 = vmatprep.mubr.f32.mxu0 0.0
    %1443 = vmatmul.mubr.f32.gmra.mrb[0].mxu0 %v1376
    %v1444 = vpop.f32.mrb[0].mxu0
    %v1445 = vadd.f32 %v442, %v1444
    %v1446 = vpop.f32.mrb[0].mxu0
    %1447 = vdwg.mxu0
    %v1448 = vadd.f32 %v1375, %v1445
    %v1449 = vxor.u32 %v1448, 2147483648
    %v1450 = vmul.f32 %v1449, 1.442695
    %v1451 = vpow.pop %v1450
    %v1452 = vadd.f32 %v1451, 1.0
    %v1453 = vrcp.pop %v1452
    %v1454 = vmul.f32 1.0, %v1453
    %1456 = vrot.lane.b32.xlu0 %v1445, 64
    %v1457 = vpop.permute.xlu0 %1456
    %v1459 = vmul.f32 %v1454, %v1457
    %1461 = vrot.lane.b32.xlu0 %v1459, 64
    %v1462 = vpop.permute.xlu0 %1461
    %v1464 = vadd.f32 %v1375, %v1462
    %v1465 = vtanh.pop %v1464
    %v1466 = vsub.f32 1.0, %v1454
    %1468 = vrot.lane.b32.xlu0 %v1465, 96
    %v1469 = vpop.permute.xlu0 %1468
    %v1471 = vmul.f32 %v1466, %v1469
    %v1472 = vmul.f32 %v1454, %v1265
    %v1473 = vadd.f32 %v1471, %v1472
    %1475 = vrot.lane.b32.xlu0 %v1374, 96
    %v1476 = vpop.permute.xlu0 %1475
    %1478 = vst.msk [vmem:[#allocation4 + $0x20] sm:$0xff] %vm445, %v1476
    %1480 = vrot.lane.b32.xlu0 %v1473, 96
    %v1481 = vpop.permute.xlu0 %1480
    %1483 = vst.msk [vmem:[#allocation5 + $0x18] sm:$0xff] %vm445, %v1481
    %v1484 = vld [vmem:[#allocation2 + $0x28] sm:$0xff]
    %v1485 = vsel %vm445, %v1476, 0
    %1487 = vmatprep.subr.mxu0 0.0
    %1488 = vmatpush1.msra.mxu0 %v422
    %1489 = vmatprep.subr.mxu0 0.0
    %1490 = vmatpush1.msra.mxu0 %v423
    %1491 = vmatprep.subr.mxu0 0.0
    %1492 = vmatpush1.msra.mxu0 %v424
    %1493 = vmatprep.subr.mxu0 0.0
    %1494 = vmatpush1.msra.mxu0 %v425
    %1495 = vmatprep.subr.mxu0 0.0
    %1496 = vmatpush1.msra.mxu0 0.0
    %1497 = vmatprep.subr.mxu0 0.0
    %1498 = vmatpush1.msra.mxu0 0.0
    %1499 = vmatprep.subr.mxu0 0.0
    %1500 = vmatpush1.msra.mxu0 0.0
    %1501 = vmatprep.subr.mxu0 0.0
    %1502 = vmatpush1.msra.mxu0 0.0
    %1503 = vmatprep.subr.mxu0 0.0
    %1504 = vmatpush1.msra.mxu0 0.0
    %1505 = vmatprep.subr.mxu0 0.0
    %1506 = vmatpush1.msra.mxu0 0.0
    %1507 = vmatprep.subr.mxu0 0.0
    %1508 = vmatpush1.msra.mxu0 0.0
    %1509 = vmatprep.subr.mxu0 0.0
    %1510 = vmatpush1.msra.mxu0 0.0
    %1511 = vmatprep.subr.mxu0 0.0
    %1512 = vmatpush1.msra.mxu0 0.0
    %1513 = vmatprep.subr.mxu0 0.0
    %1514 = vmatpush1.msra.mxu0 0.0
    %1515 = vmatprep.subr.mxu0 0.0
    %1516 = vmatpush1.msra.mxu0 0.0
    %1517 = vmatprep.subr.mxu0 0.0
    %1518 = vmatpush1.msra.mxu0 0.0
    %1519 = vmatprep.subr.mxu0 0.0
    %1520 = vmatpush1.msra.mxu0 0.0
    %1521 = vmatprep.subr.mxu0 0.0
    %1522 = vmatpush1.msra.mxu0 0.0
    %1523 = vmatprep.subr.mxu0 0.0
    %1524 = vmatpush1.msra.mxu0 0.0
    %1525 = vmatprep.subr.mxu0 0.0
    %1526 = vmatpush1.msra.mxu0 0.0
    %1527 = vmatprep.subr.mxu0 0.0
    %1528 = vmatpush1.msra.mxu0 0.0
    %1529 = vmatprep.subr.mxu0 0.0
    %1530 = vmatpush1.msra.mxu0 0.0
    %1531 = vmatprep.subr.mxu0 0.0
    %1532 = vmatpush1.msra.mxu0 0.0
    %1533 = vmatprep.subr.mxu0 0.0
    %1534 = vmatpush1.msra.mxu0 0.0
    %1535 = vmatprep.subr.mxu0 0.0
    %1536 = vmatpush1.msra.mxu0 0.0
    %1537 = vmatprep.subr.mxu0 0.0
    %1538 = vmatpush1.msra.mxu0 0.0
    %1539 = vmatprep.subr.mxu0 0.0
    %1540 = vmatpush1.msra.mxu0 0.0
    %1541 = vmatprep.subr.mxu0 0.0
    %1542 = vmatpush1.msra.mxu0 0.0
    %1543 = vmatprep.subr.mxu0 0.0
    %1544 = vmatpush1.msra.mxu0 0.0
    %1545 = vmatprep.subr.mxu0 0.0
    %1546 = vmatpush1.msra.mxu0 0.0
    %1547 = vmatprep.subr.mxu0 0.0
    %1548 = vmatpush1.msra.mxu0 0.0
    %1549 = vmatprep.subr.mxu0 0.0
    %1550 = vmatpush1.msra.mxu0 0.0
    %1551 = vmatprep.mubr.f32.mxu0 0.0
    %1552 = vmatmul.mubr.f32.gmra.mrb[0].mxu0 %v1485
    %v1553 = vpop.f32.mrb[0].mxu0
    %v1554 = vadd.f32 %v435, %v1553
    %v1555 = vpop.f32.mrb[0].mxu0
    %1556 = vdwg.mxu0
    %v1557 = vadd.f32 %v1484, %v1554
    %v1558 = vxor.u32 %v1557, 2147483648
    %v1559 = vmul.f32 %v1558, 1.442695
    %v1560 = vpow.pop %v1559
    %v1561 = vadd.f32 %v1560, 1.0
    %v1562 = vrcp.pop %v1561
    %v1563 = vmul.f32 1.0, %v1562
    %1565 = vrot.lane.b32.xlu0 %v1554, 64
    %v1566 = vpop.permute.xlu0 %1565
    %v1568 = vmul.f32 %v1563, %v1566
    %1570 = vrot.lane.b32.xlu0 %v1568, 64
    %v1571 = vpop.permute.xlu0 %1570
    %v1573 = vadd.f32 %v1484, %v1571
    %v1574 = vtanh.pop %v1573
    %v1575 = vsub.f32 1.0, %v1563
    %1577 = vrot.lane.b32.xlu0 %v1574, 96
    %v1578 = vpop.permute.xlu0 %1577
    %v1580 = vmul.f32 %v1575, %v1578
    %v1581 = vmul.f32 %v1563, %v1374
    %v1582 = vadd.f32 %v1580, %v1581
    %v1583 = vld [vmem:[#allocation3 + $0x10] sm:$0xff]
    %v1584 = vsel %vm445, %v1481, 0
    %1586 = vmatprep.subr.mxu0 0.0
    %1587 = vmatpush1.msra.mxu0 %v426
    %1588 = vmatprep.subr.mxu0 0.0
    %1589 = vmatpush1.msra.mxu0 %v427
    %1590 = vmatprep.subr.mxu0 0.0
    %1591 = vmatpush1.msra.mxu0 %v428
    %1592 = vmatprep.subr.mxu0 0.0
    %1593 = vmatpush1.msra.mxu0 %v429
    %1594 = vmatprep.subr.mxu0 0.0
    %1595 = vmatpush1.msra.mxu0 0.0
    %1596 = vmatprep.subr.mxu0 0.0
    %1597 = vmatpush1.msra.mxu0 0.0
    %1598 = vmatprep.subr.mxu0 0.0
    %1599 = vmatpush1.msra.mxu0 0.0
    %1600 = vmatprep.subr.mxu0 0.0
    %1601 = vmatpush1.msra.mxu0 0.0
    %1602 = vmatprep.subr.mxu0 0.0
    %1603 = vmatpush1.msra.mxu0 0.0
    %1604 = vmatprep.subr.mxu0 0.0
    %1605 = vmatpush1.msra.mxu0 0.0
    %1606 = vmatprep.subr.mxu0 0.0
    %1607 = vmatpush1.msra.mxu0 0.0
    %1608 = vmatprep.subr.mxu0 0.0
    %1609 = vmatpush1.msra.mxu0 0.0
    %1610 = vmatprep.subr.mxu0 0.0
    %1611 = vmatpush1.msra.mxu0 0.0
    %1612 = vmatprep.subr.mxu0 0.0
    %1613 = vmatpush1.msra.mxu0 0.0
    %1614 = vmatprep.subr.mxu0 0.0
    %1615 = vmatpush1.msra.mxu0 0.0
    %1616 = vmatprep.subr.mxu0 0.0
    %1617 = vmatpush1.msra.mxu0 0.0
    %1618 = vmatprep.subr.mxu0 0.0
    %1619 = vmatpush1.msra.mxu0 0.0
    %1620 = vmatprep.subr.mxu0 0.0
    %1621 = vmatpush1.msra.mxu0 0.0
    %1622 = vmatprep.subr.mxu0 0.0
    %1623 = vmatpush1.msra.mxu0 0.0
    %1624 = vmatprep.subr.mxu0 0.0
    %1625 = vmatpush1.msra.mxu0 0.0
    %1626 = vmatprep.subr.mxu0 0.0
    %1627 = vmatpush1.msra.mxu0 0.0
    %1628 = vmatprep.subr.mxu0 0.0
    %1629 = vmatpush1.msra.mxu0 0.0
    %1630 = vmatprep.subr.mxu0 0.0
    %1631 = vmatpush1.msra.mxu0 0.0
    %1632 = vmatprep.subr.mxu0 0.0
    %1633 = vmatpush1.msra.mxu0 0.0
    %1634 = vmatprep.subr.mxu0 0.0
    %1635 = vmatpush1.msra.mxu0 0.0
    %1636 = vmatprep.subr.mxu0 0.0
    %1637 = vmatpush1.msra.mxu0 0.0
    %1638 = vmatprep.subr.mxu0 0.0
    %1639 = vmatpush1.msra.mxu0 0.0
    %1640 = vmatprep.subr.mxu0 0.0
    %1641 = vmatpush1.msra.mxu0 0.0
    %1642 = vmatprep.subr.mxu0 0.0
    %1643 = vmatpush1.msra.mxu0 0.0
    %1644 = vmatprep.subr.mxu0 0.0
    %1645 = vmatpush1.msra.mxu0 0.0
    %1646 = vmatprep.subr.mxu0 0.0
    %1647 = vmatpush1.msra.mxu0 0.0
    %1648 = vmatprep.subr.mxu0 0.0
    %1649 = vmatpush1.msra.mxu0 0.0
    %1650 = vmatprep.mubr.f32.mxu0 0.0
    %1651 = vmatmul.mubr.f32.gmra.mrb[0].mxu0 %v1584
    %v1652 = vpop.f32.mrb[0].mxu0
    %v1653 = vadd.f32 %v442, %v1652
    %v1654 = vpop.f32.mrb[0].mxu0
    %1655 = vdwg.mxu0
    %v1656 = vadd.f32 %v1583, %v1653
    %v1657 = vxor.u32 %v1656, 2147483648
    %v1658 = vmul.f32 %v1657, 1.442695
    %v1659 = vpow.pop %v1658
    %v1660 = vadd.f32 %v1659, 1.0
    %v1661 = vrcp.pop %v1660
    %v1662 = vmul.f32 1.0, %v1661
    %1664 = vrot.lane.b32.xlu0 %v1653, 64
    %v1665 = vpop.permute.xlu0 %1664
    %v1667 = vmul.f32 %v1662, %v1665
    %1669 = vrot.lane.b32.xlu0 %v1667, 64
    %v1670 = vpop.permute.xlu0 %1669
    %v1672 = vadd.f32 %v1583, %v1670
    %v1673 = vtanh.pop %v1672
    %v1674 = vsub.f32 1.0, %v1662
    %1676 = vrot.lane.b32.xlu0 %v1673, 96
    %v1677 = vpop.permute.xlu0 %1676
    %v1679 = vmul.f32 %v1674, %v1677
    %v1680 = vmul.f32 %v1662, %v1473
    %v1681 = vadd.f32 %v1679, %v1680
    %1683 = vrot.lane.b32.xlu0 %v1582, 96
    %v1684 = vpop.permute.xlu0 %1683
    %1686 = vst.msk [vmem:[#allocation4 + $0x28] sm:$0xff] %vm445, %v1684
    %1688 = vrot.lane.b32.xlu0 %v1681, 96
    %v1689 = vpop.permute.xlu0 %1688
    %1691 = vst.msk [vmem:[#allocation5 + $0x10] sm:$0xff] %vm445, %v1689
    %v1692 = vld [vmem:[#allocation2 + $0x30] sm:$0xff]
    %v1693 = vsel %vm445, %v1684, 0
    %1695 = vmatprep.subr.mxu0 0.0
    %1696 = vmatpush1.msra.mxu0 %v422
    %1697 = vmatprep.subr.mxu0 0.0
    %1698 = vmatpush1.msra.mxu0 %v423
    %1699 = vmatprep.subr.mxu0 0.0
    %1700 = vmatpush1.msra.mxu0 %v424
    %1701 = vmatprep.subr.mxu0 0.0
    %1702 = vmatpush1.msra.mxu0 %v425
    %1703 = vmatprep.subr.mxu0 0.0
    %1704 = vmatpush1.msra.mxu0 0.0
    %1705 = vmatprep.subr.mxu0 0.0
    %1706 = vmatpush1.msra.mxu0 0.0
    %1707 = vmatprep.subr.mxu0 0.0
    %1708 = vmatpush1.msra.mxu0 0.0
    %1709 = vmatprep.subr.mxu0 0.0
    %1710 = vmatpush1.msra.mxu0 0.0
    %1711 = vmatprep.subr.mxu0 0.0
    %1712 = vmatpush1.msra.mxu0 0.0
    %1713 = vmatprep.subr.mxu0 0.0
    %1714 = vmatpush1.msra.mxu0 0.0
    %1715 = vmatprep.subr.mxu0 0.0
    %1716 = vmatpush1.msra.mxu0 0.0
    %1717 = vmatprep.subr.mxu0 0.0
    %1718 = vmatpush1.msra.mxu0 0.0
    %1719 = vmatprep.subr.mxu0 0.0
    %1720 = vmatpush1.msra.mxu0 0.0
    %1721 = vmatprep.subr.mxu0 0.0
    %1722 = vmatpush1.msra.mxu0 0.0
    %1723 = vmatprep.subr.mxu0 0.0
    %1724 = vmatpush1.msra.mxu0 0.0
    %1725 = vmatprep.subr.mxu0 0.0
    %1726 = vmatpush1.msra.mxu0 0.0
    %1727 = vmatprep.subr.mxu0 0.0
    %1728 = vmatpush1.msra.mxu0 0.0
    %1729 = vmatprep.subr.mxu0 0.0
    %1730 = vmatpush1.msra.mxu0 0.0
    %1731 = vmatprep.subr.mxu0 0.0
    %1732 = vmatpush1.msra.mxu0 0.0
    %1733 = vmatprep.subr.mxu0 0.0
    %1734 = vmatpush1.msra.mxu0 0.0
    %1735 = vmatprep.subr.mxu0 0.0
    %1736 = vmatpush1.msra.mxu0 0.0
    %1737 = vmatprep.subr.mxu0 0.0
    %1738 = vmatpush1.msra.mxu0 0.0
    %1739 = vmatprep.subr.mxu0 0.0
    %1740 = vmatpush1.msra.mxu0 0.0
    %1741 = vmatprep.subr.mxu0 0.0
    %1742 = vmatpush1.msra.mxu0 0.0
    %1743 = vmatprep.subr.mxu0 0.0
    %1744 = vmatpush1.msra.mxu0 0.0
    %1745 = vmatprep.subr.mxu0 0.0
    %1746 = vmatpush1.msra.mxu0 0.0
    %1747 = vmatprep.subr.mxu0 0.0
    %1748 = vmatpush1.msra.mxu0 0.0
    %1749 = vmatprep.subr.mxu0 0.0
    %1750 = vmatpush1.msra.mxu0 0.0
    %1751 = vmatprep.subr.mxu0 0.0
    %1752 = vmatpush1.msra.mxu0 0.0
    %1753 = vmatprep.subr.mxu0 0.0
    %1754 = vmatpush1.msra.mxu0 0.0
    %1755 = vmatprep.subr.mxu0 0.0
    %1756 = vmatpush1.msra.mxu0 0.0
    %1757 = vmatprep.subr.mxu0 0.0
    %1758 = vmatpush1.msra.mxu0 0.0
    %1759 = vmatprep.mubr.f32.mxu0 0.0
    %1760 = vmatmul.mubr.f32.gmra.mrb[0].mxu0 %v1693
    %v1761 = vpop.f32.mrb[0].mxu0
    %v1762 = vadd.f32 %v435, %v1761
    %v1763 = vpop.f32.mrb[0].mxu0
    %1764 = vdwg.mxu0
    %v1765 = vadd.f32 %v1692, %v1762
    %v1766 = vxor.u32 %v1765, 2147483648
    %v1767 = vmul.f32 %v1766, 1.442695
    %v1768 = vpow.pop %v1767
    %v1769 = vadd.f32 %v1768, 1.0
    %v1770 = vrcp.pop %v1769
    %v1771 = vmul.f32 1.0, %v1770
    %1773 = vrot.lane.b32.xlu0 %v1762, 64
    %v1774 = vpop.permute.xlu0 %1773
    %v1776 = vmul.f32 %v1771, %v1774
    %1778 = vrot.lane.b32.xlu0 %v1776, 64
    %v1779 = vpop.permute.xlu0 %1778
    %v1781 = vadd.f32 %v1692, %v1779
    %v1782 = vtanh.pop %v1781
    %v1783 = vsub.f32 1.0, %v1771
    %1785 = vrot.lane.b32.xlu0 %v1782, 96
    %v1786 = vpop.permute.xlu0 %1785
    %v1788 = vmul.f32 %v1783, %v1786
    %v1789 = vmul.f32 %v1771, %v1582
    %v1790 = vadd.f32 %v1788, %v1789
    %v1791 = vld [vmem:[#allocation3 + $0x8] sm:$0xff]
    %v1792 = vsel %vm445, %v1689, 0
    %1794 = vmatprep.subr.mxu0 0.0
    %1795 = vmatpush1.msra.mxu0 %v426
    %1796 = vmatprep.subr.mxu0 0.0
    %1797 = vmatpush1.msra.mxu0 %v427
    %1798 = vmatprep.subr.mxu0 0.0
    %1799 = vmatpush1.msra.mxu0 %v428
    %1800 = vmatprep.subr.mxu0 0.0
    %1801 = vmatpush1.msra.mxu0 %v429
    %1802 = vmatprep.subr.mxu0 0.0
    %1803 = vmatpush1.msra.mxu0 0.0
    %1804 = vmatprep.subr.mxu0 0.0
    %1805 = vmatpush1.msra.mxu0 0.0
    %1806 = vmatprep.subr.mxu0 0.0
    %1807 = vmatpush1.msra.mxu0 0.0
    %1808 = vmatprep.subr.mxu0 0.0
    %1809 = vmatpush1.msra.mxu0 0.0
    %1810 = vmatprep.subr.mxu0 0.0
    %1811 = vmatpush1.msra.mxu0 0.0
    %1812 = vmatprep.subr.mxu0 0.0
    %1813 = vmatpush1.msra.mxu0 0.0
    %1814 = vmatprep.subr.mxu0 0.0
    %1815 = vmatpush1.msra.mxu0 0.0
    %1816 = vmatprep.subr.mxu0 0.0
    %1817 = vmatpush1.msra.mxu0 0.0
    %1818 = vmatprep.subr.mxu0 0.0
    %1819 = vmatpush1.msra.mxu0 0.0
    %1820 = vmatprep.subr.mxu0 0.0
    %1821 = vmatpush1.msra.mxu0 0.0
    %1822 = vmatprep.subr.mxu0 0.0
    %1823 = vmatpush1.msra.mxu0 0.0
    %1824 = vmatprep.subr.mxu0 0.0
    %1825 = vmatpush1.msra.mxu0 0.0
    %1826 = vmatprep.subr.mxu0 0.0
    %1827 = vmatpush1.msra.mxu0 0.0
    %1828 = vmatprep.subr.mxu0 0.0
    %1829 = vmatpush1.msra.mxu0 0.0
    %1830 = vmatprep.subr.mxu0 0.0
    %1831 = vmatpush1.msra.mxu0 0.0
    %1832 = vmatprep.subr.mxu0 0.0
    %1833 = vmatpush1.msra.mxu0 0.0
    %1834 = vmatprep.subr.mxu0 0.0
    %1835 = vmatpush1.msra.mxu0 0.0
    %1836 = vmatprep.subr.mxu0 0.0
    %1837 = vmatpush1.msra.mxu0 0.0
    %1838 = vmatprep.subr.mxu0 0.0
    %1839 = vmatpush1.msra.mxu0 0.0
    %1840 = vmatprep.subr.mxu0 0.0
    %1841 = vmatpush1.msra.mxu0 0.0
    %1842 = vmatprep.subr.mxu0 0.0
    %1843 = vmatpush1.msra.mxu0 0.0
    %1844 = vmatprep.subr.mxu0 0.0
    %1845 = vmatpush1.msra.mxu0 0.0
    %1846 = vmatprep.subr.mxu0 0.0
    %1847 = vmatpush1.msra.mxu0 0.0
    %1848 = vmatprep.subr.mxu0 0.0
    %1849 = vmatpush1.msra.mxu0 0.0
    %1850 = vmatprep.subr.mxu0 0.0
    %1851 = vmatpush1.msra.mxu0 0.0
    %1852 = vmatprep.subr.mxu0 0.0
    %1853 = vmatpush1.msra.mxu0 0.0
    %1854 = vmatprep.subr.mxu0 0.0
    %1855 = vmatpush1.msra.mxu0 0.0
    %1856 = vmatprep.subr.mxu0 0.0
    %1857 = vmatpush1.msra.mxu0 0.0
    %1858 = vmatprep.mubr.f32.mxu0 0.0
    %1859 = vmatmul.mubr.f32.gmra.mrb[0].mxu0 %v1792
    %v1860 = vpop.f32.mrb[0].mxu0
    %v1861 = vadd.f32 %v442, %v1860
    %v1862 = vpop.f32.mrb[0].mxu0
    %1863 = vdwg.mxu0
    %v1864 = vadd.f32 %v1791, %v1861
    %v1865 = vxor.u32 %v1864, 2147483648
    %v1866 = vmul.f32 %v1865, 1.442695
    %v1867 = vpow.pop %v1866
    %v1868 = vadd.f32 %v1867, 1.0
    %v1869 = vrcp.pop %v1868
    %v1870 = vmul.f32 1.0, %v1869
    %1872 = vrot.lane.b32.xlu0 %v1861, 64
    %v1873 = vpop.permute.xlu0 %1872
    %v1875 = vmul.f32 %v1870, %v1873
    %1877 = vrot.lane.b32.xlu0 %v1875, 64
    %v1878 = vpop.permute.xlu0 %1877
    %v1880 = vadd.f32 %v1791, %v1878
    %v1881 = vtanh.pop %v1880
    %v1882 = vsub.f32 1.0, %v1870
    %1884 = vrot.lane.b32.xlu0 %v1881, 96
    %v1885 = vpop.permute.xlu0 %1884
    %v1887 = vmul.f32 %v1882, %v1885
    %v1888 = vmul.f32 %v1870, %v1681
    %v1889 = vadd.f32 %v1887, %v1888
    %1891 = vrot.lane.b32.xlu0 %v1790, 96
    %v1892 = vpop.permute.xlu0 %1891
    %1894 = vst.msk [vmem:[#allocation4 + $0x30] sm:$0xff] %vm445, %v1892
    %1896 = vrot.lane.b32.xlu0 %v1889, 96
    %v1897 = vpop.permute.xlu0 %1896
    %1899 = vst.msk [vmem:[#allocation5 + $0x8] sm:$0xff] %vm445, %v1897
    %v1900 = vld [vmem:[#allocation2 + $0x38] sm:$0xff]
    %v1901 = vsel %vm445, %v1892, 0
    %1903 = vmatprep.subr.mxu0 0.0
    %1904 = vmatpush1.msra.mxu0 %v422
    %1905 = vmatprep.subr.mxu0 0.0
    %1906 = vmatpush1.msra.mxu0 %v423
    %1907 = vmatprep.subr.mxu0 0.0
    %1908 = vmatpush1.msra.mxu0 %v424
    %1909 = vmatprep.subr.mxu0 0.0
    %1910 = vmatpush1.msra.mxu0 %v425
    %1911 = vmatprep.subr.mxu0 0.0
    %1912 = vmatpush1.msra.mxu0 0.0
    %1913 = vmatprep.subr.mxu0 0.0
    %1914 = vmatpush1.msra.mxu0 0.0
    %1915 = vmatprep.subr.mxu0 0.0
    %1916 = vmatpush1.msra.mxu0 0.0
    %1917 = vmatprep.subr.mxu0 0.0
    %1918 = vmatpush1.msra.mxu0 0.0
    %1919 = vmatprep.subr.mxu0 0.0
    %1920 = vmatpush1.msra.mxu0 0.0
    %1921 = vmatprep.subr.mxu0 0.0
    %1922 = vmatpush1.msra.mxu0 0.0
    %1923 = vmatprep.subr.mxu0 0.0
    %1924 = vmatpush1.msra.mxu0 0.0
    %1925 = vmatprep.subr.mxu0 0.0
    %1926 = vmatpush1.msra.mxu0 0.0
    %1927 = vmatprep.subr.mxu0 0.0
    %1928 = vmatpush1.msra.mxu0 0.0
    %1929 = vmatprep.subr.mxu0 0.0
    %1930 = vmatpush1.msra.mxu0 0.0
    %1931 = vmatprep.subr.mxu0 0.0
    %1932 = vmatpush1.msra.mxu0 0.0
    %1933 = vmatprep.subr.mxu0 0.0
    %1934 = vmatpush1.msra.mxu0 0.0
    %1935 = vmatprep.subr.mxu0 0.0
    %1936 = vmatpush1.msra.mxu0 0.0
    %1937 = vmatprep.subr.mxu0 0.0
    %1938 = vmatpush1.msra.mxu0 0.0
    %1939 = vmatprep.subr.mxu0 0.0
    %1940 = vmatpush1.msra.mxu0 0.0
    %1941 = vmatprep.subr.mxu0 0.0
    %1942 = vmatpush1.msra.mxu0 0.0
    %1943 = vmatprep.subr.mxu0 0.0
    %1944 = vmatpush1.msra.mxu0 0.0
    %1945 = vmatprep.subr.mxu0 0.0
    %1946 = vmatpush1.msra.mxu0 0.0
    %1947 = vmatprep.subr.mxu0 0.0
    %1948 = vmatpush1.msra.mxu0 0.0
    %1949 = vmatprep.subr.mxu0 0.0
    %1950 = vmatpush1.msra.mxu0 0.0
    %1951 = vmatprep.subr.mxu0 0.0
    %1952 = vmatpush1.msra.mxu0 0.0
    %1953 = vmatprep.subr.mxu0 0.0
    %1954 = vmatpush1.msra.mxu0 0.0
    %1955 = vmatprep.subr.mxu0 0.0
    %1956 = vmatpush1.msra.mxu0 0.0
    %1957 = vmatprep.subr.mxu0 0.0
    %1958 = vmatpush1.msra.mxu0 0.0
    %1959 = vmatprep.subr.mxu0 0.0
    %1960 = vmatpush1.msra.mxu0 0.0
    %1961 = vmatprep.subr.mxu0 0.0
    %1962 = vmatpush1.msra.mxu0 0.0
    %1963 = vmatprep.subr.mxu0 0.0
    %1964 = vmatpush1.msra.mxu0 0.0
    %1965 = vmatprep.subr.mxu0 0.0
    %1966 = vmatpush1.msra.mxu0 0.0
    %1967 = vmatprep.mubr.f32.mxu0 0.0
    %1968 = vmatmul.mubr.f32.gmra.mrb[0].mxu0 %v1901
    %v1969 = vpop.f32.mrb[0].mxu0
    %v1970 = vadd.f32 %v435, %v1969
    %v1971 = vpop.f32.mrb[0].mxu0
    %1972 = vdwg.mxu0
    %v1973 = vadd.f32 %v1900, %v1970
    %v1974 = vxor.u32 %v1973, 2147483648
    %v1975 = vmul.f32 %v1974, 1.442695
    %v1976 = vpow.pop %v1975
    %v1977 = vadd.f32 %v1976, 1.0
    %v1978 = vrcp.pop %v1977
    %v1979 = vmul.f32 1.0, %v1978
    %1981 = vrot.lane.b32.xlu0 %v1970, 64
    %v1982 = vpop.permute.xlu0 %1981
    %v1984 = vmul.f32 %v1979, %v1982
    %1986 = vrot.lane.b32.xlu0 %v1984, 64
    %v1987 = vpop.permute.xlu0 %1986
    %v1989 = vadd.f32 %v1900, %v1987
    %v1990 = vtanh.pop %v1989
    %v1991 = vsub.f32 1.0, %v1979
    %1993 = vrot.lane.b32.xlu0 %v1990, 96
    %v1994 = vpop.permute.xlu0 %1993
    %v1996 = vmul.f32 %v1991, %v1994
    %v1997 = vmul.f32 %v1979, %v1790
    %v1998 = vadd.f32 %v1996, %v1997
    %v1999 = vld [vmem:[#allocation3] sm:$0xff]
    %v2000 = vsel %vm445, %v1897, 0
    %2002 = vmatprep.subr.mxu0 0.0
    %2003 = vmatpush1.msra.mxu0 %v426
    %2004 = vmatprep.subr.mxu0 0.0
    %2005 = vmatpush1.msra.mxu0 %v427
    %2006 = vmatprep.subr.mxu0 0.0
    %2007 = vmatpush1.msra.mxu0 %v428
    %2008 = vmatprep.subr.mxu0 0.0
    %2009 = vmatpush1.msra.mxu0 %v429
    %2010 = vmatprep.subr.mxu0 0.0
    %2011 = vmatpush1.msra.mxu0 0.0
    %2012 = vmatprep.subr.mxu0 0.0
    %2013 = vmatpush1.msra.mxu0 0.0
    %2014 = vmatprep.subr.mxu0 0.0
    %2015 = vmatpush1.msra.mxu0 0.0
    %2016 = vmatprep.subr.mxu0 0.0
    %2017 = vmatpush1.msra.mxu0 0.0
    %2018 = vmatprep.subr.mxu0 0.0
    %2019 = vmatpush1.msra.mxu0 0.0
    %2020 = vmatprep.subr.mxu0 0.0
    %2021 = vmatpush1.msra.mxu0 0.0
    %2022 = vmatprep.subr.mxu0 0.0
    %2023 = vmatpush1.msra.mxu0 0.0
    %2024 = vmatprep.subr.mxu0 0.0
    %2025 = vmatpush1.msra.mxu0 0.0
    %2026 = vmatprep.subr.mxu0 0.0
    %2027 = vmatpush1.msra.mxu0 0.0
    %2028 = vmatprep.subr.mxu0 0.0
    %2029 = vmatpush1.msra.mxu0 0.0
    %2030 = vmatprep.subr.mxu0 0.0
    %2031 = vmatpush1.msra.mxu0 0.0
    %2032 = vmatprep.subr.mxu0 0.0
    %2033 = vmatpush1.msra.mxu0 0.0
    %2034 = vmatprep.subr.mxu0 0.0
    %2035 = vmatpush1.msra.mxu0 0.0
    %2036 = vmatprep.subr.mxu0 0.0
    %2037 = vmatpush1.msra.mxu0 0.0
    %2038 = vmatprep.subr.mxu0 0.0
    %2039 = vmatpush1.msra.mxu0 0.0
    %2040 = vmatprep.subr.mxu0 0.0
    %2041 = vmatpush1.msra.mxu0 0.0
    %2042 = vmatprep.subr.mxu0 0.0
    %2043 = vmatpush1.msra.mxu0 0.0
    %2044 = vmatprep.subr.mxu0 0.0
    %2045 = vmatpush1.msra.mxu0 0.0
    %2046 = vmatprep.subr.mxu0 0.0
    %2047 = vmatpush1.msra.mxu0 0.0
    %2048 = vmatprep.subr.mxu0 0.0
    %2049 = vmatpush1.msra.mxu0 0.0
    %2050 = vmatprep.subr.mxu0 0.0
    %2051 = vmatpush1.msra.mxu0 0.0
    %2052 = vmatprep.subr.mxu0 0.0
    %2053 = vmatpush1.msra.mxu0 0.0
    %2054 = vmatprep.subr.mxu0 0.0
    %2055 = vmatpush1.msra.mxu0 0.0
    %2056 = vmatprep.subr.mxu0 0.0
    %2057 = vmatpush1.msra.mxu0 0.0
    %2058 = vmatprep.subr.mxu0 0.0
    %2059 = vmatpush1.msra.mxu0 0.0
    %2060 = vmatprep.subr.mxu0 0.0
    %2061 = vmatpush1.msra.mxu0 0.0
    %2062 = vmatprep.subr.mxu0 0.0
    %2063 = vmatpush1.msra.mxu0 0.0
    %2064 = vmatprep.subr.mxu0 0.0
    %2065 = vmatpush1.msra.mxu0 0.0
    %2066 = vmatprep.mubr.f32.mxu0 0.0
    %2067 = vmatmul.mubr.f32.gmra.mrb[0].mxu0 %v2000
    %v2068 = vpop.f32.mrb[0].mxu0
    %v2069 = vadd.f32 %v442, %v2068
    %v2070 = vpop.f32.mrb[0].mxu0
    %2071 = vdwg.mxu0
    %v2072 = vadd.f32 %v1999, %v2069
    %v2073 = vxor.u32 %v2072, 2147483648
    %v2074 = vmul.f32 %v2073, 1.442695
    %v2075 = vpow.pop %v2074
    %v2076 = vadd.f32 %v2075, 1.0
    %v2077 = vrcp.pop %v2076
    %v2078 = vmul.f32 1.0, %v2077
    %2080 = vrot.lane.b32.xlu0 %v2069, 64
    %v2081 = vpop.permute.xlu0 %2080
    %v2083 = vmul.f32 %v2078, %v2081
    %2085 = vrot.lane.b32.xlu0 %v2083, 64
    %v2086 = vpop.permute.xlu0 %2085
    %v2088 = vadd.f32 %v1999, %v2086
    %v2089 = vtanh.pop %v2088
    %v2090 = vsub.f32 1.0, %v2078
    %2092 = vrot.lane.b32.xlu0 %v2089, 96
    %v2093 = vpop.permute.xlu0 %2092
    %v2095 = vmul.f32 %v2090, %v2093
    %v2096 = vmul.f32 %v2078, %v1889
    %v2097 = vadd.f32 %v2095, %v2096
    %2099 = vrot.lane.b32.xlu0 %v1998, 96
    %v2100 = vpop.permute.xlu0 %2099
    %2102 = vst.msk [vmem:[#allocation4 + $0x38] sm:$0xff] %vm445, %v2100
    %2104 = vrot.lane.b32.xlu0 %v2097, 96
    %v2105 = vpop.permute.xlu0 %2104
    %2107 = vst.msk [vmem:[#allocation5] sm:$0xff] %vm445, %v2105
    %v2108 = vld [vmem:[#allocation4] sm:$0xff]
    %v2109 = vld [vmem:[#allocation4 + $0x8] sm:$0xff]
    %v2110 = vld [vmem:[#allocation4 + $0x10] sm:$0xff]
    %v2111 = vld [vmem:[#allocation4 + $0x18] sm:$0xff]
    %v2112 = vld [vmem:[#allocation4 + $0x20] sm:$0xff]
    %v2113 = vld [vmem:[#allocation4 + $0x28] sm:$0xff]
    %v2114 = vld [vmem:[#allocation4 + $0x30] sm:$0xff]
    %v2115 = vld [vmem:[#allocation4 + $0x38] sm:$0xff]
    %v2116 = vld [vmem:[#allocation5] sm:$0xff]
    %v2117 = vld [vmem:[#allocation5 + $0x8] sm:$0xff]
    %v2118 = vld [vmem:[#allocation5 + $0x10] sm:$0xff]
    %v2119 = vld [vmem:[#allocation5 + $0x18] sm:$0xff]
    %v2120 = vld [vmem:[#allocation5 + $0x20] sm:$0xff]
    %v2121 = vld [vmem:[#allocation5 + $0x28] sm:$0xff]
    %v2122 = vld [vmem:[#allocation5 + $0x30] sm:$0xff]
    %v2123 = vld [vmem:[#allocation5 + $0x38] sm:$0xff]
    %v2124 = vld [vmem:[%s9] sm:$0xff]
    %v2125 = vld [vmem:[%s9 + $0x8] sm:$0xff]
    %v2126 = vld [vmem:[%s9 + $0x10] sm:$0xff]
    %v2127 = vld [vmem:[%s9 + $0x18] sm:$0xff]
    %v2128 = vld [vmem:[%s9 + $0x20] sm:$0xff]
    %v2129 = vld [vmem:[%s9 + $0x28] sm:$0xff]
    %v2130 = vld [vmem:[%s9 + $0x30] sm:$0xff]
    %v2131 = vld [vmem:[%s9 + $0x38] sm:$0xff]
    %v2133 = vsel %vm445, %v2116, 0
    %v2136 = vsel %vm445, %v2117, 0
    %v2139 = vsel %vm445, %v2118, 0
    %v2142 = vsel %vm445, %v2119, 0
    %v2145 = vsel %vm445, %v2120, 0
    %v2148 = vsel %vm445, %v2121, 0
    %v2151 = vsel %vm445, %v2122, 0
    %v2154 = vsel %vm445, %v2123, 0
    %2156 = vmatprep.subr.mxu0 0.0
    %2157 = vmatpush1.msra.mxu0 %v2128
    %2158 = vmatprep.subr.mxu0 0.0
    %2159 = vmatpush1.msra.mxu0 %v2129
    %2160 = vmatprep.subr.mxu0 0.0
    %2161 = vmatpush1.msra.mxu0 %v2130
    %2162 = vmatprep.subr.mxu0 0.0
    %2163 = vmatpush1.msra.mxu0 %v2131
    %2164 = vmatprep.subr.mxu0 0.0
    %2165 = vmatpush1.msra.mxu0 0.0
    %2166 = vmatprep.subr.mxu0 0.0
    %2167 = vmatpush1.msra.mxu0 0.0
    %2168 = vmatprep.subr.mxu0 0.0
    %2169 = vmatpush1.msra.mxu0 0.0
    %2170 = vmatprep.subr.mxu0 0.0
    %2171 = vmatpush1.msra.mxu0 0.0
    %2172 = vmatprep.subr.mxu0 0.0
    %2173 = vmatpush1.msra.mxu0 0.0
    %2174 = vmatprep.subr.mxu0 0.0
    %2175 = vmatpush1.msra.mxu0 0.0
    %2176 = vmatprep.subr.mxu0 0.0
    %2177 = vmatpush1.msra.mxu0 0.0
    %2178 = vmatprep.subr.mxu0 0.0
    %2179 = vmatpush1.msra.mxu0 0.0
    %2180 = vmatprep.subr.mxu0 0.0
    %2181 = vmatpush1.msra.mxu0 0.0
    %2182 = vmatprep.subr.mxu0 0.0
    %2183 = vmatpush1.msra.mxu0 0.0
    %2184 = vmatprep.subr.mxu0 0.0
    %2185 = vmatpush1.msra.mxu0 0.0
    %2186 = vmatprep.subr.mxu0 0.0
    %2187 = vmatpush1.msra.mxu0 0.0
    %2188 = vmatprep.subr.mxu0 0.0
    %2189 = vmatpush1.msra.mxu0 0.0
    %2190 = vmatprep.subr.mxu0 0.0
    %2191 = vmatpush1.msra.mxu0 0.0
    %2192 = vmatprep.subr.mxu0 0.0
    %2193 = vmatpush1.msra.mxu0 0.0
    %2194 = vmatprep.subr.mxu0 0.0
    %2195 = vmatpush1.msra.mxu0 0.0
    %2196 = vmatprep.subr.mxu0 0.0
    %2197 = vmatpush1.msra.mxu0 0.0
    %2198 = vmatprep.subr.mxu0 0.0
    %2199 = vmatpush1.msra.mxu0 0.0
    %2200 = vmatprep.subr.mxu0 0.0
    %2201 = vmatpush1.msra.mxu0 0.0
    %2202 = vmatprep.subr.mxu0 0.0
    %2203 = vmatpush1.msra.mxu0 0.0
    %2204 = vmatprep.subr.mxu0 0.0
    %2205 = vmatpush1.msra.mxu0 0.0
    %2206 = vmatprep.subr.mxu0 0.0
    %2207 = vmatpush1.msra.mxu0 0.0
    %2208 = vmatprep.subr.mxu0 0.0
    %2209 = vmatpush1.msra.mxu0 0.0
    %2210 = vmatprep.subr.mxu0 0.0
    %2211 = vmatpush1.msra.mxu0 0.0
    %2212 = vmatprep.subr.mxu0 0.0
    %2213 = vmatpush1.msra.mxu0 0.0
    %2214 = vmatprep.subr.mxu0 0.0
    %2215 = vmatpush1.msra.mxu0 0.0
    %2216 = vmatprep.subr.mxu0 0.0
    %2217 = vmatpush1.msra.mxu0 0.0
    %2218 = vmatprep.subr.mxu0 0.0
    %2219 = vmatpush1.msra.mxu0 0.0
    %2220 = vmatprep.mubr.f32.mxu0 0.0
    %2221 = vmatmul.mubr.f32.gmra.mrb[0].mxu0 %v2133
    %v2222 = vpop.f32.mrb[0].mxu0
    %v2223 = vadd.f32 0.0, %v2222
    %v2224 = vpop.f32.mrb[0].mxu0
    %2225 = vmatprep.mubr.f32.mxu0 0.0
    %2226 = vmatmul.mubr.f32.gmra.mrb[0].mxu0 %v2136
    %v2227 = vpop.f32.mrb[0].mxu0
    %v2228 = vadd.f32 0.0, %v2227
    %v2229 = vpop.f32.mrb[0].mxu0
    %2230 = vmatprep.mubr.f32.mxu0 0.0
    %2231 = vmatmul.mubr.f32.gmra.mrb[0].mxu0 %v2139
    %v2232 = vpop.f32.mrb[0].mxu0
    %v2233 = vadd.f32 0.0, %v2232
    %v2234 = vpop.f32.mrb[0].mxu0
    %2235 = vmatprep.mubr.f32.mxu0 0.0
    %2236 = vmatmul.mubr.f32.gmra.mrb[0].mxu0 %v2142
    %v2237 = vpop.f32.mrb[0].mxu0
    %v2238 = vadd.f32 0.0, %v2237
    %v2239 = vpop.f32.mrb[0].mxu0
    %2240 = vmatprep.mubr.f32.mxu0 0.0
    %2241 = vmatmul.mubr.f32.gmra.mrb[0].mxu0 %v2145
    %v2242 = vpop.f32.mrb[0].mxu0
    %v2243 = vadd.f32 0.0, %v2242
    %v2244 = vpop.f32.mrb[0].mxu0
    %2245 = vmatprep.mubr.f32.mxu0 0.0
    %2246 = vmatmul.mubr.f32.gmra.mrb[0].mxu0 %v2148
    %v2247 = vpop.f32.mrb[0].mxu0
    %v2248 = vadd.f32 0.0, %v2247
    %v2249 = vpop.f32.mrb[0].mxu0
    %2250 = vmatprep.mubr.f32.mxu0 0.0
    %2251 = vmatmul.mubr.f32.gmra.mrb[0].mxu0 %v2151
    %v2252 = vpop.f32.mrb[0].mxu0
    %v2253 = vadd.f32 0.0, %v2252
    %v2254 = vpop.f32.mrb[0].mxu0
    %2255 = vmatprep.mubr.f32.mxu0 0.0
    %2256 = vmatmul.mubr.f32.gmra.mrb[0].mxu0 %v2154
    %v2257 = vpop.f32.mrb[0].mxu0
    %v2258 = vadd.f32 0.0, %v2257
    %v2259 = vpop.f32.mrb[0].mxu0
    %2260 = vdwg.mxu0
    %v2262 = vsel %vm445, %v2108, 0
    %v2265 = vsel %vm445, %v2109, 0
    %v2268 = vsel %vm445, %v2110, 0
    %v2271 = vsel %vm445, %v2111, 0
    %v2274 = vsel %vm445, %v2112, 0
    %v2277 = vsel %vm445, %v2113, 0
    %v2280 = vsel %vm445, %v2114, 0
    %v2283 = vsel %vm445, %v2115, 0
    %2285 = vmatprep.subr.mxu0 0.0
    %2286 = vmatpush1.msra.mxu0 %v2124
    %2287 = vmatprep.subr.mxu0 0.0
    %2288 = vmatpush1.msra.mxu0 %v2125
    %2289 = vmatprep.subr.mxu0 0.0
    %2290 = vmatpush1.msra.mxu0 %v2126
    %2291 = vmatprep.subr.mxu0 0.0
    %2292 = vmatpush1.msra.mxu0 %v2127
    %2293 = vmatprep.subr.mxu0 0.0
    %2294 = vmatpush1.msra.mxu0 0.0
    %2295 = vmatprep.subr.mxu0 0.0
    %2296 = vmatpush1.msra.mxu0 0.0
    %2297 = vmatprep.subr.mxu0 0.0
    %2298 = vmatpush1.msra.mxu0 0.0
    %2299 = vmatprep.subr.mxu0 0.0
    %2300 = vmatpush1.msra.mxu0 0.0
    %2301 = vmatprep.subr.mxu0 0.0
    %2302 = vmatpush1.msra.mxu0 0.0
    %2303 = vmatprep.subr.mxu0 0.0
    %2304 = vmatpush1.msra.mxu0 0.0
    %2305 = vmatprep.subr.mxu0 0.0
    %2306 = vmatpush1.msra.mxu0 0.0
    %2307 = vmatprep.subr.mxu0 0.0
    %2308 = vmatpush1.msra.mxu0 0.0
    %2309 = vmatprep.subr.mxu0 0.0
    %2310 = vmatpush1.msra.mxu0 0.0
    %2311 = vmatprep.subr.mxu0 0.0
    %2312 = vmatpush1.msra.mxu0 0.0
    %2313 = vmatprep.subr.mxu0 0.0
    %2314 = vmatpush1.msra.mxu0 0.0
    %2315 = vmatprep.subr.mxu0 0.0
    %2316 = vmatpush1.msra.mxu0 0.0
    %2317 = vmatprep.subr.mxu0 0.0
    %2318 = vmatpush1.msra.mxu0 0.0
    %2319 = vmatprep.subr.mxu0 0.0
    %2320 = vmatpush1.msra.mxu0 0.0
    %2321 = vmatprep.subr.mxu0 0.0
    %2322 = vmatpush1.msra.mxu0 0.0
    %2323 = vmatprep.subr.mxu0 0.0
    %2324 = vmatpush1.msra.mxu0 0.0
    %2325 = vmatprep.subr.mxu0 0.0
    %2326 = vmatpush1.msra.mxu0 0.0
    %2327 = vmatprep.subr.mxu0 0.0
    %2328 = vmatpush1.msra.mxu0 0.0
    %2329 = vmatprep.subr.mxu0 0.0
    %2330 = vmatpush1.msra.mxu0 0.0
    %2331 = vmatprep.subr.mxu0 0.0
    %2332 = vmatpush1.msra.mxu0 0.0
    %2333 = vmatprep.subr.mxu0 0.0
    %2334 = vmatpush1.msra.mxu0 0.0
    %2335 = vmatprep.subr.mxu0 0.0
    %2336 = vmatpush1.msra.mxu0 0.0
    %2337 = vmatprep.subr.mxu0 0.0
    %2338 = vmatpush1.msra.mxu0 0.0
    %2339 = vmatprep.subr.mxu0 0.0
    %2340 = vmatpush1.msra.mxu0 0.0
    %2341 = vmatprep.subr.mxu0 0.0
    %2342 = vmatpush1.msra.mxu0 0.0
    %2343 = vmatprep.subr.mxu0 0.0
    %2344 = vmatpush1.msra.mxu0 0.0
    %2345 = vmatprep.subr.mxu0 0.0
    %2346 = vmatpush1.msra.mxu0 0.0
    %2347 = vmatprep.subr.mxu0 0.0
    %2348 = vmatpush1.msra.mxu0 0.0
    %2349 = vmatprep.mubr.f32.mxu0 0.0
    %2350 = vmatmul.mubr.f32.gmra.mrb[0].mxu0 %v2262
    %v2351 = vpop.f32.mrb[0].mxu0
    %v2352 = vadd.f32 %v2223, %v2351
    %v2353 = vpop.f32.mrb[0].mxu0
    %2354 = vmatprep.mubr.f32.mxu0 0.0
    %2355 = vmatmul.mubr.f32.gmra.mrb[0].mxu0 %v2265
    %v2356 = vpop.f32.mrb[0].mxu0
    %v2357 = vadd.f32 %v2228, %v2356
    %v2358 = vpop.f32.mrb[0].mxu0
    %2359 = vmatprep.mubr.f32.mxu0 0.0
    %2360 = vmatmul.mubr.f32.gmra.mrb[0].mxu0 %v2268
    %v2361 = vpop.f32.mrb[0].mxu0
    %v2362 = vadd.f32 %v2233, %v2361
    %v2363 = vpop.f32.mrb[0].mxu0
    %2364 = vmatprep.mubr.f32.mxu0 0.0
    %2365 = vmatmul.mubr.f32.gmra.mrb[0].mxu0 %v2271
    %v2366 = vpop.f32.mrb[0].mxu0
    %v2367 = vadd.f32 %v2238, %v2366
    %v2368 = vpop.f32.mrb[0].mxu0
    %2369 = vmatprep.mubr.f32.mxu0 0.0
    %2370 = vmatmul.mubr.f32.gmra.mrb[0].mxu0 %v2274
    %v2371 = vpop.f32.mrb[0].mxu0
    %v2372 = vadd.f32 %v2243, %v2371
    %v2373 = vpop.f32.mrb[0].mxu0
    %2374 = vmatprep.mubr.f32.mxu0 0.0
    %2375 = vmatmul.mubr.f32.gmra.mrb[0].mxu0 %v2277
    %v2376 = vpop.f32.mrb[0].mxu0
    %v2377 = vadd.f32 %v2248, %v2376
    %v2378 = vpop.f32.mrb[0].mxu0
    %2379 = vmatprep.mubr.f32.mxu0 0.0
    %2380 = vmatmul.mubr.f32.gmra.mrb[0].mxu0 %v2280
    %v2381 = vpop.f32.mrb[0].mxu0
    %v2382 = vadd.f32 %v2253, %v2381
    %v2383 = vpop.f32.mrb[0].mxu0
    %2384 = vmatprep.mubr.f32.mxu0 0.0
    %2385 = vmatmul.mubr.f32.gmra.mrb[0].mxu0 %v2283
    %v2386 = vpop.f32.mrb[0].mxu0
    %v2387 = vadd.f32 %v2258, %v2386
    %v2388 = vpop.f32.mrb[0].mxu0
    %2389 = vdwg.mxu0
    %v2390 = vld [vmem:[%s11] sm:$0x1]
    %v2392 = vlaneseq
    %v2393 = vshrl.u32 %v2392, 7
    %v2394 = vsub.s32 0, %v2393
    %v2395 = vrot.slane %v2390, %v2394
    %v2397 = vadd.f32 %v2352, %v2395
    %v2398 = vadd.f32 %v2357, %v2395
    %v2399 = vadd.f32 %v2362, %v2395
    %v2400 = vadd.f32 %v2367, %v2395
    %v2401 = vadd.f32 %v2372, %v2395
    %v2402 = vadd.f32 %v2377, %v2395
    %v2403 = vadd.f32 %v2382, %v2395
    %v2404 = vadd.f32 %v2387, %v2395
    %2405 = vst.msk [vmem:[#allocation6] sm:$0xff] %vm292, %v2397
    %2406 = vst.msk [vmem:[#allocation6 + $0x8] sm:$0xff] %vm292, %v2398
    %2407 = vst.msk [vmem:[#allocation6 + $0x10] sm:$0xff] %vm292, %v2399
    %2408 = vst.msk [vmem:[#allocation6 + $0x18] sm:$0xff] %vm292, %v2400
    %2409 = vst.msk [vmem:[#allocation6 + $0x20] sm:$0xff] %vm292, %v2401
    %2410 = vst.msk [vmem:[#allocation6 + $0x28] sm:$0xff] %vm292, %v2402
    %2411 = vst.msk [vmem:[#allocation6 + $0x30] sm:$0xff] %vm292, %v2403
    %2412 = vst.msk [vmem:[#allocation6 + $0x38] sm:$0xff] %vm292, %v2404
    %v2413 = vld [vmem:[#allocation17] sm:$0xff]
    %v2414 = vld [vmem:[#allocation17 + $0x8] sm:$0xff]
    %v2415 = vld [vmem:[#allocation17 + $0x10] sm:$0xff]
    %v2416 = vld [vmem:[#allocation17 + $0x18] sm:$0xff]
    %v2417 = vld [vmem:[#allocation17 + $0x20] sm:$0xff]
    %v2418 = vld [vmem:[#allocation17 + $0x28] sm:$0xff]
    %v2419 = vld [vmem:[#allocation17 + $0x30] sm:$0xff]
    %v2420 = vld [vmem:[#allocation17 + $0x38] sm:$0xff]
    %2421 = vmatprep.subr.mxu0 0.0
    %2422 = vmatpush1.msra.mxu0 %v2417
    %2423 = vmatprep.subr.mxu0 0.0
    %2424 = vmatpush1.msra.mxu0 %v2418
    %2425 = vmatprep.subr.mxu0 0.0
    %2426 = vmatpush1.msra.mxu0 %v2419
    %2427 = vmatprep.subr.mxu0 0.0
    %2428 = vmatpush1.msra.mxu0 %v2420
    %2429 = vmatprep.subr.mxu0 0.0
    %2430 = vmatpush1.msra.mxu0 0.0
    %2431 = vmatprep.subr.mxu0 0.0
    %2432 = vmatpush1.msra.mxu0 0.0
    %2433 = vmatprep.subr.mxu0 0.0
    %2434 = vmatpush1.msra.mxu0 0.0
    %2435 = vmatprep.subr.mxu0 0.0
    %2436 = vmatpush1.msra.mxu0 0.0
    %2437 = vmatprep.subr.mxu0 0.0
    %2438 = vmatpush1.msra.mxu0 0.0
    %2439 = vmatprep.subr.mxu0 0.0
    %2440 = vmatpush1.msra.mxu0 0.0
    %2441 = vmatprep.subr.mxu0 0.0
    %2442 = vmatpush1.msra.mxu0 0.0
    %2443 = vmatprep.subr.mxu0 0.0
    %2444 = vmatpush1.msra.mxu0 0.0
    %2445 = vmatprep.subr.mxu0 0.0
    %2446 = vmatpush1.msra.mxu0 0.0
    %2447 = vmatprep.subr.mxu0 0.0
    %2448 = vmatpush1.msra.mxu0 0.0
    %2449 = vmatprep.subr.mxu0 0.0
    %2450 = vmatpush1.msra.mxu0 0.0
    %2451 = vmatprep.subr.mxu0 0.0
    %2452 = vmatpush1.msra.mxu0 0.0
    %2453 = vmatprep.subr.mxu0 0.0
    %2454 = vmatpush1.msra.mxu0 0.0
    %2455 = vmatprep.subr.mxu0 0.0
    %2456 = vmatpush1.msra.mxu0 0.0
    %2457 = vmatprep.subr.mxu0 0.0
    %2458 = vmatpush1.msra.mxu0 0.0
    %2459 = vmatprep.subr.mxu0 0.0
    %2460 = vmatpush1.msra.mxu0 0.0
    %2461 = vmatprep.subr.mxu0 0.0
    %2462 = vmatpush1.msra.mxu0 0.0
    %2463 = vmatprep.subr.mxu0 0.0
    %2464 = vmatpush1.msra.mxu0 0.0
    %2465 = vmatprep.subr.mxu0 0.0
    %2466 = vmatpush1.msra.mxu0 0.0
    %2467 = vmatprep.subr.mxu0 0.0
    %2468 = vmatpush1.msra.mxu0 0.0
    %2469 = vmatprep.subr.mxu0 0.0
    %2470 = vmatpush1.msra.mxu0 0.0
    %2471 = vmatprep.subr.mxu0 0.0
    %2472 = vmatpush1.msra.mxu0 0.0
    %2473 = vmatprep.subr.mxu0 0.0
    %2474 = vmatpush1.msra.mxu0 0.0
    %2475 = vmatprep.subr.mxu0 0.0
    %2476 = vmatpush1.msra.mxu0 0.0
    %2477 = vmatprep.subr.mxu0 0.0
    %2478 = vmatpush1.msra.mxu0 0.0
    %2479 = vmatprep.subr.mxu0 0.0
    %2480 = vmatpush1.msra.mxu0 0.0
    %2481 = vmatprep.subr.mxu0 0.0
    %2482 = vmatpush1.msra.mxu0 0.0
    %2483 = vmatprep.subr.mxu0 0.0
    %2484 = vmatpush1.msra.mxu0 0.0
    %2485 = vmatprep.mubr.f32.mxu0 0.0
    %2486 = vmatmul.mubr.f32.gmra.mrb[0].mxu0 %v2133
    %v2487 = vpop.f32.mrb[0].mxu0
    %v2488 = vadd.f32 0.0, %v2487
    %v2489 = vpop.f32.mrb[0].mxu0
    %2490 = vmatprep.mubr.f32.mxu0 0.0
    %2491 = vmatmul.mubr.f32.gmra.mrb[0].mxu0 %v2136
    %v2492 = vpop.f32.mrb[0].mxu0
    %v2493 = vadd.f32 0.0, %v2492
    %v2494 = vpop.f32.mrb[0].mxu0
    %2495 = vmatprep.mubr.f32.mxu0 0.0
    %2496 = vmatmul.mubr.f32.gmra.mrb[0].mxu0 %v2139
    %v2497 = vpop.f32.mrb[0].mxu0
    %v2498 = vadd.f32 0.0, %v2497
    %v2499 = vpop.f32.mrb[0].mxu0
    %2500 = vmatprep.mubr.f32.mxu0 0.0
    %2501 = vmatmul.mubr.f32.gmra.mrb[0].mxu0 %v2142
    %v2502 = vpop.f32.mrb[0].mxu0
    %v2503 = vadd.f32 0.0, %v2502
    %v2504 = vpop.f32.mrb[0].mxu0
    %2505 = vmatprep.mubr.f32.mxu0 0.0
    %2506 = vmatmul.mubr.f32.gmra.mrb[0].mxu0 %v2145
    %v2507 = vpop.f32.mrb[0].mxu0
    %v2508 = vadd.f32 0.0, %v2507
    %v2509 = vpop.f32.mrb[0].mxu0
    %2510 = vmatprep.mubr.f32.mxu0 0.0
    %2511 = vmatmul.mubr.f32.gmra.mrb[0].mxu0 %v2148
    %v2512 = vpop.f32.mrb[0].mxu0
    %v2513 = vadd.f32 0.0, %v2512
    %v2514 = vpop.f32.mrb[0].mxu0
    %2515 = vmatprep.mubr.f32.mxu0 0.0
    %2516 = vmatmul.mubr.f32.gmra.mrb[0].mxu0 %v2151
    %v2517 = vpop.f32.mrb[0].mxu0
    %v2518 = vadd.f32 0.0, %v2517
    %v2519 = vpop.f32.mrb[0].mxu0
    %2520 = vmatprep.mubr.f32.mxu0 0.0
    %2521 = vmatmul.mubr.f32.gmra.mrb[0].mxu0 %v2154
    %v2522 = vpop.f32.mrb[0].mxu0
    %v2523 = vadd.f32 0.0, %v2522
    %v2524 = vpop.f32.mrb[0].mxu0
    %2525 = vdwg.mxu0
    %2526 = vmatprep.subr.mxu0 0.0
    %2527 = vmatpush1.msra.mxu0 %v2413
    %2528 = vmatprep.subr.mxu0 0.0
    %2529 = vmatpush1.msra.mxu0 %v2414
    %2530 = vmatprep.subr.mxu0 0.0
    %2531 = vmatpush1.msra.mxu0 %v2415
    %2532 = vmatprep.subr.mxu0 0.0
    %2533 = vmatpush1.msra.mxu0 %v2416
    %2534 = vmatprep.subr.mxu0 0.0
    %2535 = vmatpush1.msra.mxu0 0.0
    %2536 = vmatprep.subr.mxu0 0.0
    %2537 = vmatpush1.msra.mxu0 0.0
    %2538 = vmatprep.subr.mxu0 0.0
    %2539 = vmatpush1.msra.mxu0 0.0
    %2540 = vmatprep.subr.mxu0 0.0
    %2541 = vmatpush1.msra.mxu0 0.0
    %2542 = vmatprep.subr.mxu0 0.0
    %2543 = vmatpush1.msra.mxu0 0.0
    %2544 = vmatprep.subr.mxu0 0.0
    %2545 = vmatpush1.msra.mxu0 0.0
    %2546 = vmatprep.subr.mxu0 0.0
    %2547 = vmatpush1.msra.mxu0 0.0
    %2548 = vmatprep.subr.mxu0 0.0
    %2549 = vmatpush1.msra.mxu0 0.0
    %2550 = vmatprep.subr.mxu0 0.0
    %2551 = vmatpush1.msra.mxu0 0.0
    %2552 = vmatprep.subr.mxu0 0.0
    %2553 = vmatpush1.msra.mxu0 0.0
    %2554 = vmatprep.subr.mxu0 0.0
    %2555 = vmatpush1.msra.mxu0 0.0
    %2556 = vmatprep.subr.mxu0 0.0
    %2557 = vmatpush1.msra.mxu0 0.0
    %2558 = vmatprep.subr.mxu0 0.0
    %2559 = vmatpush1.msra.mxu0 0.0
    %2560 = vmatprep.subr.mxu0 0.0
    %2561 = vmatpush1.msra.mxu0 0.0
    %2562 = vmatprep.subr.mxu0 0.0
    %2563 = vmatpush1.msra.mxu0 0.0
    %2564 = vmatprep.subr.mxu0 0.0
    %2565 = vmatpush1.msra.mxu0 0.0
    %2566 = vmatprep.subr.mxu0 0.0
    %2567 = vmatpush1.msra.mxu0 0.0
    %2568 = vmatprep.subr.mxu0 0.0
    %2569 = vmatpush1.msra.mxu0 0.0
    %2570 = vmatprep.subr.mxu0 0.0
    %2571 = vmatpush1.msra.mxu0 0.0
    %2572 = vmatprep.subr.mxu0 0.0
    %2573 = vmatpush1.msra.mxu0 0.0
    %2574 = vmatprep.subr.mxu0 0.0
    %2575 = vmatpush1.msra.mxu0 0.0
    %2576 = vmatprep.subr.mxu0 0.0
    %2577 = vmatpush1.msra.mxu0 0.0
    %2578 = vmatprep.subr.mxu0 0.0
    %2579 = vmatpush1.msra.mxu0 0.0
    %2580 = vmatprep.subr.mxu0 0.0
    %2581 = vmatpush1.msra.mxu0 0.0
    %2582 = vmatprep.subr.mxu0 0.0
    %2583 = vmatpush1.msra.mxu0 0.0
    %2584 = vmatprep.subr.mxu0 0.0
    %2585 = vmatpush1.msra.mxu0 0.0
    %2586 = vmatprep.subr.mxu0 0.0
    %2587 = vmatpush1.msra.mxu0 0.0
    %2588 = vmatprep.subr.mxu0 0.0
    %2589 = vmatpush1.msra.mxu0 0.0
    %2590 = vmatprep.mubr.f32.mxu0 0.0
    %2591 = vmatmul.mubr.f32.gmra.mrb[0].mxu0 %v2262
    %v2592 = vpop.f32.mrb[0].mxu0
    %v2593 = vadd.f32 %v2488, %v2592
    %v2594 = vpop.f32.mrb[0].mxu0
    %2595 = vmatprep.mubr.f32.mxu0 0.0
    %2596 = vmatmul.mubr.f32.gmra.mrb[0].mxu0 %v2265
    %v2597 = vpop.f32.mrb[0].mxu0
    %v2598 = vadd.f32 %v2493, %v2597
    %v2599 = vpop.f32.mrb[0].mxu0
    %2600 = vmatprep.mubr.f32.mxu0 0.0
    %2601 = vmatmul.mubr.f32.gmra.mrb[0].mxu0 %v2268
    %v2602 = vpop.f32.mrb[0].mxu0
    %v2603 = vadd.f32 %v2498, %v2602
    %v2604 = vpop.f32.mrb[0].mxu0
    %2605 = vmatprep.mubr.f32.mxu0 0.0
    %2606 = vmatmul.mubr.f32.gmra.mrb[0].mxu0 %v2271
    %v2607 = vpop.f32.mrb[0].mxu0
    %v2608 = vadd.f32 %v2503, %v2607
    %v2609 = vpop.f32.mrb[0].mxu0
    %2610 = vmatprep.mubr.f32.mxu0 0.0
    %2611 = vmatmul.mubr.f32.gmra.mrb[0].mxu0 %v2274
    %v2612 = vpop.f32.mrb[0].mxu0
    %v2613 = vadd.f32 %v2508, %v2612
    %v2614 = vpop.f32.mrb[0].mxu0
    %2615 = vmatprep.mubr.f32.mxu0 0.0
    %2616 = vmatmul.mubr.f32.gmra.mrb[0].mxu0 %v2277
    %v2617 = vpop.f32.mrb[0].mxu0
    %v2618 = vadd.f32 %v2513, %v2617
    %v2619 = vpop.f32.mrb[0].mxu0
    %2620 = vmatprep.mubr.f32.mxu0 0.0
    %2621 = vmatmul.mubr.f32.gmra.mrb[0].mxu0 %v2280
    %v2622 = vpop.f32.mrb[0].mxu0
    %v2623 = vadd.f32 %v2518, %v2622
    %v2624 = vpop.f32.mrb[0].mxu0
    %2625 = vmatprep.mubr.f32.mxu0 0.0
    %2626 = vmatmul.mubr.f32.gmra.mrb[0].mxu0 %v2283
    %v2627 = vpop.f32.mrb[0].mxu0
    %v2628 = vadd.f32 %v2523, %v2627
    %v2629 = vpop.f32.mrb[0].mxu0
    %2630 = vdwg.mxu0
    %v2631 = vld [vmem:[%s15] sm:$0x1]
    %v2633 = vlaneseq
    %v2634 = vshrl.u32 %v2633, 7
    %v2635 = vsub.s32 0, %v2634
    %v2636 = vrot.slane %v2631, %v2635
    %v2638 = vadd.f32 %v2593, %v2636
    %v2639 = vadd.f32 %v2598, %v2636
    %v2640 = vadd.f32 %v2603, %v2636
    %v2641 = vadd.f32 %v2608, %v2636
    %v2642 = vadd.f32 %v2613, %v2636
    %v2643 = vadd.f32 %v2618, %v2636
    %v2644 = vadd.f32 %v2623, %v2636
    %v2645 = vadd.f32 %v2628, %v2636
    %2646 = vst.msk [vmem:[#allocation7] sm:$0xff] %vm292, %v2638
    %2647 = vst.msk [vmem:[#allocation7 + $0x8] sm:$0xff] %vm292, %v2639
    %2648 = vst.msk [vmem:[#allocation7 + $0x10] sm:$0xff] %vm292, %v2640
    %2649 = vst.msk [vmem:[#allocation7 + $0x18] sm:$0xff] %vm292, %v2641
    %2650 = vst.msk [vmem:[#allocation7 + $0x20] sm:$0xff] %vm292, %v2642
    %2651 = vst.msk [vmem:[#allocation7 + $0x28] sm:$0xff] %vm292, %v2643
    %2652 = vst.msk [vmem:[#allocation7 + $0x30] sm:$0xff] %vm292, %v2644
    %2653 = vst.msk [vmem:[#allocation7 + $0x38] sm:$0xff] %vm292, %v2645
    %v2654 = vld [vmem:[#allocation16] sm:$0xff]
    %v2655 = vld [vmem:[#allocation16 + $0x8] sm:$0xff]
    %v2656 = vld [vmem:[#allocation16 + $0x10] sm:$0xff]
    %v2657 = vld [vmem:[#allocation16 + $0x18] sm:$0xff]
    %v2658 = vld [vmem:[#allocation19] sm:$0xff]
    %v2659 = vld [vmem:[#allocation19 + $0x8] sm:$0xff]
    %v2660 = vld [vmem:[#allocation19 + $0x10] sm:$0xff]
    %v2661 = vld [vmem:[#allocation19 + $0x18] sm:$0xff]
    %v2662 = vld [vmem:[%s12] sm:$0x1]
    %v2664 = vlaneseq
    %v2665 = vshrl.u32 %v2664, 7
    %v2666 = vsub.s32 0, %v2665
    %v2667 = vrot.slane %v2662, %v2666
    %v2669 = vld [vmem:[%s16] sm:$0x1]
    %v2671 = vlaneseq
    %v2672 = vshrl.u32 %v2671, 7
    %v2673 = vsub.s32 0, %v2672
    %v2674 = vrot.slane %v2669, %v2673
    %v2676 = vld [vmem:[#allocation6] sm:$0xff]
    %2677 = vmatprep.subr.mxu0 0.0
    %2678 = vmatpush1.msra.mxu0 %v2654
    %2679 = vmatprep.subr.mxu0 0.0
    %2680 = vmatpush1.msra.mxu0 %v2655
    %2681 = vmatprep.subr.mxu0 0.0
    %2682 = vmatpush1.msra.mxu0 %v2656
    %2683 = vmatprep.subr.mxu0 0.0
    %2684 = vmatpush1.msra.mxu0 %v2657
    %2685 = vmatprep.subr.mxu0 0.0
    %2686 = vmatpush1.msra.mxu0 0.0
    %2687 = vmatprep.subr.mxu0 0.0
    %2688 = vmatpush1.msra.mxu0 0.0
    %2689 = vmatprep.subr.mxu0 0.0
    %2690 = vmatpush1.msra.mxu0 0.0
    %2691 = vmatprep.subr.mxu0 0.0
    %2692 = vmatpush1.msra.mxu0 0.0
    %2693 = vmatprep.subr.mxu0 0.0
    %2694 = vmatpush1.msra.mxu0 0.0
    %2695 = vmatprep.subr.mxu0 0.0
    %2696 = vmatpush1.msra.mxu0 0.0
    %2697 = vmatprep.subr.mxu0 0.0
    %2698 = vmatpush1.msra.mxu0 0.0
    %2699 = vmatprep.subr.mxu0 0.0
    %2700 = vmatpush1.msra.mxu0 0.0
    %2701 = vmatprep.subr.mxu0 0.0
    %2702 = vmatpush1.msra.mxu0 0.0
    %2703 = vmatprep.subr.mxu0 0.0
    %2704 = vmatpush1.msra.mxu0 0.0
    %2705 = vmatprep.subr.mxu0 0.0
    %2706 = vmatpush1.msra.mxu0 0.0
    %2707 = vmatprep.subr.mxu0 0.0
    %2708 = vmatpush1.msra.mxu0 0.0
    %2709 = vmatprep.subr.mxu0 0.0
    %2710 = vmatpush1.msra.mxu0 0.0
    %2711 = vmatprep.subr.mxu0 0.0
    %2712 = vmatpush1.msra.mxu0 0.0
    %2713 = vmatprep.subr.mxu0 0.0
    %2714 = vmatpush1.msra.mxu0 0.0
    %2715 = vmatprep.subr.mxu0 0.0
    %2716 = vmatpush1.msra.mxu0 0.0
    %2717 = vmatprep.subr.mxu0 0.0
    %2718 = vmatpush1.msra.mxu0 0.0
    %2719 = vmatprep.subr.mxu0 0.0
    %2720 = vmatpush1.msra.mxu0 0.0
    %2721 = vmatprep.subr.mxu0 0.0
    %2722 = vmatpush1.msra.mxu0 0.0
    %2723 = vmatprep.subr.mxu0 0.0
    %2724 = vmatpush1.msra.mxu0 0.0
    %2725 = vmatprep.subr.mxu0 0.0
    %2726 = vmatpush1.msra.mxu0 0.0
    %2727 = vmatprep.subr.mxu0 0.0
    %2728 = vmatpush1.msra.mxu0 0.0
    %2729 = vmatprep.subr.mxu0 0.0
    %2730 = vmatpush1.msra.mxu0 0.0
    %2731 = vmatprep.subr.mxu0 0.0
    %2732 = vmatpush1.msra.mxu0 0.0
    %2733 = vmatprep.subr.mxu0 0.0
    %2734 = vmatpush1.msra.mxu0 0.0
    %2735 = vmatprep.subr.mxu0 0.0
    %2736 = vmatpush1.msra.mxu0 0.0
    %2737 = vmatprep.subr.mxu0 0.0
    %2738 = vmatpush1.msra.mxu0 0.0
    %2739 = vmatprep.subr.mxu0 0.0
    %2740 = vmatpush1.msra.mxu0 0.0
    %2741 = vmatprep.mubr.f32.mxu0 0.0
    %2742 = vmatmul.mubr.f32.gmra.mrb[0].mxu0 %v447
    %v2743 = vpop.f32.mrb[0].mxu0
    %v2744 = vadd.f32 %v2667, %v2743
    %v2745 = vpop.f32.mrb[0].mxu0
    %2746 = vdwg.mxu0
    %v2747 = vadd.f32 %v2676, %v2744
    %v2748 = vxor.u32 %v2747, 2147483648
    %v2749 = vmul.f32 %v2748, 1.442695
    %v2750 = vpow.pop %v2749
    %v2751 = vadd.f32 %v2750, 1.0
    %v2752 = vrcp.pop %v2751
    %v2753 = vmul.f32 1.0, %v2752
    %2755 = vrot.lane.b32.xlu0 %v2744, 64
    %v2756 = vpop.permute.xlu0 %2755
    %v2758 = vmul.f32 %v2753, %v2756
    %2760 = vrot.lane.b32.xlu0 %v2758, 64
    %v2761 = vpop.permute.xlu0 %2760
    %v2763 = vadd.f32 %v2676, %v2761
    %v2764 = vtanh.pop %v2763
    %v2765 = vsub.f32 1.0, %v2753
    %2767 = vrot.lane.b32.xlu0 %v2764, 96
    %v2768 = vpop.permute.xlu0 %2767
    %v2770 = vmul.f32 %v2765, %v2768
    %v2771 = vmul.f32 %v2753, 0.0
    %v2772 = vadd.f32 %v2770, %v2771
    %v2773 = vld [vmem:[#allocation7 + $0x38] sm:$0xff]
    %2774 = vmatprep.subr.mxu0 0.0
    %2775 = vmatpush1.msra.mxu0 %v2658
    %2776 = vmatprep.subr.mxu0 0.0
    %2777 = vmatpush1.msra.mxu0 %v2659
    %2778 = vmatprep.subr.mxu0 0.0
    %2779 = vmatpush1.msra.mxu0 %v2660
    %2780 = vmatprep.subr.mxu0 0.0
    %2781 = vmatpush1.msra.mxu0 %v2661
    %2782 = vmatprep.subr.mxu0 0.0
    %2783 = vmatpush1.msra.mxu0 0.0
    %2784 = vmatprep.subr.mxu0 0.0
    %2785 = vmatpush1.msra.mxu0 0.0
    %2786 = vmatprep.subr.mxu0 0.0
    %2787 = vmatpush1.msra.mxu0 0.0
    %2788 = vmatprep.subr.mxu0 0.0
    %2789 = vmatpush1.msra.mxu0 0.0
    %2790 = vmatprep.subr.mxu0 0.0
    %2791 = vmatpush1.msra.mxu0 0.0
    %2792 = vmatprep.subr.mxu0 0.0
    %2793 = vmatpush1.msra.mxu0 0.0
    %2794 = vmatprep.subr.mxu0 0.0
    %2795 = vmatpush1.msra.mxu0 0.0
    %2796 = vmatprep.subr.mxu0 0.0
    %2797 = vmatpush1.msra.mxu0 0.0
    %2798 = vmatprep.subr.mxu0 0.0
    %2799 = vmatpush1.msra.mxu0 0.0
    %2800 = vmatprep.subr.mxu0 0.0
    %2801 = vmatpush1.msra.mxu0 0.0
    %2802 = vmatprep.subr.mxu0 0.0
    %2803 = vmatpush1.msra.mxu0 0.0
    %2804 = vmatprep.subr.mxu0 0.0
    %2805 = vmatpush1.msra.mxu0 0.0
    %2806 = vmatprep.subr.mxu0 0.0
    %2807 = vmatpush1.msra.mxu0 0.0
    %2808 = vmatprep.subr.mxu0 0.0
    %2809 = vmatpush1.msra.mxu0 0.0
    %2810 = vmatprep.subr.mxu0 0.0
    %2811 = vmatpush1.msra.mxu0 0.0
    %2812 = vmatprep.subr.mxu0 0.0
    %2813 = vmatpush1.msra.mxu0 0.0
    %2814 = vmatprep.subr.mxu0 0.0
    %2815 = vmatpush1.msra.mxu0 0.0
    %2816 = vmatprep.subr.mxu0 0.0
    %2817 = vmatpush1.msra.mxu0 0.0
    %2818 = vmatprep.subr.mxu0 0.0
    %2819 = vmatpush1.msra.mxu0 0.0
    %2820 = vmatprep.subr.mxu0 0.0
    %2821 = vmatpush1.msra.mxu0 0.0
    %2822 = vmatprep.subr.mxu0 0.0
    %2823 = vmatpush1.msra.mxu0 0.0
    %2824 = vmatprep.subr.mxu0 0.0
    %2825 = vmatpush1.msra.mxu0 0.0
    %2826 = vmatprep.subr.mxu0 0.0
    %2827 = vmatpush1.msra.mxu0 0.0
    %2828 = vmatprep.subr.mxu0 0.0
    %2829 = vmatpush1.msra.mxu0 0.0
    %2830 = vmatprep.subr.mxu0 0.0
    %2831 = vmatpush1.msra.mxu0 0.0
    %2832 = vmatprep.subr.mxu0 0.0
    %2833 = vmatpush1.msra.mxu0 0.0
    %2834 = vmatprep.subr.mxu0 0.0
    %2835 = vmatpush1.msra.mxu0 0.0
    %2836 = vmatprep.subr.mxu0 0.0
    %2837 = vmatpush1.msra.mxu0 0.0
    %2838 = vmatprep.mubr.f32.mxu0 0.0
    %2839 = vmatmul.mubr.f32.gmra.mrb[0].mxu0 %v447
    %v2840 = vpop.f32.mrb[0].mxu0
    %v2841 = vadd.f32 %v2674, %v2840
    %v2842 = vpop.f32.mrb[0].mxu0
    %2843 = vdwg.mxu0
    %v2844 = vadd.f32 %v2773, %v2841
    %v2845 = vxor.u32 %v2844, 2147483648
    %v2846 = vmul.f32 %v2845, 1.442695
    %v2847 = vpow.pop %v2846
    %v2848 = vadd.f32 %v2847, 1.0
    %v2849 = vrcp.pop %v2848
    %v2850 = vmul.f32 1.0, %v2849
    %2852 = vrot.lane.b32.xlu0 %v2841, 64
    %v2853 = vpop.permute.xlu0 %2852
    %v2855 = vmul.f32 %v2850, %v2853
    %2857 = vrot.lane.b32.xlu0 %v2855, 64
    %v2858 = vpop.permute.xlu0 %2857
    %v2860 = vadd.f32 %v2773, %v2858
    %v2861 = vtanh.pop %v2860
    %v2862 = vsub.f32 1.0, %v2850
    %2864 = vrot.lane.b32.xlu0 %v2861, 96
    %v2865 = vpop.permute.xlu0 %2864
    %v2867 = vmul.f32 %v2862, %v2865
    %v2868 = vmul.f32 %v2850, 0.0
    %v2869 = vadd.f32 %v2867, %v2868
    %v2870 = vld [vmem:[#allocation6 + $0x8] sm:$0xff]
    %2872 = vrot.lane.b32.xlu0 %v2772, 96
    %v2873 = vpop.permute.xlu0 %2872
    %v2874 = vsel %vm445, %v2873, 0
    %2876 = vmatprep.subr.mxu0 0.0
    %2877 = vmatpush1.msra.mxu0 %v2654
    %2878 = vmatprep.subr.mxu0 0.0
    %2879 = vmatpush1.msra.mxu0 %v2655
    %2880 = vmatprep.subr.mxu0 0.0
    %2881 = vmatpush1.msra.mxu0 %v2656
    %2882 = vmatprep.subr.mxu0 0.0
    %2883 = vmatpush1.msra.mxu0 %v2657
    %2884 = vmatprep.subr.mxu0 0.0
    %2885 = vmatpush1.msra.mxu0 0.0
    %2886 = vmatprep.subr.mxu0 0.0
    %2887 = vmatpush1.msra.mxu0 0.0
    %2888 = vmatprep.subr.mxu0 0.0
    %2889 = vmatpush1.msra.mxu0 0.0
    %2890 = vmatprep.subr.mxu0 0.0
    %2891 = vmatpush1.msra.mxu0 0.0
    %2892 = vmatprep.subr.mxu0 0.0
    %2893 = vmatpush1.msra.mxu0 0.0
    %2894 = vmatprep.subr.mxu0 0.0
    %2895 = vmatpush1.msra.mxu0 0.0
    %2896 = vmatprep.subr.mxu0 0.0
    %2897 = vmatpush1.msra.mxu0 0.0
    %2898 = vmatprep.subr.mxu0 0.0
    %2899 = vmatpush1.msra.mxu0 0.0
    %2900 = vmatprep.subr.mxu0 0.0
    %2901 = vmatpush1.msra.mxu0 0.0
    %2902 = vmatprep.subr.mxu0 0.0
    %2903 = vmatpush1.msra.mxu0 0.0
    %2904 = vmatprep.subr.mxu0 0.0
    %2905 = vmatpush1.msra.mxu0 0.0
    %2906 = vmatprep.subr.mxu0 0.0
    %2907 = vmatpush1.msra.mxu0 0.0
    %2908 = vmatprep.subr.mxu0 0.0
    %2909 = vmatpush1.msra.mxu0 0.0
    %2910 = vmatprep.subr.mxu0 0.0
    %2911 = vmatpush1.msra.mxu0 0.0
    %2912 = vmatprep.subr.mxu0 0.0
    %2913 = vmatpush1.msra.mxu0 0.0
    %2914 = vmatprep.subr.mxu0 0.0
    %2915 = vmatpush1.msra.mxu0 0.0
    %2916 = vmatprep.subr.mxu0 0.0
    %2917 = vmatpush1.msra.mxu0 0.0
    %2918 = vmatprep.subr.mxu0 0.0
    %2919 = vmatpush1.msra.mxu0 0.0
    %2920 = vmatprep.subr.mxu0 0.0
    %2921 = vmatpush1.msra.mxu0 0.0
    %2922 = vmatprep.subr.mxu0 0.0
    %2923 = vmatpush1.msra.mxu0 0.0
    %2924 = vmatprep.subr.mxu0 0.0
    %2925 = vmatpush1.msra.mxu0 0.0
    %2926 = vmatprep.subr.mxu0 0.0
    %2927 = vmatpush1.msra.mxu0 0.0
    %2928 = vmatprep.subr.mxu0 0.0
    %2929 = vmatpush1.msra.mxu0 0.0
    %2930 = vmatprep.subr.mxu0 0.0
    %2931 = vmatpush1.msra.mxu0 0.0
    %2932 = vmatprep.subr.mxu0 0.0
    %2933 = vmatpush1.msra.mxu0 0.0
    %2934 = vmatprep.subr.mxu0 0.0
    %2935 = vmatpush1.msra.mxu0 0.0
    %2936 = vmatprep.subr.mxu0 0.0
    %2937 = vmatpush1.msra.mxu0 0.0
    %2938 = vmatprep.subr.mxu0 0.0
    %2939 = vmatpush1.msra.mxu0 0.0
    %2940 = vmatprep.mubr.f32.mxu0 0.0
    %2941 = vmatmul.mubr.f32.gmra.mrb[0].mxu0 %v2874
    %v2942 = vpop.f32.mrb[0].mxu0
    %v2943 = vadd.f32 %v2667, %v2942
    %v2944 = vpop.f32.mrb[0].mxu0
    %2945 = vdwg.mxu0
    %v2946 = vadd.f32 %v2870, %v2943
    %v2947 = vxor.u32 %v2946, 2147483648
    %v2948 = vmul.f32 %v2947, 1.442695
    %v2949 = vpow.pop %v2948
    %v2950 = vadd.f32 %v2949, 1.0
    %v2951 = vrcp.pop %v2950
    %v2952 = vmul.f32 1.0, %v2951
    %2954 = vrot.lane.b32.xlu0 %v2943, 64
    %v2955 = vpop.permute.xlu0 %2954
    %v2957 = vmul.f32 %v2952, %v2955
    %2959 = vrot.lane.b32.xlu0 %v2957, 64
    %v2960 = vpop.permute.xlu0 %2959
    %v2962 = vadd.f32 %v2870, %v2960
    %v2963 = vtanh.pop %v2962
    %v2964 = vsub.f32 1.0, %v2952
    %2966 = vrot.lane.b32.xlu0 %v2963, 96
    %v2967 = vpop.permute.xlu0 %2966
    %v2969 = vmul.f32 %v2964, %v2967
    %v2970 = vmul.f32 %v2952, %v2772
    %v2971 = vadd.f32 %v2969, %v2970
    %v2972 = vld [vmem:[#allocation7 + $0x30] sm:$0xff]
    %2974 = vrot.lane.b32.xlu0 %v2869, 96
    %v2975 = vpop.permute.xlu0 %2974
    %v2976 = vsel %vm445, %v2975, 0
    %2978 = vmatprep.subr.mxu0 0.0
    %2979 = vmatpush1.msra.mxu0 %v2658
    %2980 = vmatprep.subr.mxu0 0.0
    %2981 = vmatpush1.msra.mxu0 %v2659
    %2982 = vmatprep.subr.mxu0 0.0
    %2983 = vmatpush1.msra.mxu0 %v2660
    %2984 = vmatprep.subr.mxu0 0.0
    %2985 = vmatpush1.msra.mxu0 %v2661
    %2986 = vmatprep.subr.mxu0 0.0
    %2987 = vmatpush1.msra.mxu0 0.0
    %2988 = vmatprep.subr.mxu0 0.0
    %2989 = vmatpush1.msra.mxu0 0.0
    %2990 = vmatprep.subr.mxu0 0.0
    %2991 = vmatpush1.msra.mxu0 0.0
    %2992 = vmatprep.subr.mxu0 0.0
    %2993 = vmatpush1.msra.mxu0 0.0
    %2994 = vmatprep.subr.mxu0 0.0
    %2995 = vmatpush1.msra.mxu0 0.0
    %2996 = vmatprep.subr.mxu0 0.0
    %2997 = vmatpush1.msra.mxu0 0.0
    %2998 = vmatprep.subr.mxu0 0.0
    %2999 = vmatpush1.msra.mxu0 0.0
    %3000 = vmatprep.subr.mxu0 0.0
    %3001 = vmatpush1.msra.mxu0 0.0
    %3002 = vmatprep.subr.mxu0 0.0
    %3003 = vmatpush1.msra.mxu0 0.0
    %3004 = vmatprep.subr.mxu0 0.0
    %3005 = vmatpush1.msra.mxu0 0.0
    %3006 = vmatprep.subr.mxu0 0.0
    %3007 = vmatpush1.msra.mxu0 0.0
    %3008 = vmatprep.subr.mxu0 0.0
    %3009 = vmatpush1.msra.mxu0 0.0
    %3010 = vmatprep.subr.mxu0 0.0
    %3011 = vmatpush1.msra.mxu0 0.0
    %3012 = vmatprep.subr.mxu0 0.0
    %3013 = vmatpush1.msra.mxu0 0.0
    %3014 = vmatprep.subr.mxu0 0.0
    %3015 = vmatpush1.msra.mxu0 0.0
    %3016 = vmatprep.subr.mxu0 0.0
    %3017 = vmatpush1.msra.mxu0 0.0
    %3018 = vmatprep.subr.mxu0 0.0
    %3019 = vmatpush1.msra.mxu0 0.0
    %3020 = vmatprep.subr.mxu0 0.0
    %3021 = vmatpush1.msra.mxu0 0.0
    %3022 = vmatprep.subr.mxu0 0.0
    %3023 = vmatpush1.msra.mxu0 0.0
    %3024 = vmatprep.subr.mxu0 0.0
    %3025 = vmatpush1.msra.mxu0 0.0
    %3026 = vmatprep.subr.mxu0 0.0
    %3027 = vmatpush1.msra.mxu0 0.0
    %3028 = vmatprep.subr.mxu0 0.0
    %3029 = vmatpush1.msra.mxu0 0.0
    %3030 = vmatprep.subr.mxu0 0.0
    %3031 = vmatpush1.msra.mxu0 0.0
    %3032 = vmatprep.subr.mxu0 0.0
    %3033 = vmatpush1.msra.mxu0 0.0
    %3034 = vmatprep.subr.mxu0 0.0
    %3035 = vmatpush1.msra.mxu0 0.0
    %3036 = vmatprep.subr.mxu0 0.0
    %3037 = vmatpush1.msra.mxu0 0.0
    %3038 = vmatprep.subr.mxu0 0.0
    %3039 = vmatpush1.msra.mxu0 0.0
    %3040 = vmatprep.subr.mxu0 0.0
    %3041 = vmatpush1.msra.mxu0 0.0
    %3042 = vmatprep.mubr.f32.mxu0 0.0
    %3043 = vmatmul.mubr.f32.gmra.mrb[0].mxu0 %v2976
    %v3044 = vpop.f32.mrb[0].mxu0
    %v3045 = vadd.f32 %v2674, %v3044
    %v3046 = vpop.f32.mrb[0].mxu0
    %3047 = vdwg.mxu0
    %v3048 = vadd.f32 %v2972, %v3045
    %v3049 = vxor.u32 %v3048, 2147483648
    %v3050 = vmul.f32 %v3049, 1.442695
    %v3051 = vpow.pop %v3050
    %v3052 = vadd.f32 %v3051, 1.0
    %v3053 = vrcp.pop %v3052
    %v3054 = vmul.f32 1.0, %v3053
    %3056 = vrot.lane.b32.xlu0 %v3045, 64
    %v3057 = vpop.permute.xlu0 %3056
    %v3059 = vmul.f32 %v3054, %v3057
    %3061 = vrot.lane.b32.xlu0 %v3059, 64
    %v3062 = vpop.permute.xlu0 %3061
    %v3064 = vadd.f32 %v2972, %v3062
    %v3065 = vtanh.pop %v3064
    %v3066 = vsub.f32 1.0, %v3054
    %3068 = vrot.lane.b32.xlu0 %v3065, 96
    %v3069 = vpop.permute.xlu0 %3068
    %v3071 = vmul.f32 %v3066, %v3069
    %v3072 = vmul.f32 %v3054, %v2869
    %v3073 = vadd.f32 %v3071, %v3072
    %v3074 = vld [vmem:[#allocation6 + $0x10] sm:$0xff]
    %3076 = vrot.lane.b32.xlu0 %v2971, 96
    %v3077 = vpop.permute.xlu0 %3076
    %v3078 = vsel %vm445, %v3077, 0
    %3080 = vmatprep.subr.mxu0 0.0
    %3081 = vmatpush1.msra.mxu0 %v2654
    %3082 = vmatprep.subr.mxu0 0.0
    %3083 = vmatpush1.msra.mxu0 %v2655
    %3084 = vmatprep.subr.mxu0 0.0
    %3085 = vmatpush1.msra.mxu0 %v2656
    %3086 = vmatprep.subr.mxu0 0.0
    %3087 = vmatpush1.msra.mxu0 %v2657
    %3088 = vmatprep.subr.mxu0 0.0
    %3089 = vmatpush1.msra.mxu0 0.0
    %3090 = vmatprep.subr.mxu0 0.0
    %3091 = vmatpush1.msra.mxu0 0.0
    %3092 = vmatprep.subr.mxu0 0.0
    %3093 = vmatpush1.msra.mxu0 0.0
    %3094 = vmatprep.subr.mxu0 0.0
    %3095 = vmatpush1.msra.mxu0 0.0
    %3096 = vmatprep.subr.mxu0 0.0
    %3097 = vmatpush1.msra.mxu0 0.0
    %3098 = vmatprep.subr.mxu0 0.0
    %3099 = vmatpush1.msra.mxu0 0.0
    %3100 = vmatprep.subr.mxu0 0.0
    %3101 = vmatpush1.msra.mxu0 0.0
    %3102 = vmatprep.subr.mxu0 0.0
    %3103 = vmatpush1.msra.mxu0 0.0
    %3104 = vmatprep.subr.mxu0 0.0
    %3105 = vmatpush1.msra.mxu0 0.0
    %3106 = vmatprep.subr.mxu0 0.0
    %3107 = vmatpush1.msra.mxu0 0.0
    %3108 = vmatprep.subr.mxu0 0.0
    %3109 = vmatpush1.msra.mxu0 0.0
    %3110 = vmatprep.subr.mxu0 0.0
    %3111 = vmatpush1.msra.mxu0 0.0
    %3112 = vmatprep.subr.mxu0 0.0
    %3113 = vmatpush1.msra.mxu0 0.0
    %3114 = vmatprep.subr.mxu0 0.0
    %3115 = vmatpush1.msra.mxu0 0.0
    %3116 = vmatprep.subr.mxu0 0.0
    %3117 = vmatpush1.msra.mxu0 0.0
    %3118 = vmatprep.subr.mxu0 0.0
    %3119 = vmatpush1.msra.mxu0 0.0
    %3120 = vmatprep.subr.mxu0 0.0
    %3121 = vmatpush1.msra.mxu0 0.0
    %3122 = vmatprep.subr.mxu0 0.0
    %3123 = vmatpush1.msra.mxu0 0.0
    %3124 = vmatprep.subr.mxu0 0.0
    %3125 = vmatpush1.msra.mxu0 0.0
    %3126 = vmatprep.subr.mxu0 0.0
    %3127 = vmatpush1.msra.mxu0 0.0
    %3128 = vmatprep.subr.mxu0 0.0
    %3129 = vmatpush1.msra.mxu0 0.0
    %3130 = vmatprep.subr.mxu0 0.0
    %3131 = vmatpush1.msra.mxu0 0.0
    %3132 = vmatprep.subr.mxu0 0.0
    %3133 = vmatpush1.msra.mxu0 0.0
    %3134 = vmatprep.subr.mxu0 0.0
    %3135 = vmatpush1.msra.mxu0 0.0
    %3136 = vmatprep.subr.mxu0 0.0
    %3137 = vmatpush1.msra.mxu0 0.0
    %3138 = vmatprep.subr.mxu0 0.0
    %3139 = vmatpush1.msra.mxu0 0.0
    %3140 = vmatprep.subr.mxu0 0.0
    %3141 = vmatpush1.msra.mxu0 0.0
    %3142 = vmatprep.subr.mxu0 0.0
    %3143 = vmatpush1.msra.mxu0 0.0
    %3144 = vmatprep.mubr.f32.mxu0 0.0
    %3145 = vmatmul.mubr.f32.gmra.mrb[0].mxu0 %v3078
    %v3146 = vpop.f32.mrb[0].mxu0
    %v3147 = vadd.f32 %v2667, %v3146
    %v3148 = vpop.f32.mrb[0].mxu0
    %3149 = vdwg.mxu0
    %v3150 = vadd.f32 %v3074, %v3147
    %v3151 = vxor.u32 %v3150, 2147483648
    %v3152 = vmul.f32 %v3151, 1.442695
    %v3153 = vpow.pop %v3152
    %v3154 = vadd.f32 %v3153, 1.0
    %v3155 = vrcp.pop %v3154
    %v3156 = vmul.f32 1.0, %v3155
    %3158 = vrot.lane.b32.xlu0 %v3147, 64
    %v3159 = vpop.permute.xlu0 %3158
    %v3161 = vmul.f32 %v3156, %v3159
    %3163 = vrot.lane.b32.xlu0 %v3161, 64
    %v3164 = vpop.permute.xlu0 %3163
    %v3166 = vadd.f32 %v3074, %v3164
    %v3167 = vtanh.pop %v3166
    %v3168 = vsub.f32 1.0, %v3156
    %3170 = vrot.lane.b32.xlu0 %v3167, 96
    %v3171 = vpop.permute.xlu0 %3170
    %v3173 = vmul.f32 %v3168, %v3171
    %v3174 = vmul.f32 %v3156, %v2971
    %v3175 = vadd.f32 %v3173, %v3174
    %v3176 = vld [vmem:[#allocation7 + $0x28] sm:$0xff]
    %3178 = vrot.lane.b32.xlu0 %v3073, 96
    %v3179 = vpop.permute.xlu0 %3178
    %v3180 = vsel %vm445, %v3179, 0
    %3182 = vmatprep.subr.mxu0 0.0
    %3183 = vmatpush1.msra.mxu0 %v2658
    %3184 = vmatprep.subr.mxu0 0.0
    %3185 = vmatpush1.msra.mxu0 %v2659
    %3186 = vmatprep.subr.mxu0 0.0
    %3187 = vmatpush1.msra.mxu0 %v2660
    %3188 = vmatprep.subr.mxu0 0.0
    %3189 = vmatpush1.msra.mxu0 %v2661
    %3190 = vmatprep.subr.mxu0 0.0
    %3191 = vmatpush1.msra.mxu0 0.0
    %3192 = vmatprep.subr.mxu0 0.0
    %3193 = vmatpush1.msra.mxu0 0.0
    %3194 = vmatprep.subr.mxu0 0.0
    %3195 = vmatpush1.msra.mxu0 0.0
    %3196 = vmatprep.subr.mxu0 0.0
    %3197 = vmatpush1.msra.mxu0 0.0
    %3198 = vmatprep.subr.mxu0 0.0
    %3199 = vmatpush1.msra.mxu0 0.0
    %3200 = vmatprep.subr.mxu0 0.0
    %3201 = vmatpush1.msra.mxu0 0.0
    %3202 = vmatprep.subr.mxu0 0.0
    %3203 = vmatpush1.msra.mxu0 0.0
    %3204 = vmatprep.subr.mxu0 0.0
    %3205 = vmatpush1.msra.mxu0 0.0
    %3206 = vmatprep.subr.mxu0 0.0
    %3207 = vmatpush1.msra.mxu0 0.0
    %3208 = vmatprep.subr.mxu0 0.0
    %3209 = vmatpush1.msra.mxu0 0.0
    %3210 = vmatprep.subr.mxu0 0.0
    %3211 = vmatpush1.msra.mxu0 0.0
    %3212 = vmatprep.subr.mxu0 0.0
    %3213 = vmatpush1.msra.mxu0 0.0
    %3214 = vmatprep.subr.mxu0 0.0
    %3215 = vmatpush1.msra.mxu0 0.0
    %3216 = vmatprep.subr.mxu0 0.0
    %3217 = vmatpush1.msra.mxu0 0.0
    %3218 = vmatprep.subr.mxu0 0.0
    %3219 = vmatpush1.msra.mxu0 0.0
    %3220 = vmatprep.subr.mxu0 0.0
    %3221 = vmatpush1.msra.mxu0 0.0
    %3222 = vmatprep.subr.mxu0 0.0
    %3223 = vmatpush1.msra.mxu0 0.0
    %3224 = vmatprep.subr.mxu0 0.0
    %3225 = vmatpush1.msra.mxu0 0.0
    %3226 = vmatprep.subr.mxu0 0.0
    %3227 = vmatpush1.msra.mxu0 0.0
    %3228 = vmatprep.subr.mxu0 0.0
    %3229 = vmatpush1.msra.mxu0 0.0
    %3230 = vmatprep.subr.mxu0 0.0
    %3231 = vmatpush1.msra.mxu0 0.0
    %3232 = vmatprep.subr.mxu0 0.0
    %3233 = vmatpush1.msra.mxu0 0.0
    %3234 = vmatprep.subr.mxu0 0.0
    %3235 = vmatpush1.msra.mxu0 0.0
    %3236 = vmatprep.subr.mxu0 0.0
    %3237 = vmatpush1.msra.mxu0 0.0
    %3238 = vmatprep.subr.mxu0 0.0
    %3239 = vmatpush1.msra.mxu0 0.0
    %3240 = vmatprep.subr.mxu0 0.0
    %3241 = vmatpush1.msra.mxu0 0.0
    %3242 = vmatprep.subr.mxu0 0.0
    %3243 = vmatpush1.msra.mxu0 0.0
    %3244 = vmatprep.subr.mxu0 0.0
    %3245 = vmatpush1.msra.mxu0 0.0
    %3246 = vmatprep.mubr.f32.mxu0 0.0
    %3247 = vmatmul.mubr.f32.gmra.mrb[0].mxu0 %v3180
    %v3248 = vpop.f32.mrb[0].mxu0
    %v3249 = vadd.f32 %v2674, %v3248
    %v3250 = vpop.f32.mrb[0].mxu0
    %3251 = vdwg.mxu0
    %v3252 = vadd.f32 %v3176, %v3249
    %v3253 = vxor.u32 %v3252, 2147483648
    %v3254 = vmul.f32 %v3253, 1.442695
    %v3255 = vpow.pop %v3254
    %v3256 = vadd.f32 %v3255, 1.0
    %v3257 = vrcp.pop %v3256
    %v3258 = vmul.f32 1.0, %v3257
    %3260 = vrot.lane.b32.xlu0 %v3249, 64
    %v3261 = vpop.permute.xlu0 %3260
    %v3263 = vmul.f32 %v3258, %v3261
    %3265 = vrot.lane.b32.xlu0 %v3263, 64
    %v3266 = vpop.permute.xlu0 %3265
    %v3268 = vadd.f32 %v3176, %v3266
    %v3269 = vtanh.pop %v3268
    %v3270 = vsub.f32 1.0, %v3258
    %3272 = vrot.lane.b32.xlu0 %v3269, 96
    %v3273 = vpop.permute.xlu0 %3272
    %v3275 = vmul.f32 %v3270, %v3273
    %v3276 = vmul.f32 %v3258, %v3073
    %v3277 = vadd.f32 %v3275, %v3276
    %v3278 = vld [vmem:[#allocation6 + $0x18] sm:$0xff]
    %3280 = vrot.lane.b32.xlu0 %v3175, 96
    %v3281 = vpop.permute.xlu0 %3280
    %v3282 = vsel %vm445, %v3281, 0
    %3284 = vmatprep.subr.mxu0 0.0
    %3285 = vmatpush1.msra.mxu0 %v2654
    %3286 = vmatprep.subr.mxu0 0.0
    %3287 = vmatpush1.msra.mxu0 %v2655
    %3288 = vmatprep.subr.mxu0 0.0
    %3289 = vmatpush1.msra.mxu0 %v2656
    %3290 = vmatprep.subr.mxu0 0.0
    %3291 = vmatpush1.msra.mxu0 %v2657
    %3292 = vmatprep.subr.mxu0 0.0
    %3293 = vmatpush1.msra.mxu0 0.0
    %3294 = vmatprep.subr.mxu0 0.0
    %3295 = vmatpush1.msra.mxu0 0.0
    %3296 = vmatprep.subr.mxu0 0.0
    %3297 = vmatpush1.msra.mxu0 0.0
    %3298 = vmatprep.subr.mxu0 0.0
    %3299 = vmatpush1.msra.mxu0 0.0
    %3300 = vmatprep.subr.mxu0 0.0
    %3301 = vmatpush1.msra.mxu0 0.0
    %3302 = vmatprep.subr.mxu0 0.0
    %3303 = vmatpush1.msra.mxu0 0.0
    %3304 = vmatprep.subr.mxu0 0.0
    %3305 = vmatpush1.msra.mxu0 0.0
    %3306 = vmatprep.subr.mxu0 0.0
    %3307 = vmatpush1.msra.mxu0 0.0
    %3308 = vmatprep.subr.mxu0 0.0
    %3309 = vmatpush1.msra.mxu0 0.0
    %3310 = vmatprep.subr.mxu0 0.0
    %3311 = vmatpush1.msra.mxu0 0.0
    %3312 = vmatprep.subr.mxu0 0.0
    %3313 = vmatpush1.msra.mxu0 0.0
    %3314 = vmatprep.subr.mxu0 0.0
    %3315 = vmatpush1.msra.mxu0 0.0
    %3316 = vmatprep.subr.mxu0 0.0
    %3317 = vmatpush1.msra.mxu0 0.0
    %3318 = vmatprep.subr.mxu0 0.0
    %3319 = vmatpush1.msra.mxu0 0.0
    %3320 = vmatprep.subr.mxu0 0.0
    %3321 = vmatpush1.msra.mxu0 0.0
    %3322 = vmatprep.subr.mxu0 0.0
    %3323 = vmatpush1.msra.mxu0 0.0
    %3324 = vmatprep.subr.mxu0 0.0
    %3325 = vmatpush1.msra.mxu0 0.0
    %3326 = vmatprep.subr.mxu0 0.0
    %3327 = vmatpush1.msra.mxu0 0.0
    %3328 = vmatprep.subr.mxu0 0.0
    %3329 = vmatpush1.msra.mxu0 0.0
    %3330 = vmatprep.subr.mxu0 0.0
    %3331 = vmatpush1.msra.mxu0 0.0
    %3332 = vmatprep.subr.mxu0 0.0
    %3333 = vmatpush1.msra.mxu0 0.0
    %3334 = vmatprep.subr.mxu0 0.0
    %3335 = vmatpush1.msra.mxu0 0.0
    %3336 = vmatprep.subr.mxu0 0.0
    %3337 = vmatpush1.msra.mxu0 0.0
    %3338 = vmatprep.subr.mxu0 0.0
    %3339 = vmatpush1.msra.mxu0 0.0
    %3340 = vmatprep.subr.mxu0 0.0
    %3341 = vmatpush1.msra.mxu0 0.0
    %3342 = vmatprep.subr.mxu0 0.0
    %3343 = vmatpush1.msra.mxu0 0.0
    %3344 = vmatprep.subr.mxu0 0.0
    %3345 = vmatpush1.msra.mxu0 0.0
    %3346 = vmatprep.subr.mxu0 0.0
    %3347 = vmatpush1.msra.mxu0 0.0
    %3348 = vmatprep.mubr.f32.mxu0 0.0
    %3349 = vmatmul.mubr.f32.gmra.mrb[0].mxu0 %v3282
    %v3350 = vpop.f32.mrb[0].mxu0
    %v3351 = vadd.f32 %v2667, %v3350
    %v3352 = vpop.f32.mrb[0].mxu0
    %3353 = vdwg.mxu0
    %v3354 = vadd.f32 %v3278, %v3351
    %v3355 = vxor.u32 %v3354, 2147483648
    %v3356 = vmul.f32 %v3355, 1.442695
    %v3357 = vpow.pop %v3356
    %v3358 = vadd.f32 %v3357, 1.0
    %v3359 = vrcp.pop %v3358
    %v3360 = vmul.f32 1.0, %v3359
    %3362 = vrot.lane.b32.xlu0 %v3351, 64
    %v3363 = vpop.permute.xlu0 %3362
    %v3365 = vmul.f32 %v3360, %v3363
    %3367 = vrot.lane.b32.xlu0 %v3365, 64
    %v3368 = vpop.permute.xlu0 %3367
    %v3370 = vadd.f32 %v3278, %v3368
    %v3371 = vtanh.pop %v3370
    %v3372 = vsub.f32 1.0, %v3360
    %3374 = vrot.lane.b32.xlu0 %v3371, 96
    %v3375 = vpop.permute.xlu0 %3374
    %v3377 = vmul.f32 %v3372, %v3375
    %v3378 = vmul.f32 %v3360, %v3175
    %v3379 = vadd.f32 %v3377, %v3378
    %v3380 = vld [vmem:[#allocation7 + $0x20] sm:$0xff]
    %3382 = vrot.lane.b32.xlu0 %v3277, 96
    %v3383 = vpop.permute.xlu0 %3382
    %v3384 = vsel %vm445, %v3383, 0
    %3386 = vmatprep.subr.mxu0 0.0
    %3387 = vmatpush1.msra.mxu0 %v2658
    %3388 = vmatprep.subr.mxu0 0.0
    %3389 = vmatpush1.msra.mxu0 %v2659
    %3390 = vmatprep.subr.mxu0 0.0
    %3391 = vmatpush1.msra.mxu0 %v2660
    %3392 = vmatprep.subr.mxu0 0.0
    %3393 = vmatpush1.msra.mxu0 %v2661
    %3394 = vmatprep.subr.mxu0 0.0
    %3395 = vmatpush1.msra.mxu0 0.0
    %3396 = vmatprep.subr.mxu0 0.0
    %3397 = vmatpush1.msra.mxu0 0.0
    %3398 = vmatprep.subr.mxu0 0.0
    %3399 = vmatpush1.msra.mxu0 0.0
    %3400 = vmatprep.subr.mxu0 0.0
    %3401 = vmatpush1.msra.mxu0 0.0
    %3402 = vmatprep.subr.mxu0 0.0
    %3403 = vmatpush1.msra.mxu0 0.0
    %3404 = vmatprep.subr.mxu0 0.0
    %3405 = vmatpush1.msra.mxu0 0.0
    %3406 = vmatprep.subr.mxu0 0.0
    %3407 = vmatpush1.msra.mxu0 0.0
    %3408 = vmatprep.subr.mxu0 0.0
    %3409 = vmatpush1.msra.mxu0 0.0
    %3410 = vmatprep.subr.mxu0 0.0
    %3411 = vmatpush1.msra.mxu0 0.0
    %3412 = vmatprep.subr.mxu0 0.0
    %3413 = vmatpush1.msra.mxu0 0.0
    %3414 = vmatprep.subr.mxu0 0.0
    %3415 = vmatpush1.msra.mxu0 0.0
    %3416 = vmatprep.subr.mxu0 0.0
    %3417 = vmatpush1.msra.mxu0 0.0
    %3418 = vmatprep.subr.mxu0 0.0
    %3419 = vmatpush1.msra.mxu0 0.0
    %3420 = vmatprep.subr.mxu0 0.0
    %3421 = vmatpush1.msra.mxu0 0.0
    %3422 = vmatprep.subr.mxu0 0.0
    %3423 = vmatpush1.msra.mxu0 0.0
    %3424 = vmatprep.subr.mxu0 0.0
    %3425 = vmatpush1.msra.mxu0 0.0
    %3426 = vmatprep.subr.mxu0 0.0
    %3427 = vmatpush1.msra.mxu0 0.0
    %3428 = vmatprep.subr.mxu0 0.0
    %3429 = vmatpush1.msra.mxu0 0.0
    %3430 = vmatprep.subr.mxu0 0.0
    %3431 = vmatpush1.msra.mxu0 0.0
    %3432 = vmatprep.subr.mxu0 0.0
    %3433 = vmatpush1.msra.mxu0 0.0
    %3434 = vmatprep.subr.mxu0 0.0
    %3435 = vmatpush1.msra.mxu0 0.0
    %3436 = vmatprep.subr.mxu0 0.0
    %3437 = vmatpush1.msra.mxu0 0.0
    %3438 = vmatprep.subr.mxu0 0.0
    %3439 = vmatpush1.msra.mxu0 0.0
    %3440 = vmatprep.subr.mxu0 0.0
    %3441 = vmatpush1.msra.mxu0 0.0
    %3442 = vmatprep.subr.mxu0 0.0
    %3443 = vmatpush1.msra.mxu0 0.0
    %3444 = vmatprep.subr.mxu0 0.0
    %3445 = vmatpush1.msra.mxu0 0.0
    %3446 = vmatprep.subr.mxu0 0.0
    %3447 = vmatpush1.msra.mxu0 0.0
    %3448 = vmatprep.subr.mxu0 0.0
    %3449 = vmatpush1.msra.mxu0 0.0
    %3450 = vmatprep.mubr.f32.mxu0 0.0
    %3451 = vmatmul.mubr.f32.gmra.mrb[0].mxu0 %v3384
    %v3452 = vpop.f32.mrb[0].mxu0
    %v3453 = vadd.f32 %v2674, %v3452
    %v3454 = vpop.f32.mrb[0].mxu0
    %3455 = vdwg.mxu0
    %v3456 = vadd.f32 %v3380, %v3453
    %v3457 = vxor.u32 %v3456, 2147483648
    %v3458 = vmul.f32 %v3457, 1.442695
    %v3459 = vpow.pop %v3458
    %v3460 = vadd.f32 %v3459, 1.0
    %v3461 = vrcp.pop %v3460
    %v3462 = vmul.f32 1.0, %v3461
    %3464 = vrot.lane.b32.xlu0 %v3453, 64
    %v3465 = vpop.permute.xlu0 %3464
    %v3467 = vmul.f32 %v3462, %v3465
    %3469 = vrot.lane.b32.xlu0 %v3467, 64
    %v3470 = vpop.permute.xlu0 %3469
    %v3472 = vadd.f32 %v3380, %v3470
    %v3473 = vtanh.pop %v3472
    %v3474 = vsub.f32 1.0, %v3462
    %3476 = vrot.lane.b32.xlu0 %v3473, 96
    %v3477 = vpop.permute.xlu0 %3476
    %v3479 = vmul.f32 %v3474, %v3477
    %v3480 = vmul.f32 %v3462, %v3277
    %v3481 = vadd.f32 %v3479, %v3480
    %v3482 = vld [vmem:[#allocation6 + $0x20] sm:$0xff]
    %3484 = vrot.lane.b32.xlu0 %v3379, 96
    %v3485 = vpop.permute.xlu0 %3484
    %v3486 = vsel %vm445, %v3485, 0
    %3488 = vmatprep.subr.mxu0 0.0
    %3489 = vmatpush1.msra.mxu0 %v2654
    %3490 = vmatprep.subr.mxu0 0.0
    %3491 = vmatpush1.msra.mxu0 %v2655
    %3492 = vmatprep.subr.mxu0 0.0
    %3493 = vmatpush1.msra.mxu0 %v2656
    %3494 = vmatprep.subr.mxu0 0.0
    %3495 = vmatpush1.msra.mxu0 %v2657
    %3496 = vmatprep.subr.mxu0 0.0
    %3497 = vmatpush1.msra.mxu0 0.0
    %3498 = vmatprep.subr.mxu0 0.0
    %3499 = vmatpush1.msra.mxu0 0.0
    %3500 = vmatprep.subr.mxu0 0.0
    %3501 = vmatpush1.msra.mxu0 0.0
    %3502 = vmatprep.subr.mxu0 0.0
    %3503 = vmatpush1.msra.mxu0 0.0
    %3504 = vmatprep.subr.mxu0 0.0
    %3505 = vmatpush1.msra.mxu0 0.0
    %3506 = vmatprep.subr.mxu0 0.0
    %3507 = vmatpush1.msra.mxu0 0.0
    %3508 = vmatprep.subr.mxu0 0.0
    %3509 = vmatpush1.msra.mxu0 0.0
    %3510 = vmatprep.subr.mxu0 0.0
    %3511 = vmatpush1.msra.mxu0 0.0
    %3512 = vmatprep.subr.mxu0 0.0
    %3513 = vmatpush1.msra.mxu0 0.0
    %3514 = vmatprep.subr.mxu0 0.0
    %3515 = vmatpush1.msra.mxu0 0.0
    %3516 = vmatprep.subr.mxu0 0.0
    %3517 = vmatpush1.msra.mxu0 0.0
    %3518 = vmatprep.subr.mxu0 0.0
    %3519 = vmatpush1.msra.mxu0 0.0
    %3520 = vmatprep.subr.mxu0 0.0
    %3521 = vmatpush1.msra.mxu0 0.0
    %3522 = vmatprep.subr.mxu0 0.0
    %3523 = vmatpush1.msra.mxu0 0.0
    %3524 = vmatprep.subr.mxu0 0.0
    %3525 = vmatpush1.msra.mxu0 0.0
    %3526 = vmatprep.subr.mxu0 0.0
    %3527 = vmatpush1.msra.mxu0 0.0
    %3528 = vmatprep.subr.mxu0 0.0
    %3529 = vmatpush1.msra.mxu0 0.0
    %3530 = vmatprep.subr.mxu0 0.0
    %3531 = vmatpush1.msra.mxu0 0.0
    %3532 = vmatprep.subr.mxu0 0.0
    %3533 = vmatpush1.msra.mxu0 0.0
    %3534 = vmatprep.subr.mxu0 0.0
    %3535 = vmatpush1.msra.mxu0 0.0
    %3536 = vmatprep.subr.mxu0 0.0
    %3537 = vmatpush1.msra.mxu0 0.0
    %3538 = vmatprep.subr.mxu0 0.0
    %3539 = vmatpush1.msra.mxu0 0.0
    %3540 = vmatprep.subr.mxu0 0.0
    %3541 = vmatpush1.msra.mxu0 0.0
    %3542 = vmatprep.subr.mxu0 0.0
    %3543 = vmatpush1.msra.mxu0 0.0
    %3544 = vmatprep.subr.mxu0 0.0
    %3545 = vmatpush1.msra.mxu0 0.0
    %3546 = vmatprep.subr.mxu0 0.0
    %3547 = vmatpush1.msra.mxu0 0.0
    %3548 = vmatprep.subr.mxu0 0.0
    %3549 = vmatpush1.msra.mxu0 0.0
    %3550 = vmatprep.subr.mxu0 0.0
    %3551 = vmatpush1.msra.mxu0 0.0
    %3552 = vmatprep.mubr.f32.mxu0 0.0
    %3553 = vmatmul.mubr.f32.gmra.mrb[0].mxu0 %v3486
    %v3554 = vpop.f32.mrb[0].mxu0
    %v3555 = vadd.f32 %v2667, %v3554
    %v3556 = vpop.f32.mrb[0].mxu0
    %3557 = vdwg.mxu0
    %v3558 = vadd.f32 %v3482, %v3555
    %v3559 = vxor.u32 %v3558, 2147483648
    %v3560 = vmul.f32 %v3559, 1.442695
    %v3561 = vpow.pop %v3560
    %v3562 = vadd.f32 %v3561, 1.0
    %v3563 = vrcp.pop %v3562
    %v3564 = vmul.f32 1.0, %v3563
    %3566 = vrot.lane.b32.xlu0 %v3555, 64
    %v3567 = vpop.permute.xlu0 %3566
    %v3569 = vmul.f32 %v3564, %v3567
    %3571 = vrot.lane.b32.xlu0 %v3569, 64
    %v3572 = vpop.permute.xlu0 %3571
    %v3574 = vadd.f32 %v3482, %v3572
    %v3575 = vtanh.pop %v3574
    %v3576 = vsub.f32 1.0, %v3564
    %3578 = vrot.lane.b32.xlu0 %v3575, 96
    %v3579 = vpop.permute.xlu0 %3578
    %v3581 = vmul.f32 %v3576, %v3579
    %v3582 = vmul.f32 %v3564, %v3379
    %v3583 = vadd.f32 %v3581, %v3582
    %v3584 = vld [vmem:[#allocation7 + $0x18] sm:$0xff]
    %3586 = vrot.lane.b32.xlu0 %v3481, 96
    %v3587 = vpop.permute.xlu0 %3586
    %v3588 = vsel %vm445, %v3587, 0
    %3590 = vmatprep.subr.mxu0 0.0
    %3591 = vmatpush1.msra.mxu0 %v2658
    %3592 = vmatprep.subr.mxu0 0.0
    %3593 = vmatpush1.msra.mxu0 %v2659
    %3594 = vmatprep.subr.mxu0 0.0
    %3595 = vmatpush1.msra.mxu0 %v2660
    %3596 = vmatprep.subr.mxu0 0.0
    %3597 = vmatpush1.msra.mxu0 %v2661
    %3598 = vmatprep.subr.mxu0 0.0
    %3599 = vmatpush1.msra.mxu0 0.0
    %3600 = vmatprep.subr.mxu0 0.0
    %3601 = vmatpush1.msra.mxu0 0.0
    %3602 = vmatprep.subr.mxu0 0.0
    %3603 = vmatpush1.msra.mxu0 0.0
    %3604 = vmatprep.subr.mxu0 0.0
    %3605 = vmatpush1.msra.mxu0 0.0
    %3606 = vmatprep.subr.mxu0 0.0
    %3607 = vmatpush1.msra.mxu0 0.0
    %3608 = vmatprep.subr.mxu0 0.0
    %3609 = vmatpush1.msra.mxu0 0.0
    %3610 = vmatprep.subr.mxu0 0.0
    %3611 = vmatpush1.msra.mxu0 0.0
    %3612 = vmatprep.subr.mxu0 0.0
    %3613 = vmatpush1.msra.mxu0 0.0
    %3614 = vmatprep.subr.mxu0 0.0
    %3615 = vmatpush1.msra.mxu0 0.0
    %3616 = vmatprep.subr.mxu0 0.0
    %3617 = vmatpush1.msra.mxu0 0.0
    %3618 = vmatprep.subr.mxu0 0.0
    %3619 = vmatpush1.msra.mxu0 0.0
    %3620 = vmatprep.subr.mxu0 0.0
    %3621 = vmatpush1.msra.mxu0 0.0
    %3622 = vmatprep.subr.mxu0 0.0
    %3623 = vmatpush1.msra.mxu0 0.0
    %3624 = vmatprep.subr.mxu0 0.0
    %3625 = vmatpush1.msra.mxu0 0.0
    %3626 = vmatprep.subr.mxu0 0.0
    %3627 = vmatpush1.msra.mxu0 0.0
    %3628 = vmatprep.subr.mxu0 0.0
    %3629 = vmatpush1.msra.mxu0 0.0
    %3630 = vmatprep.subr.mxu0 0.0
    %3631 = vmatpush1.msra.mxu0 0.0
    %3632 = vmatprep.subr.mxu0 0.0
    %3633 = vmatpush1.msra.mxu0 0.0
    %3634 = vmatprep.subr.mxu0 0.0
    %3635 = vmatpush1.msra.mxu0 0.0
    %3636 = vmatprep.subr.mxu0 0.0
    %3637 = vmatpush1.msra.mxu0 0.0
    %3638 = vmatprep.subr.mxu0 0.0
    %3639 = vmatpush1.msra.mxu0 0.0
    %3640 = vmatprep.subr.mxu0 0.0
    %3641 = vmatpush1.msra.mxu0 0.0
    %3642 = vmatprep.subr.mxu0 0.0
    %3643 = vmatpush1.msra.mxu0 0.0
    %3644 = vmatprep.subr.mxu0 0.0
    %3645 = vmatpush1.msra.mxu0 0.0
    %3646 = vmatprep.subr.mxu0 0.0
    %3647 = vmatpush1.msra.mxu0 0.0
    %3648 = vmatprep.subr.mxu0 0.0
    %3649 = vmatpush1.msra.mxu0 0.0
    %3650 = vmatprep.subr.mxu0 0.0
    %3651 = vmatpush1.msra.mxu0 0.0
    %3652 = vmatprep.subr.mxu0 0.0
    %3653 = vmatpush1.msra.mxu0 0.0
    %3654 = vmatprep.mubr.f32.mxu0 0.0
    %3655 = vmatmul.mubr.f32.gmra.mrb[0].mxu0 %v3588
    %v3656 = vpop.f32.mrb[0].mxu0
    %v3657 = vadd.f32 %v2674, %v3656
    %v3658 = vpop.f32.mrb[0].mxu0
    %3659 = vdwg.mxu0
    %v3660 = vadd.f32 %v3584, %v3657
    %v3661 = vxor.u32 %v3660, 2147483648
    %v3662 = vmul.f32 %v3661, 1.442695
    %v3663 = vpow.pop %v3662
    %v3664 = vadd.f32 %v3663, 1.0
    %v3665 = vrcp.pop %v3664
    %v3666 = vmul.f32 1.0, %v3665
    %3668 = vrot.lane.b32.xlu0 %v3657, 64
    %v3669 = vpop.permute.xlu0 %3668
    %v3671 = vmul.f32 %v3666, %v3669
    %3673 = vrot.lane.b32.xlu0 %v3671, 64
    %v3674 = vpop.permute.xlu0 %3673
    %v3676 = vadd.f32 %v3584, %v3674
    %v3677 = vtanh.pop %v3676
    %v3678 = vsub.f32 1.0, %v3666
    %3680 = vrot.lane.b32.xlu0 %v3677, 96
    %v3681 = vpop.permute.xlu0 %3680
    %v3683 = vmul.f32 %v3678, %v3681
    %v3684 = vmul.f32 %v3666, %v3481
    %v3685 = vadd.f32 %v3683, %v3684
    %v3686 = vld [vmem:[#allocation6 + $0x28] sm:$0xff]
    %3688 = vrot.lane.b32.xlu0 %v3583, 96
    %v3689 = vpop.permute.xlu0 %3688
    %v3690 = vsel %vm445, %v3689, 0
    %3692 = vmatprep.subr.mxu0 0.0
    %3693 = vmatpush1.msra.mxu0 %v2654
    %3694 = vmatprep.subr.mxu0 0.0
    %3695 = vmatpush1.msra.mxu0 %v2655
    %3696 = vmatprep.subr.mxu0 0.0
    %3697 = vmatpush1.msra.mxu0 %v2656
    %3698 = vmatprep.subr.mxu0 0.0
    %3699 = vmatpush1.msra.mxu0 %v2657
    %3700 = vmatprep.subr.mxu0 0.0
    %3701 = vmatpush1.msra.mxu0 0.0
    %3702 = vmatprep.subr.mxu0 0.0
    %3703 = vmatpush1.msra.mxu0 0.0
    %3704 = vmatprep.subr.mxu0 0.0
    %3705 = vmatpush1.msra.mxu0 0.0
    %3706 = vmatprep.subr.mxu0 0.0
    %3707 = vmatpush1.msra.mxu0 0.0
    %3708 = vmatprep.subr.mxu0 0.0
    %3709 = vmatpush1.msra.mxu0 0.0
    %3710 = vmatprep.subr.mxu0 0.0
    %3711 = vmatpush1.msra.mxu0 0.0
    %3712 = vmatprep.subr.mxu0 0.0
    %3713 = vmatpush1.msra.mxu0 0.0
    %3714 = vmatprep.subr.mxu0 0.0
    %3715 = vmatpush1.msra.mxu0 0.0
    %3716 = vmatprep.subr.mxu0 0.0
    %3717 = vmatpush1.msra.mxu0 0.0
    %3718 = vmatprep.subr.mxu0 0.0
    %3719 = vmatpush1.msra.mxu0 0.0
    %3720 = vmatprep.subr.mxu0 0.0
    %3721 = vmatpush1.msra.mxu0 0.0
    %3722 = vmatprep.subr.mxu0 0.0
    %3723 = vmatpush1.msra.mxu0 0.0
    %3724 = vmatprep.subr.mxu0 0.0
    %3725 = vmatpush1.msra.mxu0 0.0
    %3726 = vmatprep.subr.mxu0 0.0
    %3727 = vmatpush1.msra.mxu0 0.0
    %3728 = vmatprep.subr.mxu0 0.0
    %3729 = vmatpush1.msra.mxu0 0.0
    %3730 = vmatprep.subr.mxu0 0.0
    %3731 = vmatpush1.msra.mxu0 0.0
    %3732 = vmatprep.subr.mxu0 0.0
    %3733 = vmatpush1.msra.mxu0 0.0
    %3734 = vmatprep.subr.mxu0 0.0
    %3735 = vmatpush1.msra.mxu0 0.0
    %3736 = vmatprep.subr.mxu0 0.0
    %3737 = vmatpush1.msra.mxu0 0.0
    %3738 = vmatprep.subr.mxu0 0.0
    %3739 = vmatpush1.msra.mxu0 0.0
    %3740 = vmatprep.subr.mxu0 0.0
    %3741 = vmatpush1.msra.mxu0 0.0
    %3742 = vmatprep.subr.mxu0 0.0
    %3743 = vmatpush1.msra.mxu0 0.0
    %3744 = vmatprep.subr.mxu0 0.0
    %3745 = vmatpush1.msra.mxu0 0.0
    %3746 = vmatprep.subr.mxu0 0.0
    %3747 = vmatpush1.msra.mxu0 0.0
    %3748 = vmatprep.subr.mxu0 0.0
    %3749 = vmatpush1.msra.mxu0 0.0
    %3750 = vmatprep.subr.mxu0 0.0
    %3751 = vmatpush1.msra.mxu0 0.0
    %3752 = vmatprep.subr.mxu0 0.0
    %3753 = vmatpush1.msra.mxu0 0.0
    %3754 = vmatprep.subr.mxu0 0.0
    %3755 = vmatpush1.msra.mxu0 0.0
    %3756 = vmatprep.mubr.f32.mxu0 0.0
    %3757 = vmatmul.mubr.f32.gmra.mrb[0].mxu0 %v3690
    %v3758 = vpop.f32.mrb[0].mxu0
    %v3759 = vadd.f32 %v2667, %v3758
    %v3760 = vpop.f32.mrb[0].mxu0
    %3761 = vdwg.mxu0
    %v3762 = vadd.f32 %v3686, %v3759
    %v3763 = vxor.u32 %v3762, 2147483648
    %v3764 = vmul.f32 %v3763, 1.442695
    %v3765 = vpow.pop %v3764
    %v3766 = vadd.f32 %v3765, 1.0
    %v3767 = vrcp.pop %v3766
    %v3768 = vmul.f32 1.0, %v3767
    %3770 = vrot.lane.b32.xlu0 %v3759, 64
    %v3771 = vpop.permute.xlu0 %3770
    %v3773 = vmul.f32 %v3768, %v3771
    %3775 = vrot.lane.b32.xlu0 %v3773, 64
    %v3776 = vpop.permute.xlu0 %3775
    %v3778 = vadd.f32 %v3686, %v3776
    %v3779 = vtanh.pop %v3778
    %v3780 = vsub.f32 1.0, %v3768
    %3782 = vrot.lane.b32.xlu0 %v3779, 96
    %v3783 = vpop.permute.xlu0 %3782
    %v3785 = vmul.f32 %v3780, %v3783
    %v3786 = vmul.f32 %v3768, %v3583
    %v3787 = vadd.f32 %v3785, %v3786
    %v3788 = vld [vmem:[#allocation7 + $0x10] sm:$0xff]
    %3790 = vrot.lane.b32.xlu0 %v3685, 96
    %v3791 = vpop.permute.xlu0 %3790
    %v3792 = vsel %vm445, %v3791, 0
    %3794 = vmatprep.subr.mxu0 0.0
    %3795 = vmatpush1.msra.mxu0 %v2658
    %3796 = vmatprep.subr.mxu0 0.0
    %3797 = vmatpush1.msra.mxu0 %v2659
    %3798 = vmatprep.subr.mxu0 0.0
    %3799 = vmatpush1.msra.mxu0 %v2660
    %3800 = vmatprep.subr.mxu0 0.0
    %3801 = vmatpush1.msra.mxu0 %v2661
    %3802 = vmatprep.subr.mxu0 0.0
    %3803 = vmatpush1.msra.mxu0 0.0
    %3804 = vmatprep.subr.mxu0 0.0
    %3805 = vmatpush1.msra.mxu0 0.0
    %3806 = vmatprep.subr.mxu0 0.0
    %3807 = vmatpush1.msra.mxu0 0.0
    %3808 = vmatprep.subr.mxu0 0.0
    %3809 = vmatpush1.msra.mxu0 0.0
    %3810 = vmatprep.subr.mxu0 0.0
    %3811 = vmatpush1.msra.mxu0 0.0
    %3812 = vmatprep.subr.mxu0 0.0
    %3813 = vmatpush1.msra.mxu0 0.0
    %3814 = vmatprep.subr.mxu0 0.0
    %3815 = vmatpush1.msra.mxu0 0.0
    %3816 = vmatprep.subr.mxu0 0.0
    %3817 = vmatpush1.msra.mxu0 0.0
    %3818 = vmatprep.subr.mxu0 0.0
    %3819 = vmatpush1.msra.mxu0 0.0
    %3820 = vmatprep.subr.mxu0 0.0
    %3821 = vmatpush1.msra.mxu0 0.0
    %3822 = vmatprep.subr.mxu0 0.0
    %3823 = vmatpush1.msra.mxu0 0.0
    %3824 = vmatprep.subr.mxu0 0.0
    %3825 = vmatpush1.msra.mxu0 0.0
    %3826 = vmatprep.subr.mxu0 0.0
    %3827 = vmatpush1.msra.mxu0 0.0
    %3828 = vmatprep.subr.mxu0 0.0
    %3829 = vmatpush1.msra.mxu0 0.0
    %3830 = vmatprep.subr.mxu0 0.0
    %3831 = vmatpush1.msra.mxu0 0.0
    %3832 = vmatprep.subr.mxu0 0.0
    %3833 = vmatpush1.msra.mxu0 0.0
    %3834 = vmatprep.subr.mxu0 0.0
    %3835 = vmatpush1.msra.mxu0 0.0
    %3836 = vmatprep.subr.mxu0 0.0
    %3837 = vmatpush1.msra.mxu0 0.0
    %3838 = vmatprep.subr.mxu0 0.0
    %3839 = vmatpush1.msra.mxu0 0.0
    %3840 = vmatprep.subr.mxu0 0.0
    %3841 = vmatpush1.msra.mxu0 0.0
    %3842 = vmatprep.subr.mxu0 0.0
    %3843 = vmatpush1.msra.mxu0 0.0
    %3844 = vmatprep.subr.mxu0 0.0
    %3845 = vmatpush1.msra.mxu0 0.0
    %3846 = vmatprep.subr.mxu0 0.0
    %3847 = vmatpush1.msra.mxu0 0.0
    %3848 = vmatprep.subr.mxu0 0.0
    %3849 = vmatpush1.msra.mxu0 0.0
    %3850 = vmatprep.subr.mxu0 0.0
    %3851 = vmatpush1.msra.mxu0 0.0
    %3852 = vmatprep.subr.mxu0 0.0
    %3853 = vmatpush1.msra.mxu0 0.0
    %3854 = vmatprep.subr.mxu0 0.0
    %3855 = vmatpush1.msra.mxu0 0.0
    %3856 = vmatprep.subr.mxu0 0.0
    %3857 = vmatpush1.msra.mxu0 0.0
    %3858 = vmatprep.mubr.f32.mxu0 0.0
    %3859 = vmatmul.mubr.f32.gmra.mrb[0].mxu0 %v3792
    %v3860 = vpop.f32.mrb[0].mxu0
    %v3861 = vadd.f32 %v2674, %v3860
    %v3862 = vpop.f32.mrb[0].mxu0
    %3863 = vdwg.mxu0
    %v3864 = vadd.f32 %v3788, %v3861
    %v3865 = vxor.u32 %v3864, 2147483648
    %v3866 = vmul.f32 %v3865, 1.442695
    %v3867 = vpow.pop %v3866
    %v3868 = vadd.f32 %v3867, 1.0
    %v3869 = vrcp.pop %v3868
    %v3870 = vmul.f32 1.0, %v3869
    %3872 = vrot.lane.b32.xlu0 %v3861, 64
    %v3873 = vpop.permute.xlu0 %3872
    %v3875 = vmul.f32 %v3870, %v3873
    %3877 = vrot.lane.b32.xlu0 %v3875, 64
    %v3878 = vpop.permute.xlu0 %3877
    %v3880 = vadd.f32 %v3788, %v3878
    %v3881 = vtanh.pop %v3880
    %v3882 = vsub.f32 1.0, %v3870
    %3884 = vrot.lane.b32.xlu0 %v3881, 96
    %v3885 = vpop.permute.xlu0 %3884
    %v3887 = vmul.f32 %v3882, %v3885
    %v3888 = vmul.f32 %v3870, %v3685
    %v3889 = vadd.f32 %v3887, %v3888
    %v3890 = vld [vmem:[#allocation6 + $0x30] sm:$0xff]
    %3892 = vrot.lane.b32.xlu0 %v3787, 96
    %v3893 = vpop.permute.xlu0 %3892
    %v3894 = vsel %vm445, %v3893, 0
    %3896 = vmatprep.subr.mxu0 0.0
    %3897 = vmatpush1.msra.mxu0 %v2654
    %3898 = vmatprep.subr.mxu0 0.0
    %3899 = vmatpush1.msra.mxu0 %v2655
    %3900 = vmatprep.subr.mxu0 0.0
    %3901 = vmatpush1.msra.mxu0 %v2656
    %3902 = vmatprep.subr.mxu0 0.0
    %3903 = vmatpush1.msra.mxu0 %v2657
    %3904 = vmatprep.subr.mxu0 0.0
    %3905 = vmatpush1.msra.mxu0 0.0
    %3906 = vmatprep.subr.mxu0 0.0
    %3907 = vmatpush1.msra.mxu0 0.0
    %3908 = vmatprep.subr.mxu0 0.0
    %3909 = vmatpush1.msra.mxu0 0.0
    %3910 = vmatprep.subr.mxu0 0.0
    %3911 = vmatpush1.msra.mxu0 0.0
    %3912 = vmatprep.subr.mxu0 0.0
    %3913 = vmatpush1.msra.mxu0 0.0
    %3914 = vmatprep.subr.mxu0 0.0
    %3915 = vmatpush1.msra.mxu0 0.0
    %3916 = vmatprep.subr.mxu0 0.0
    %3917 = vmatpush1.msra.mxu0 0.0
    %3918 = vmatprep.subr.mxu0 0.0
    %3919 = vmatpush1.msra.mxu0 0.0
    %3920 = vmatprep.subr.mxu0 0.0
    %3921 = vmatpush1.msra.mxu0 0.0
    %3922 = vmatprep.subr.mxu0 0.0
    %3923 = vmatpush1.msra.mxu0 0.0
    %3924 = vmatprep.subr.mxu0 0.0
    %3925 = vmatpush1.msra.mxu0 0.0
    %3926 = vmatprep.subr.mxu0 0.0
    %3927 = vmatpush1.msra.mxu0 0.0
    %3928 = vmatprep.subr.mxu0 0.0
    %3929 = vmatpush1.msra.mxu0 0.0
    %3930 = vmatprep.subr.mxu0 0.0
    %3931 = vmatpush1.msra.mxu0 0.0
    %3932 = vmatprep.subr.mxu0 0.0
    %3933 = vmatpush1.msra.mxu0 0.0
    %3934 = vmatprep.subr.mxu0 0.0
    %3935 = vmatpush1.msra.mxu0 0.0
    %3936 = vmatprep.subr.mxu0 0.0
    %3937 = vmatpush1.msra.mxu0 0.0
    %3938 = vmatprep.subr.mxu0 0.0
    %3939 = vmatpush1.msra.mxu0 0.0
    %3940 = vmatprep.subr.mxu0 0.0
    %3941 = vmatpush1.msra.mxu0 0.0
    %3942 = vmatprep.subr.mxu0 0.0
    %3943 = vmatpush1.msra.mxu0 0.0
    %3944 = vmatprep.subr.mxu0 0.0
    %3945 = vmatpush1.msra.mxu0 0.0
    %3946 = vmatprep.subr.mxu0 0.0
    %3947 = vmatpush1.msra.mxu0 0.0
    %3948 = vmatprep.subr.mxu0 0.0
    %3949 = vmatpush1.msra.mxu0 0.0
    %3950 = vmatprep.subr.mxu0 0.0
    %3951 = vmatpush1.msra.mxu0 0.0
    %3952 = vmatprep.subr.mxu0 0.0
    %3953 = vmatpush1.msra.mxu0 0.0
    %3954 = vmatprep.subr.mxu0 0.0
    %3955 = vmatpush1.msra.mxu0 0.0
    %3956 = vmatprep.subr.mxu0 0.0
    %3957 = vmatpush1.msra.mxu0 0.0
    %3958 = vmatprep.subr.mxu0 0.0
    %3959 = vmatpush1.msra.mxu0 0.0
    %3960 = vmatprep.mubr.f32.mxu0 0.0
    %3961 = vmatmul.mubr.f32.gmra.mrb[0].mxu0 %v3894
    %v3962 = vpop.f32.mrb[0].mxu0
    %v3963 = vadd.f32 %v2667, %v3962
    %v3964 = vpop.f32.mrb[0].mxu0
    %3965 = vdwg.mxu0
    %v3966 = vadd.f32 %v3890, %v3963
    %v3967 = vxor.u32 %v3966, 2147483648
    %v3968 = vmul.f32 %v3967, 1.442695
    %v3969 = vpow.pop %v3968
    %v3970 = vadd.f32 %v3969, 1.0
    %v3971 = vrcp.pop %v3970
    %v3972 = vmul.f32 1.0, %v3971
    %3974 = vrot.lane.b32.xlu0 %v3963, 64
    %v3975 = vpop.permute.xlu0 %3974
    %v3977 = vmul.f32 %v3972, %v3975
    %3979 = vrot.lane.b32.xlu0 %v3977, 64
    %v3980 = vpop.permute.xlu0 %3979
    %v3982 = vadd.f32 %v3890, %v3980
    %v3983 = vtanh.pop %v3982
    %v3984 = vsub.f32 1.0, %v3972
    %3986 = vrot.lane.b32.xlu0 %v3983, 96
    %v3987 = vpop.permute.xlu0 %3986
    %v3989 = vmul.f32 %v3984, %v3987
    %v3990 = vmul.f32 %v3972, %v3787
    %v3991 = vadd.f32 %v3989, %v3990
    %v3992 = vld [vmem:[#allocation7 + $0x8] sm:$0xff]
    %3994 = vrot.lane.b32.xlu0 %v3889, 96
    %v3995 = vpop.permute.xlu0 %3994
    %v3996 = vsel %vm445, %v3995, 0
    %3998 = vmatprep.subr.mxu0 0.0
    %3999 = vmatpush1.msra.mxu0 %v2658
    %4000 = vmatprep.subr.mxu0 0.0
    %4001 = vmatpush1.msra.mxu0 %v2659
    %4002 = vmatprep.subr.mxu0 0.0
    %4003 = vmatpush1.msra.mxu0 %v2660
    %4004 = vmatprep.subr.mxu0 0.0
    %4005 = vmatpush1.msra.mxu0 %v2661
    %4006 = vmatprep.subr.mxu0 0.0
    %4007 = vmatpush1.msra.mxu0 0.0
    %4008 = vmatprep.subr.mxu0 0.0
    %4009 = vmatpush1.msra.mxu0 0.0
    %4010 = vmatprep.subr.mxu0 0.0
    %4011 = vmatpush1.msra.mxu0 0.0
    %4012 = vmatprep.subr.mxu0 0.0
    %4013 = vmatpush1.msra.mxu0 0.0
    %4014 = vmatprep.subr.mxu0 0.0
    %4015 = vmatpush1.msra.mxu0 0.0
    %4016 = vmatprep.subr.mxu0 0.0
    %4017 = vmatpush1.msra.mxu0 0.0
    %4018 = vmatprep.subr.mxu0 0.0
    %4019 = vmatpush1.msra.mxu0 0.0
    %4020 = vmatprep.subr.mxu0 0.0
    %4021 = vmatpush1.msra.mxu0 0.0
    %4022 = vmatprep.subr.mxu0 0.0
    %4023 = vmatpush1.msra.mxu0 0.0
    %4024 = vmatprep.subr.mxu0 0.0
    %4025 = vmatpush1.msra.mxu0 0.0
    %4026 = vmatprep.subr.mxu0 0.0
    %4027 = vmatpush1.msra.mxu0 0.0
    %4028 = vmatprep.subr.mxu0 0.0
    %4029 = vmatpush1.msra.mxu0 0.0
    %4030 = vmatprep.subr.mxu0 0.0
    %4031 = vmatpush1.msra.mxu0 0.0
    %4032 = vmatprep.subr.mxu0 0.0
    %4033 = vmatpush1.msra.mxu0 0.0
    %4034 = vmatprep.subr.mxu0 0.0
    %4035 = vmatpush1.msra.mxu0 0.0
    %4036 = vmatprep.subr.mxu0 0.0
    %4037 = vmatpush1.msra.mxu0 0.0
    %4038 = vmatprep.subr.mxu0 0.0
    %4039 = vmatpush1.msra.mxu0 0.0
    %4040 = vmatprep.subr.mxu0 0.0
    %4041 = vmatpush1.msra.mxu0 0.0
    %4042 = vmatprep.subr.mxu0 0.0
    %4043 = vmatpush1.msra.mxu0 0.0
    %4044 = vmatprep.subr.mxu0 0.0
    %4045 = vmatpush1.msra.mxu0 0.0
    %4046 = vmatprep.subr.mxu0 0.0
    %4047 = vmatpush1.msra.mxu0 0.0
    %4048 = vmatprep.subr.mxu0 0.0
    %4049 = vmatpush1.msra.mxu0 0.0
    %4050 = vmatprep.subr.mxu0 0.0
    %4051 = vmatpush1.msra.mxu0 0.0
    %4052 = vmatprep.subr.mxu0 0.0
    %4053 = vmatpush1.msra.mxu0 0.0
    %4054 = vmatprep.subr.mxu0 0.0
    %4055 = vmatpush1.msra.mxu0 0.0
    %4056 = vmatprep.subr.mxu0 0.0
    %4057 = vmatpush1.msra.mxu0 0.0
    %4058 = vmatprep.subr.mxu0 0.0
    %4059 = vmatpush1.msra.mxu0 0.0
    %4060 = vmatprep.subr.mxu0 0.0
    %4061 = vmatpush1.msra.mxu0 0.0
    %4062 = vmatprep.mubr.f32.mxu0 0.0
    %4063 = vmatmul.mubr.f32.gmra.mrb[0].mxu0 %v3996
    %v4064 = vpop.f32.mrb[0].mxu0
    %v4065 = vadd.f32 %v2674, %v4064
    %v4066 = vpop.f32.mrb[0].mxu0
    %4067 = vdwg.mxu0
    %v4068 = vadd.f32 %v3992, %v4065
    %v4069 = vxor.u32 %v4068, 2147483648
    %v4070 = vmul.f32 %v4069, 1.442695
    %v4071 = vpow.pop %v4070
    %v4072 = vadd.f32 %v4071, 1.0
    %v4073 = vrcp.pop %v4072
    %v4074 = vmul.f32 1.0, %v4073
    %4076 = vrot.lane.b32.xlu0 %v4065, 64
    %v4077 = vpop.permute.xlu0 %4076
    %v4079 = vmul.f32 %v4074, %v4077
    %4081 = vrot.lane.b32.xlu0 %v4079, 64
    %v4082 = vpop.permute.xlu0 %4081
    %v4084 = vadd.f32 %v3992, %v4082
    %v4085 = vtanh.pop %v4084
    %v4086 = vsub.f32 1.0, %v4074
    %4088 = vrot.lane.b32.xlu0 %v4085, 96
    %v4089 = vpop.permute.xlu0 %4088
    %v4091 = vmul.f32 %v4086, %v4089
    %v4092 = vmul.f32 %v4074, %v3889
    %v4093 = vadd.f32 %v4091, %v4092
    %v4094 = vld [vmem:[#allocation6 + $0x38] sm:$0xff]
    %4096 = vrot.lane.b32.xlu0 %v3991, 96
    %v4097 = vpop.permute.xlu0 %4096
    %v4098 = vsel %vm445, %v4097, 0
    %4100 = vmatprep.subr.mxu0 0.0
    %4101 = vmatpush1.msra.mxu0 %v2654
    %4102 = vmatprep.subr.mxu0 0.0
    %4103 = vmatpush1.msra.mxu0 %v2655
    %4104 = vmatprep.subr.mxu0 0.0
    %4105 = vmatpush1.msra.mxu0 %v2656
    %4106 = vmatprep.subr.mxu0 0.0
    %4107 = vmatpush1.msra.mxu0 %v2657
    %4108 = vmatprep.subr.mxu0 0.0
    %4109 = vmatpush1.msra.mxu0 0.0
    %4110 = vmatprep.subr.mxu0 0.0
    %4111 = vmatpush1.msra.mxu0 0.0
    %4112 = vmatprep.subr.mxu0 0.0
    %4113 = vmatpush1.msra.mxu0 0.0
    %4114 = vmatprep.subr.mxu0 0.0
    %4115 = vmatpush1.msra.mxu0 0.0
    %4116 = vmatprep.subr.mxu0 0.0
    %4117 = vmatpush1.msra.mxu0 0.0
    %4118 = vmatprep.subr.mxu0 0.0
    %4119 = vmatpush1.msra.mxu0 0.0
    %4120 = vmatprep.subr.mxu0 0.0
    %4121 = vmatpush1.msra.mxu0 0.0
    %4122 = vmatprep.subr.mxu0 0.0
    %4123 = vmatpush1.msra.mxu0 0.0
    %4124 = vmatprep.subr.mxu0 0.0
    %4125 = vmatpush1.msra.mxu0 0.0
    %4126 = vmatprep.subr.mxu0 0.0
    %4127 = vmatpush1.msra.mxu0 0.0
    %4128 = vmatprep.subr.mxu0 0.0
    %4129 = vmatpush1.msra.mxu0 0.0
    %4130 = vmatprep.subr.mxu0 0.0
    %4131 = vmatpush1.msra.mxu0 0.0
    %4132 = vmatprep.subr.mxu0 0.0
    %4133 = vmatpush1.msra.mxu0 0.0
    %4134 = vmatprep.subr.mxu0 0.0
    %4135 = vmatpush1.msra.mxu0 0.0
    %4136 = vmatprep.subr.mxu0 0.0
    %4137 = vmatpush1.msra.mxu0 0.0
    %4138 = vmatprep.subr.mxu0 0.0
    %4139 = vmatpush1.msra.mxu0 0.0
    %4140 = vmatprep.subr.mxu0 0.0
    %4141 = vmatpush1.msra.mxu0 0.0
    %4142 = vmatprep.subr.mxu0 0.0
    %4143 = vmatpush1.msra.mxu0 0.0
    %4144 = vmatprep.subr.mxu0 0.0
    %4145 = vmatpush1.msra.mxu0 0.0
    %4146 = vmatprep.subr.mxu0 0.0
    %4147 = vmatpush1.msra.mxu0 0.0
    %4148 = vmatprep.subr.mxu0 0.0
    %4149 = vmatpush1.msra.mxu0 0.0
    %4150 = vmatprep.subr.mxu0 0.0
    %4151 = vmatpush1.msra.mxu0 0.0
    %4152 = vmatprep.subr.mxu0 0.0
    %4153 = vmatpush1.msra.mxu0 0.0
    %4154 = vmatprep.subr.mxu0 0.0
    %4155 = vmatpush1.msra.mxu0 0.0
    %4156 = vmatprep.subr.mxu0 0.0
    %4157 = vmatpush1.msra.mxu0 0.0
    %4158 = vmatprep.subr.mxu0 0.0
    %4159 = vmatpush1.msra.mxu0 0.0
    %4160 = vmatprep.subr.mxu0 0.0
    %4161 = vmatpush1.msra.mxu0 0.0
    %4162 = vmatprep.subr.mxu0 0.0
    %4163 = vmatpush1.msra.mxu0 0.0
    %4164 = vmatprep.mubr.f32.mxu0 0.0
    %4165 = vmatmul.mubr.f32.gmra.mrb[0].mxu0 %v4098
    %v4166 = vpop.f32.mrb[0].mxu0
    %v4167 = vadd.f32 %v2667, %v4166
    %v4168 = vpop.f32.mrb[0].mxu0
    %4169 = vdwg.mxu0
    %v4170 = vadd.f32 %v4094, %v4167
    %v4171 = vxor.u32 %v4170, 2147483648
    %v4172 = vmul.f32 %v4171, 1.442695
    %v4173 = vpow.pop %v4172
    %v4174 = vadd.f32 %v4173, 1.0
    %v4175 = vrcp.pop %v4174
    %v4176 = vmul.f32 1.0, %v4175
    %4178 = vrot.lane.b32.xlu0 %v4167, 64
    %v4179 = vpop.permute.xlu0 %4178
    %v4181 = vmul.f32 %v4176, %v4179
    %4183 = vrot.lane.b32.xlu0 %v4181, 64
    %v4184 = vpop.permute.xlu0 %4183
    %v4186 = vadd.f32 %v4094, %v4184
    %v4187 = vtanh.pop %v4186
    %v4188 = vsub.f32 1.0, %v4176
    %4190 = vrot.lane.b32.xlu0 %v4187, 96
    %v4191 = vpop.permute.xlu0 %4190
    %v4193 = vmul.f32 %v4188, %v4191
    %v4194 = vmul.f32 %v4176, %v3991
    %v4195 = vadd.f32 %v4193, %v4194
    %v4196 = vld [vmem:[#allocation7] sm:$0xff]
    %4198 = vrot.lane.b32.xlu0 %v4093, 96
    %v4199 = vpop.permute.xlu0 %4198
    %v4200 = vsel %vm445, %v4199, 0
    %4202 = vmatprep.subr.mxu0 0.0
    %4203 = vmatpush1.msra.mxu0 %v2658
    %4204 = vmatprep.subr.mxu0 0.0
    %4205 = vmatpush1.msra.mxu0 %v2659
    %4206 = vmatprep.subr.mxu0 0.0
    %4207 = vmatpush1.msra.mxu0 %v2660
    %4208 = vmatprep.subr.mxu0 0.0
    %4209 = vmatpush1.msra.mxu0 %v2661
    %4210 = vmatprep.subr.mxu0 0.0
    %4211 = vmatpush1.msra.mxu0 0.0
    %4212 = vmatprep.subr.mxu0 0.0
    %4213 = vmatpush1.msra.mxu0 0.0
    %4214 = vmatprep.subr.mxu0 0.0
    %4215 = vmatpush1.msra.mxu0 0.0
    %4216 = vmatprep.subr.mxu0 0.0
    %4217 = vmatpush1.msra.mxu0 0.0
    %4218 = vmatprep.subr.mxu0 0.0
    %4219 = vmatpush1.msra.mxu0 0.0
    %4220 = vmatprep.subr.mxu0 0.0
    %4221 = vmatpush1.msra.mxu0 0.0
    %4222 = vmatprep.subr.mxu0 0.0
    %4223 = vmatpush1.msra.mxu0 0.0
    %4224 = vmatprep.subr.mxu0 0.0
    %4225 = vmatpush1.msra.mxu0 0.0
    %4226 = vmatprep.subr.mxu0 0.0
    %4227 = vmatpush1.msra.mxu0 0.0
    %4228 = vmatprep.subr.mxu0 0.0
    %4229 = vmatpush1.msra.mxu0 0.0
    %4230 = vmatprep.subr.mxu0 0.0
    %4231 = vmatpush1.msra.mxu0 0.0
    %4232 = vmatprep.subr.mxu0 0.0
    %4233 = vmatpush1.msra.mxu0 0.0
    %4234 = vmatprep.subr.mxu0 0.0
    %4235 = vmatpush1.msra.mxu0 0.0
    %4236 = vmatprep.subr.mxu0 0.0
    %4237 = vmatpush1.msra.mxu0 0.0
    %4238 = vmatprep.subr.mxu0 0.0
    %4239 = vmatpush1.msra.mxu0 0.0
    %4240 = vmatprep.subr.mxu0 0.0
    %4241 = vmatpush1.msra.mxu0 0.0
    %4242 = vmatprep.subr.mxu0 0.0
    %4243 = vmatpush1.msra.mxu0 0.0
    %4244 = vmatprep.subr.mxu0 0.0
    %4245 = vmatpush1.msra.mxu0 0.0
    %4246 = vmatprep.subr.mxu0 0.0
    %4247 = vmatpush1.msra.mxu0 0.0
    %4248 = vmatprep.subr.mxu0 0.0
    %4249 = vmatpush1.msra.mxu0 0.0
    %4250 = vmatprep.subr.mxu0 0.0
    %4251 = vmatpush1.msra.mxu0 0.0
    %4252 = vmatprep.subr.mxu0 0.0
    %4253 = vmatpush1.msra.mxu0 0.0
    %4254 = vmatprep.subr.mxu0 0.0
    %4255 = vmatpush1.msra.mxu0 0.0
    %4256 = vmatprep.subr.mxu0 0.0
    %4257 = vmatpush1.msra.mxu0 0.0
    %4258 = vmatprep.subr.mxu0 0.0
    %4259 = vmatpush1.msra.mxu0 0.0
    %4260 = vmatprep.subr.mxu0 0.0
    %4261 = vmatpush1.msra.mxu0 0.0
    %4262 = vmatprep.subr.mxu0 0.0
    %4263 = vmatpush1.msra.mxu0 0.0
    %4264 = vmatprep.subr.mxu0 0.0
    %4265 = vmatpush1.msra.mxu0 0.0
    %4266 = vmatprep.mubr.f32.mxu0 0.0
    %4267 = vmatmul.mubr.f32.gmra.mrb[0].mxu0 %v4200
    %v4268 = vpop.f32.mrb[0].mxu0
    %v4269 = vadd.f32 %v2674, %v4268
    %v4270 = vpop.f32.mrb[0].mxu0
    %4271 = vdwg.mxu0
    %v4272 = vadd.f32 %v4196, %v4269
    %v4273 = vxor.u32 %v4272, 2147483648
    %v4274 = vmul.f32 %v4273, 1.442695
    %v4275 = vpow.pop %v4274
    %v4276 = vadd.f32 %v4275, 1.0
    %v4277 = vrcp.pop %v4276
    %v4278 = vmul.f32 1.0, %v4277
    %4280 = vrot.lane.b32.xlu0 %v4269, 64
    %v4281 = vpop.permute.xlu0 %4280
    %v4283 = vmul.f32 %v4278, %v4281
    %4285 = vrot.lane.b32.xlu0 %v4283, 64
    %v4286 = vpop.permute.xlu0 %4285
    %v4288 = vadd.f32 %v4196, %v4286
    %v4289 = vtanh.pop %v4288
    %v4290 = vsub.f32 1.0, %v4278
    %4292 = vrot.lane.b32.xlu0 %v4289, 96
    %v4293 = vpop.permute.xlu0 %4292
    %v4295 = vmul.f32 %v4290, %v4293
    %v4296 = vmul.f32 %v4278, %v4093
    %v4297 = vadd.f32 %v4295, %v4296
    %4299 = vrot.lane.b32.xlu0 %v4195, 32
    %v4300 = vpop.permute.xlu0 %4299
    %4303 = vrot.lane.b32.xlu0 %v4297, 64
    %v4304 = vpop.permute.xlu0 %4303
    %v4306 = vsel %vm445, %v2100, %v2097
    %vm4307 = vcmask 523264
    %v4308 = vsel %vm4307, %v4306, %v4300
    %v4309 = vsel %vm292, %v4308, %v4304
    %4310 = vst [vmem:[#allocation20] sm:$0xff] %v4309
    // Predicated region
    $region98: #{tpu_custom_call.1} parent=1 // pred_check
      _
    $region99: #{tpu_custom_call.1} parent=1 // pred_check_branch
      %4312 = sbr.rel (0) target = $region101
    $region100: #{tpu_custom_call.1} parent=1 // pred_region
      %s4314 = ssub.s32 128, 128
      %4315 = vsyncadd [#allocation10], %s4314
      %s4317 = sshll.u32 [#allocation20], 4
      %s4318 = int_to_ptr.vmem [resolvable:$true] %s4317
      %4320 = dma.vmem_to_hbm [thread:$0]  %s4318, 128, %s17, [#allocation10]
    $region101: #{tpu_custom_call.1} parent=1 // pred_fallthru
      _
    // Predicated region
    $region102: #{tpu_custom_call.1} parent=1 // pred_check
      _
    $region103: #{tpu_custom_call.1} parent=1 // pred_check_branch
      %4322 = sbr.rel (0) target = $region105
    $region104: #{tpu_custom_call.1} parent=1 // pred_region
      %4323 = dma.done [#allocation10], 128
    $region105: #{tpu_custom_call.1} parent=1 // pred_fallthru
      _
    %4324 = vsyncpa [#allocation9], 1
    %4325 = vsyncpa [#allocation12], 1
    %4326 = vsyncpa [#allocation15], 1
    %4327 = vsyncpa [#allocation18], 1
    %4328 = vsyncpa [#allocation10], 1

</llo_original>
